<compile_context>
chip_gen: v5e
topology: v5e:2x2
jax: 0.10.0
libtpu: 0.0.40
codegen_flags: <defaults>
</compile_context>

<pallas_src>
import functools
import math

import jax
import jax.numpy as jnp
from jax.experimental import pallas as pl
from jax.experimental.pallas import tpu as pltpu


# ----------------------------------------------------------------------------
# In-kernel helpers
# ----------------------------------------------------------------------------
def _zero_pad_border(pad_ref):
    """Zero only the 1-pixel border of a padded (nb, hp+2, wp+2, cp) scratch buffer.

    Called every grid step (per-core safe under "parallel"); interiors are fully
    overwritten by _im2col, so borders are the only state that must be (re)set.
    """
    nb, hpp, wpp, cp = pad_ref.shape
    zr = jnp.zeros((nb, 1, wpp, cp), pad_ref.dtype)
    zc = jnp.zeros((nb, hpp, 1, cp), pad_ref.dtype)
    pad_ref[:, 0:1, :, :] = zr
    pad_ref[:, hpp - 1:hpp, :, :] = zr
    pad_ref[:, :, 0:1, :] = zc
    pad_ref[:, :, wpp - 1:wpp, :] = zc


def _im2col(img4, pad_ref, patch_ref):
    """3x3 im2col with implicit zero padding.

    img4: (nb, hp, wp, cp) activation image; written into the interior of pad_ref
    (nb, hp+2, wp+2, cp) whose border is kept zero.  The nine shifted windows are
    stored (with a dtype cast, e.g. f32 -> bf16) into patch_ref (nb*hp*wp, 9*cp),
    which is returned as a value.
    """
    nb, hpp, wpp, cp = pad_ref.shape
    hp, wp = hpp - 2, wpp - 2
    m = nb * hp * wp
    pad_ref[:, 1:hp + 1, 1:wp + 1, :] = img4.astype(pad_ref.dtype)
    for dy in range(3):
        for dx in range(3):
            k = dy * 3 + dx
            win = pad_ref[:, dy:dy + hp, dx:dx + wp, :]          # (nb, hp, wp, cp)
            patch_ref[:, k * cp:(k + 1) * cp] = win.reshape(m, cp).astype(patch_ref.dtype)
    return patch_ref[...]


def _ecmba_kernel(x_ref,                        # (NB, Hp, Wp, Cin) pooled input (f32)
                  w0, b0,                       # conv0 folded: (9*Cin, C) bf16, (1, C) f32
                  w1, b1,                       # BasicBlock conv1 folded + BN1 bias
                  w2, b2,                       # BasicBlock conv2 folded + BN2 bias
                  caw1, caw2,                   # ChannelAttention fc1/fc2 (f32)
                  ba1w,                         # BoundaryAttention conv1 weights in col 0 of (9*C, 8) bf16
                  ba2row,                       # BoundaryAttention conv2 weight row (1, 72) f32
                  o_ref,                        # (NB, Hp, Wp*C) lane-dense output block
                  pad_in, pad_c, pad_ba,        # padded NHWC scratch (f32)
                  patch_in, patch_c, patch_ba,  # im2col patch scratch (bf16 / bf16 / f32)
                  *, NB, Hp, Wp, Cin, C):
    M = NB * Hp * Wp

    # Padded-scratch borders zeroed every step: cheap, and per-core safe on v7x.
    _zero_pad_border(pad_in)
    _zero_pad_border(pad_c)
    _zero_pad_border(pad_ba)

    # ---- Conv2d(Cin, C, 3, pad=1) + folded BN + ReLU: one bf16 im2col MXU matmul ----
    p0 = _im2col(x_ref[...], pad_in, patch_in)                   # (M, 9*Cin) bf16
    t = jnp.dot(p0, w0[...], preferred_element_type=jnp.float32) + b0[...]
    t = jnp.maximum(t, 0.0)                                      # (M, C) f32
    residual = t

    # ---- BasicBlock conv1 + BN1 + ReLU ----
    p1 = _im2col(t.reshape(NB, Hp, Wp, C), pad_c, patch_c)       # (M, 9*C) bf16
    u = jnp.maximum(jnp.dot(p1, w1[...], preferred_element_type=jnp.float32) + b1[...], 0.0)

    # ---- BasicBlock conv2 + BN2 ----
    p2 = _im2col(u.reshape(NB, Hp, Wp, C), pad_c, patch_c)
    v = jnp.dot(p2, w2[...], preferred_element_type=jnp.float32) + b2[...]   # (M, C) f32

    # ---- ChannelAttention: one MLP pass over stacked [avg; max] rows ----
    vb = v.reshape(NB, Hp * Wp, C)
    stat = jnp.concatenate([jnp.mean(vb, axis=1), jnp.max(vb, axis=1)], axis=0)  # (2*NB, C)
    h = jnp.maximum(jnp.dot(stat, caw1[...], preferred_element_type=jnp.float32), 0.0)
    s = jnp.dot(h, caw2[...], preferred_element_type=jnp.float32)                # (2*NB, C)
    ca = jax.nn.sigmoid(s[:NB] + s[NB:])                         # (NB, C)
    v = (vb * ca[:, None, :]).reshape(M, C)

    # ---- BoundaryAttention ----
    ch_avg = jnp.mean(v, axis=-1, keepdims=True)                 # (M, 1)
    pe = _im2col((v - ch_avg).reshape(NB, Hp, Wp, C), pad_c, patch_c)   # (M, 9*C) bf16
    # conv1 (C -> 1) on the MXU: ba1w holds the real weights in column 0 (zeros in
    # columns 1..7), so r[:, 0] is the edge map and r[:, 1:] == 0.
    r = jnp.dot(pe, ba1w[...], preferred_element_type=jnp.float32)      # (M, 8) f32
    lane8 = jax.lax.broadcasted_iota(jnp.int32, (M, 8), 1)
    mini = jnp.where(lane8 == 1, ch_avg, r)                      # channels: [edge, avg, 0...]
    # conv2 (2 -> 1) over a narrow 8-channel padded mini-image (f32 VPU, tiny)
    pb = _im2col(mini.reshape(NB, Hp, Wp, 8), pad_ba, patch_ba)  # (M, 72) f32
    b = jnp.sum(pb * ba2row[...], axis=-1, keepdims=True)        # (M, 1)
    v = v * jax.nn.sigmoid(b)

    # ---- residual add + ReLU, lane-dense store (Wp static lane-slice stores) ----
    out = jnp.maximum(v + residual, 0.0).reshape(NB, Hp, Wp, C)
    for w in range(Wp):
        o_ref[:, :, w * C:(w + 1) * C] = out[:, :, w, :].astype(o_ref.dtype)


# ----------------------------------------------------------------------------
# Host-side constant folding (eval-mode BN folded into conv weights / biases)
# ----------------------------------------------------------------------------
def _fold_params(p):
    f32 = jnp.float32
    s0, b0 = p["bn0_s"].astype(f32), p["bn0_b"].astype(f32)
    s1, b1 = p["bn1_s"].astype(f32), p["bn1_b"].astype(f32)
    s2, b2 = p["bn2_s"].astype(f32), p["bn2_b"].astype(f32)
    return {
        "w0": p["conv0_w"].astype(f32) * s0,                 # scale folded into weights
        "b0": s0 * p["conv0_b"].astype(f32) + b0,            # conv bias folded into BN bias
        "w1": p["conv1_w"].astype(f32) * s1, "b1": b1,
        "w2": p["conv2_w"].astype(f32) * s2, "b2": b2,
    }


# ----------------------------------------------------------------------------
# Wrapper (NCHW in / NCHW out)
# ----------------------------------------------------------------------------
def ecmba_forward(x_nchw, p, batch_block=None):
    x = jnp.transpose(x_nchw, (0, 2, 3, 1)).astype(jnp.float32)      # -> NHWC
    N, H, W, Cin = x.shape
    Hp, Wp = H // 2, W // 2
    C = p["conv0_w"].shape[-1]

    # MaxPool2d(2) fused into the strided-tap gather: the kernel sees a pooled
    # (N, Hp, Wp, Cin) input -> 4x smaller input block / HBM traffic.
    pooled = jnp.maximum(
        jnp.maximum(x[:, 0::2, 0::2, :], x[:, 0::2, 1::2, :]),
        jnp.maximum(x[:, 1::2, 0::2, :], x[:, 1::2, 1::2, :]))

    # Aim for >= 2 (ideally 4) grid steps so the input/output DMAs pipeline against
    # compute; keep the grid a multiple of 2 where possible for v7x's 2 TensorCores.
    if batch_block is None:
        for steps in (4, 2, 1):
            if N % steps == 0:
                batch_block = N // steps
                break
    NB = batch_block
    assert N % NB == 0
    grid = (N // NB,)
    M = NB * Hp * Wp

    fold = _fold_params(p)
    bf16 = jnp.bfloat16
    w2d = lambda w: w.reshape(9 * w.shape[2], w.shape[3]).astype(bf16)
    row = lambda a: a.reshape(1, -1).astype(jnp.float32)

    # BoundaryAttention conv1 (C->1): real weights in column 0 of an 8-wide matrix.
    ba1w = jnp.zeros((9 * C, 8), jnp.float32).at[:, 0].set(
        p["ba_w1"].astype(jnp.float32).reshape(9 * C)).astype(bf16)
    # BoundaryAttention conv2 (2->1): weights scattered into the 8-wide mini-channel slots.
    ba2row = jnp.zeros((3, 3, 8, 1), jnp.float32).at[:, :, 0:2, :].set(
        p["ba_w2"].astype(jnp.float32)).reshape(1, 72)

    args = (pooled,
            w2d(fold["w0"]), row(fold["b0"]),
            w2d(fold["w1"]), row(fold["b1"]),
            w2d(fold["w2"]), row(fold["b2"]),
            p["ca_w1"].astype(jnp.float32), p["ca_w2"].astype(jnp.float32),
            ba1w, ba2row)

    def full_spec(a):
        nd = a.ndim
        return pl.BlockSpec(a.shape, lambda b, nd=nd: (0,) * nd)

    in_specs = [pl.BlockSpec((NB, Hp, Wp, Cin), lambda b: (b, 0, 0, 0))]
    in_specs += [full_spec(a) for a in args[1:]]
    out_spec = pl.BlockSpec((NB, Hp, Wp * C), lambda b: (b, 0, 0))

    kern = functools.partial(_ecmba_kernel, NB=NB, Hp=Hp, Wp=Wp, Cin=Cin, C=C)

    # TODO(synk): at production sizes (large H*W*C), tile Hp into row strips (1-row
    # halo) and/or switch to 9 shifted-window matmuls to keep the (M, 9C) patch
    # scratch within v7x's 64 MiB VMEM; raise vmem_limit_bytes accordingly.
    out = pl.pallas_call(
        kern,
        out_shape=jax.ShapeDtypeStruct((N, Hp, Wp * C), jnp.float32),
        grid_spec=pltpu.PrefetchScalarGridSpec(
            num_scalar_prefetch=0,
            grid=grid,
            in_specs=in_specs,
            out_specs=out_spec,
            scratch_shapes=[
                pltpu.VMEM((NB, Hp + 2, Wp + 2, Cin), jnp.float32),   # padded conv0 input
                pltpu.VMEM((NB, Hp + 2, Wp + 2, C), jnp.float32),     # padded C-wide image
                pltpu.VMEM((NB, Hp + 2, Wp + 2, 8), jnp.float32),     # padded BA mini-image
                pltpu.VMEM((M, 9 * Cin), bf16),                       # im2col (conv0), bf16
                pltpu.VMEM((M, 9 * C), bf16),                         # im2col (conv1/2, BA edge), bf16
                pltpu.VMEM((M, 9 * 8), jnp.float32),                  # im2col (BA conv2), f32
            ]),
        compiler_params=pltpu.CompilerParams(
            dimension_semantics=("parallel",),
            vmem_limit_bytes=32 * 1024 * 1024),
    )(*args)

    out = out.reshape(N, Hp, Wp, C)                                   # wrapper-side layout glue
    return jnp.transpose(out, (0, 3, 1, 2))                           # -> NCHW


# ----------------------------------------------------------------------------
# Deterministic parameter init (shapes from the PyTorch module __init__)
# ----------------------------------------------------------------------------
def init_params(key, cin, cout):
    assert cout >= 16 and cout % 16 == 0, "ChannelAttention hardcodes planes // 16"
    cr = cout // 16
    keys = iter(jax.random.split(key, 32))

    def u(shape, fan_in):
        b = 1.0 / math.sqrt(fan_in)
        return jax.random.uniform(next(keys), shape, jnp.float32, -b, b)

    def bn_fold():
        gamma = jax.random.uniform(next(keys), (cout,), jnp.float32, 0.5, 1.5)
        beta = 0.1 * jax.random.normal(next(keys), (cout,), jnp.float32)
        mean = 0.1 * jax.random.normal(next(keys), (cout,), jnp.float32)
        var = jax.random.uniform(next(keys), (cout,), jnp.float32, 0.5, 1.5)
        s = gamma / jnp.sqrt(var + 1e-5)
        return s, beta - mean * s

    p = {}
    p["conv0_w"] = u((3, 3, cin, cout), 9 * cin)          # Conv2d(in,out,3,pad=1)
    p["conv0_b"] = u((cout,), 9 * cin)
    p["bn0_s"], p["bn0_b"] = bn_fold()
    p["conv1_w"] = u((3, 3, cout, cout), 9 * cout)        # conv3x3 (no bias)
    p["bn1_s"], p["bn1_b"] = bn_fold()
    p["conv2_w"] = u((3, 3, cout, cout), 9 * cout)
    p["bn2_s"], p["bn2_b"] = bn_fold()
    p["ca_w1"] = u((cout, cr), cout)                      # 1x1 conv as (in,out)
    p["ca_w2"] = u((cr, cout), cr)
    p["ba_w1"] = u((3, 3, cout, 1), 9 * cout)
    p["ba_w2"] = u((3, 3, 2, 1), 9 * 2)
    return p


# ----------------------------------------------------------------------------
# Pure-JAX reference (same math and the same bf16 MXU-operand / folding policy)
# ----------------------------------------------------------------------------
def _ref_forward(x_nchw, p):
    x = jnp.transpose(x_nchw, (0, 2, 3, 1)).astype(jnp.float32)
    pooled = jnp.maximum(jnp.maximum(x[:, 0::2, 0::2, :], x[:, 0::2, 1::2, :]),
                         jnp.maximum(x[:, 1::2, 0::2, :], x[:, 1::2, 1::2, :]))
    fold = _fold_params(p)

    def conv(z, w, bf16_operands):
        if bf16_operands:   # matches the kernel's bf16 MXU-operand / f32-accumulate policy
            z = z.astype(jnp.bfloat16)
            w = w.astype(jnp.bfloat16)
        return jax.lax.conv_general_dilated(
            z, w, (1, 1), ((1, 1), (1, 1)),
            dimension_numbers=("NHWC", "HWIO", "NHWC"),
            preferred_element_type=jnp.float32)

    t = jax.nn.relu(conv(pooled, fold["w0"], True) + fold["b0"])
    residual = t
    u = jax.nn.relu(conv(t, fold["w1"], True) + fold["b1"])
    v = conv(u, fold["w2"], True) + fold["b2"]

    avg = jnp.mean(v, axis=(1, 2))
    mx = jnp.max(v, axis=(1, 2))
    mlp = lambda z: jax.nn.relu(z @ p["ca_w1"]) @ p["ca_w2"]
    ca = jax.nn.sigmoid(mlp(avg) + mlp(mx))[:, None, None, :]
    v = v * ca

    ch_avg = jnp.mean(v, axis=-1, keepdims=True)
    edge = conv(v - ch_avg, p["ba_w1"], True)             # kernel uses bf16 MXU operands here
    b = conv(jnp.concatenate([edge, ch_avg], axis=-1), p["ba_w2"], False)
    v = v * jax.nn.sigmoid(b)

    out = jax.nn.relu(v + residual)
    return jnp.transpose(out, (0, 3, 1, 2))


# ----------------------------------------------------------------------------
if __name__ == "__main__":
    key = jax.random.PRNGKey(0)
    kx, kp = jax.random.split(key)

    N, Cin, H, W = 2, 4, 16, 16
    Cout = 16

    x = jax.random.normal(kx, (N, Cin, H, W), jnp.float32)
    params = init_params(kp, Cin, Cout)

    out = jax.block_until_ready(jax.jit(ecmba_forward)(x, params))
    assert out.shape == (N, Cout, H // 2, W // 2), out.shape

    ref = _ref_forward(x, params)
    if not bool(jnp.allclose(out, ref, rtol=2e-2, atol=2e-2)):
        err = float(jnp.max(jnp.abs(out - ref)))
        raise AssertionError(f"Pallas kernel mismatch vs reference, max abs err = {err}")

    print("KERNEL_OK")
</pallas_src>

<mosaic_0001>
module attributes {stable_mosaic.version = 11 : i64} {
  func.func @_ecmba_kernel(%arg0: i32, %arg1: memref<1x8x8x4xf32, #tpu.memory_space<vmem>>, %arg2: memref<36x16xbf16, #tpu.memory_space<vmem>>, %arg3: memref<1x16xf32, #tpu.memory_space<vmem>>, %arg4: memref<144x16xbf16, #tpu.memory_space<vmem>>, %arg5: memref<1x16xf32, #tpu.memory_space<vmem>>, %arg6: memref<144x16xbf16, #tpu.memory_space<vmem>>, %arg7: memref<1x16xf32, #tpu.memory_space<vmem>>, %arg8: memref<16x1xf32, #tpu.memory_space<vmem>>, %arg9: memref<1x16xf32, #tpu.memory_space<vmem>>, %arg10: memref<144x8xbf16, #tpu.memory_space<vmem>>, %arg11: memref<1x72xf32, #tpu.memory_space<vmem>>, %arg12: memref<1x8x128xf32, #tpu.memory_space<vmem>>, %arg13: memref<1x10x10x4xf32, #tpu.memory_space<vmem>>, %arg14: memref<1x10x10x16xf32, #tpu.memory_space<vmem>>, %arg15: memref<1x10x10x8xf32, #tpu.memory_space<vmem>>, %arg16: memref<64x36xbf16, #tpu.memory_space<vmem>>, %arg17: memref<64x144xbf16, #tpu.memory_space<vmem>>, %arg18: memref<64x72xf32, #tpu.memory_space<vmem>>) attributes {dimension_semantics = [#tpu.dimension_semantics<parallel>], iteration_bounds = array<i64: 2>, scalar_prefetch = 0 : i64, scratch_operands = 6 : i64, tpu.core_type = #tpu.core_type<tc>, window_params = [{transform_indices = @transform_0, window_bounds = array<i64: 1, 8, 8, 4>}, {pipeline_mode = #tpu.pipeline_mode<synchronous>, transform_indices = @transform_1, window_bounds = array<i64: 36, 16>}, {pipeline_mode = #tpu.pipeline_mode<synchronous>, transform_indices = @transform_2, window_bounds = array<i64: 1, 16>}, {pipeline_mode = #tpu.pipeline_mode<synchronous>, transform_indices = @transform_3, window_bounds = array<i64: 144, 16>}, {pipeline_mode = #tpu.pipeline_mode<synchronous>, transform_indices = @transform_4, window_bounds = array<i64: 1, 16>}, {pipeline_mode = #tpu.pipeline_mode<synchronous>, transform_indices = @transform_5, window_bounds = array<i64: 144, 16>}, {pipeline_mode = #tpu.pipeline_mode<synchronous>, transform_indices = @transform_6, window_bounds = array<i64: 1, 16>}, {pipeline_mode = #tpu.pipeline_mode<synchronous>, transform_indices = @transform_7, window_bounds = array<i64: 16, 1>}, {pipeline_mode = #tpu.pipeline_mode<synchronous>, transform_indices = @transform_8, window_bounds = array<i64: 1, 16>}, {pipeline_mode = #tpu.pipeline_mode<synchronous>, transform_indices = @transform_9, window_bounds = array<i64: 144, 8>}, {pipeline_mode = #tpu.pipeline_mode<synchronous>, transform_indices = @transform_10, window_bounds = array<i64: 1, 72>}, {transform_indices = @transform_11, window_bounds = array<i64: 1, 8, 128>}]} {
    %cst = arith.constant 0.000000e+00 : f32
    %0 = vector.broadcast %cst : f32 to vector<1x1x10x4xf32>
    %cst_0 = arith.constant 0.000000e+00 : f32
    %1 = vector.broadcast %cst_0 : f32 to vector<1x10x1x4xf32>
    %c0 = arith.constant 0 : index
    %c0_1 = arith.constant 0 : index
    %c0_2 = arith.constant 0 : index
    %c0_3 = arith.constant 0 : index
    %2 = vector.load %arg13[%c0, %c0_1, %c0_2, %c0_3] : memref<1x10x10x4xf32, #tpu.memory_space<vmem>>, vector<1x1x10x4xf32>
    tpu.vector_store %arg13[%c0, %c0_1, %c0_2, %c0_3], %0 {strides = array<i32>} : memref<1x10x10x4xf32, #tpu.memory_space<vmem>>, vector<1x1x10x4xf32>,
    %c0_4 = arith.constant 0 : index
    %c9 = arith.constant 9 : index
    %c0_5 = arith.constant 0 : index
    %c0_6 = arith.constant 0 : index
    %3 = vector.load %arg13[%c0_4, %c9, %c0_5, %c0_6] : memref<1x10x10x4xf32, #tpu.memory_space<vmem>>, vector<1x1x10x4xf32>
    tpu.vector_store %arg13[%c0_4, %c9, %c0_5, %c0_6], %0 {strides = array<i32>} : memref<1x10x10x4xf32, #tpu.memory_space<vmem>>, vector<1x1x10x4xf32>,
    %c0_7 = arith.constant 0 : index
    %c0_8 = arith.constant 0 : index
    %c0_9 = arith.constant 0 : index
    %c0_10 = arith.constant 0 : index
    %4 = vector.load %arg13[%c0_7, %c0_8, %c0_9, %c0_10] : memref<1x10x10x4xf32, #tpu.memory_space<vmem>>, vector<1x10x1x4xf32>
    tpu.vector_store %arg13[%c0_7, %c0_8, %c0_9, %c0_10], %1 {strides = array<i32>} : memref<1x10x10x4xf32, #tpu.memory_space<vmem>>, vector<1x10x1x4xf32>,
    %c0_11 = arith.constant 0 : index
    %c0_12 = arith.constant 0 : index
    %c9_13 = arith.constant 9 : index
    %c0_14 = arith.constant 0 : index
    %5 = vector.load %arg13[%c0_11, %c0_12, %c9_13, %c0_14] : memref<1x10x10x4xf32, #tpu.memory_space<vmem>>, vector<1x10x1x4xf32>
    tpu.vector_store %arg13[%c0_11, %c0_12, %c9_13, %c0_14], %1 {strides = array<i32>} : memref<1x10x10x4xf32, #tpu.memory_space<vmem>>, vector<1x10x1x4xf32>,
    %cst_15 = arith.constant 0.000000e+00 : f32
    %6 = vector.broadcast %cst_15 : f32 to vector<1x1x10x16xf32>
    %cst_16 = arith.constant 0.000000e+00 : f32
    %7 = vector.broadcast %cst_16 : f32 to vector<1x10x1x16xf32>
    %c0_17 = arith.constant 0 : index
    %c0_18 = arith.constant 0 : index
    %c0_19 = arith.constant 0 : index
    %c0_20 = arith.constant 0 : index
    %8 = vector.load %arg14[%c0_17, %c0_18, %c0_19, %c0_20] : memref<1x10x10x16xf32, #tpu.memory_space<vmem>>, vector<1x1x10x16xf32>
    tpu.vector_store %arg14[%c0_17, %c0_18, %c0_19, %c0_20], %6 {strides = array<i32>} : memref<1x10x10x16xf32, #tpu.memory_space<vmem>>, vector<1x1x10x16xf32>,
    %c0_21 = arith.constant 0 : index
    %c9_22 = arith.constant 9 : index
    %c0_23 = arith.constant 0 : index
    %c0_24 = arith.constant 0 : index
    %9 = vector.load %arg14[%c0_21, %c9_22, %c0_23, %c0_24] : memref<1x10x10x16xf32, #tpu.memory_space<vmem>>, vector<1x1x10x16xf32>
    tpu.vector_store %arg14[%c0_21, %c9_22, %c0_23, %c0_24], %6 {strides = array<i32>} : memref<1x10x10x16xf32, #tpu.memory_space<vmem>>, vector<1x1x10x16xf32>,
    %c0_25 = arith.constant 0 : index
    %c0_26 = arith.constant 0 : index
    %c0_27 = arith.constant 0 : index
    %c0_28 = arith.constant 0 : index
    %10 = vector.load %arg14[%c0_25, %c0_26, %c0_27, %c0_28] : memref<1x10x10x16xf32, #tpu.memory_space<vmem>>, vector<1x10x1x16xf32>
    tpu.vector_store %arg14[%c0_25, %c0_26, %c0_27, %c0_28], %7 {strides = array<i32>} : memref<1x10x10x16xf32, #tpu.memory_space<vmem>>, vector<1x10x1x16xf32>,
    %c0_29 = arith.constant 0 : index
    %c0_30 = arith.constant 0 : index
    %c9_31 = arith.constant 9 : index
    %c0_32 = arith.constant 0 : index
    %11 = vector.load %arg14[%c0_29, %c0_30, %c9_31, %c0_32] : memref<1x10x10x16xf32, #tpu.memory_space<vmem>>, vector<1x10x1x16xf32>
    tpu.vector_store %arg14[%c0_29, %c0_30, %c9_31, %c0_32], %7 {strides = array<i32>} : memref<1x10x10x16xf32, #tpu.memory_space<vmem>>, vector<1x10x1x16xf32>,
    %cst_33 = arith.constant 0.000000e+00 : f32
    %12 = vector.broadcast %cst_33 : f32 to vector<1x1x10x8xf32>
    %cst_34 = arith.constant 0.000000e+00 : f32
    %13 = vector.broadcast %cst_34 : f32 to vector<1x10x1x8xf32>
    %c0_35 = arith.constant 0 : index
    %c0_36 = arith.constant 0 : index
    %c0_37 = arith.constant 0 : index
    %c0_38 = arith.constant 0 : index
    %14 = vector.load %arg15[%c0_35, %c0_36, %c0_37, %c0_38] : memref<1x10x10x8xf32, #tpu.memory_space<vmem>>, vector<1x1x10x8xf32>
    tpu.vector_store %arg15[%c0_35, %c0_36, %c0_37, %c0_38], %12 {strides = array<i32>} : memref<1x10x10x8xf32, #tpu.memory_space<vmem>>, vector<1x1x10x8xf32>,
    %c0_39 = arith.constant 0 : index
    %c9_40 = arith.constant 9 : index
    %c0_41 = arith.constant 0 : index
    %c0_42 = arith.constant 0 : index
    %15 = vector.load %arg15[%c0_39, %c9_40, %c0_41, %c0_42] : memref<1x10x10x8xf32, #tpu.memory_space<vmem>>, vector<1x1x10x8xf32>
    tpu.vector_store %arg15[%c0_39, %c9_40, %c0_41, %c0_42], %12 {strides = array<i32>} : memref<1x10x10x8xf32, #tpu.memory_space<vmem>>, vector<1x1x10x8xf32>,
    %c0_43 = arith.constant 0 : index
    %c0_44 = arith.constant 0 : index
    %c0_45 = arith.constant 0 : index
    %c0_46 = arith.constant 0 : index
    %16 = vector.load %arg15[%c0_43, %c0_44, %c0_45, %c0_46] : memref<1x10x10x8xf32, #tpu.memory_space<vmem>>, vector<1x10x1x8xf32>
    tpu.vector_store %arg15[%c0_43, %c0_44, %c0_45, %c0_46], %13 {strides = array<i32>} : memref<1x10x10x8xf32, #tpu.memory_space<vmem>>, vector<1x10x1x8xf32>,
    %c0_47 = arith.constant 0 : index
    %c0_48 = arith.constant 0 : index
    %c9_49 = arith.constant 9 : index
    %c0_50 = arith.constant 0 : index
    %17 = vector.load %arg15[%c0_47, %c0_48, %c9_49, %c0_50] : memref<1x10x10x8xf32, #tpu.memory_space<vmem>>, vector<1x10x1x8xf32>
    tpu.vector_store %arg15[%c0_47, %c0_48, %c9_49, %c0_50], %13 {strides = array<i32>} : memref<1x10x10x8xf32, #tpu.memory_space<vmem>>, vector<1x10x1x8xf32>,
    %c0_51 = arith.constant 0 : index
    %c0_52 = arith.constant 0 : index
    %c0_53 = arith.constant 0 : index
    %c0_54 = arith.constant 0 : index
    %18 = vector.load %arg1[%c0_51, %c0_52, %c0_53, %c0_54] : memref<1x8x8x4xf32, #tpu.memory_space<vmem>>, vector<1x8x8x4xf32>
    %c0_55 = arith.constant 0 : index
    %c1 = arith.constant 1 : index
    %c1_56 = arith.constant 1 : index
    %c0_57 = arith.constant 0 : index
    %19 = vector.load %arg13[%c0_55, %c1, %c1_56, %c0_57] : memref<1x10x10x4xf32, #tpu.memory_space<vmem>>, vector<1x8x8x4xf32>
    tpu.vector_store %arg13[%c0_55, %c1, %c1_56, %c0_57], %18 {strides = array<i32>} : memref<1x10x10x4xf32, #tpu.memory_space<vmem>>, vector<1x8x8x4xf32>,
    %c0_58 = arith.constant 0 : index
    %c0_59 = arith.constant 0 : index
    %c0_60 = arith.constant 0 : index
    %c0_61 = arith.constant 0 : index
    %20 = vector.load %arg13[%c0_58, %c0_59, %c0_60, %c0_61] : memref<1x10x10x4xf32, #tpu.memory_space<vmem>>, vector<1x8x8x4xf32>
    %21 = vector.shape_cast %20 : vector<1x8x8x4xf32> to vector<64x4xf32>
    %22 = arith.truncf %21 : vector<64x4xf32> to vector<64x4xbf16>
    %c0_62 = arith.constant 0 : index
    %c0_63 = arith.constant 0 : index
    %23 = vector.load %arg16[%c0_62, %c0_63] : memref<64x36xbf16, #tpu.memory_space<vmem>>, vector<64x4xbf16>
    tpu.vector_store %arg16[%c0_62, %c0_63], %22 {strides = array<i32>} : memref<64x36xbf16, #tpu.memory_space<vmem>>, vector<64x4xbf16>,
    %c0_64 = arith.constant 0 : index
    %c0_65 = arith.constant 0 : index
    %c1_66 = arith.constant 1 : index
    %c0_67 = arith.constant 0 : index
    %24 = vector.load %arg13[%c0_64, %c0_65, %c1_66, %c0_67] : memref<1x10x10x4xf32, #tpu.memory_space<vmem>>, vector<1x8x8x4xf32>
    %25 = vector.shape_cast %24 : vector<1x8x8x4xf32> to vector<64x4xf32>
    %26 = arith.truncf %25 : vector<64x4xf32> to vector<64x4xbf16>
    %c0_68 = arith.constant 0 : index
    %c4 = arith.constant 4 : index
    %27 = vector.load %arg16[%c0_68, %c4] : memref<64x36xbf16, #tpu.memory_space<vmem>>, vector<64x4xbf16>
    tpu.vector_store %arg16[%c0_68, %c4], %26 {strides = array<i32>} : memref<64x36xbf16, #tpu.memory_space<vmem>>, vector<64x4xbf16>,
    %c0_69 = arith.constant 0 : index
    %c0_70 = arith.constant 0 : index
    %c2 = arith.constant 2 : index
    %c0_71 = arith.constant 0 : index
    %28 = vector.load %arg13[%c0_69, %c0_70, %c2, %c0_71] : memref<1x10x10x4xf32, #tpu.memory_space<vmem>>, vector<1x8x8x4xf32>
    %29 = vector.shape_cast %28 : vector<1x8x8x4xf32> to vector<64x4xf32>
    %30 = arith.truncf %29 : vector<64x4xf32> to vector<64x4xbf16>
    %c0_72 = arith.constant 0 : index
    %c8 = arith.constant 8 : index
    %31 = vector.load %arg16[%c0_72, %c8] : memref<64x36xbf16, #tpu.memory_space<vmem>>, vector<64x4xbf16>
    tpu.vector_store %arg16[%c0_72, %c8], %30 {strides = array<i32>} : memref<64x36xbf16, #tpu.memory_space<vmem>>, vector<64x4xbf16>,
    %c0_73 = arith.constant 0 : index
    %c1_74 = arith.constant 1 : index
    %c0_75 = arith.constant 0 : index
    %c0_76 = arith.constant 0 : index
    %32 = vector.load %arg13[%c0_73, %c1_74, %c0_75, %c0_76] : memref<1x10x10x4xf32, #tpu.memory_space<vmem>>, vector<1x8x8x4xf32>
    %33 = vector.shape_cast %32 : vector<1x8x8x4xf32> to vector<64x4xf32>
    %34 = arith.truncf %33 : vector<64x4xf32> to vector<64x4xbf16>
    %c0_77 = arith.constant 0 : index
    %c12 = arith.constant 12 : index
    %35 = vector.load %arg16[%c0_77, %c12] : memref<64x36xbf16, #tpu.memory_space<vmem>>, vector<64x4xbf16>
    tpu.vector_store %arg16[%c0_77, %c12], %34 {strides = array<i32>} : memref<64x36xbf16, #tpu.memory_space<vmem>>, vector<64x4xbf16>,
    %c0_78 = arith.constant 0 : index
    %c1_79 = arith.constant 1 : index
    %c1_80 = arith.constant 1 : index
    %c0_81 = arith.constant 0 : index
    %36 = vector.load %arg13[%c0_78, %c1_79, %c1_80, %c0_81] : memref<1x10x10x4xf32, #tpu.memory_space<vmem>>, vector<1x8x8x4xf32>
    %37 = vector.shape_cast %36 : vector<1x8x8x4xf32> to vector<64x4xf32>
    %38 = arith.truncf %37 : vector<64x4xf32> to vector<64x4xbf16>
    %c0_82 = arith.constant 0 : index
    %c16 = arith.constant 16 : index
    %39 = vector.load %arg16[%c0_82, %c16] : memref<64x36xbf16, #tpu.memory_space<vmem>>, vector<64x4xbf16>
    tpu.vector_store %arg16[%c0_82, %c16], %38 {strides = array<i32>} : memref<64x36xbf16, #tpu.memory_space<vmem>>, vector<64x4xbf16>,
    %c0_83 = arith.constant 0 : index
    %c1_84 = arith.constant 1 : index
    %c2_85 = arith.constant 2 : index
    %c0_86 = arith.constant 0 : index
    %40 = vector.load %arg13[%c0_83, %c1_84, %c2_85, %c0_86] : memref<1x10x10x4xf32, #tpu.memory_space<vmem>>, vector<1x8x8x4xf32>
    %41 = vector.shape_cast %40 : vector<1x8x8x4xf32> to vector<64x4xf32>
    %42 = arith.truncf %41 : vector<64x4xf32> to vector<64x4xbf16>
    %c0_87 = arith.constant 0 : index
    %c20 = arith.constant 20 : index
    %43 = vector.load %arg16[%c0_87, %c20] : memref<64x36xbf16, #tpu.memory_space<vmem>>, vector<64x4xbf16>
    tpu.vector_store %arg16[%c0_87, %c20], %42 {strides = array<i32>} : memref<64x36xbf16, #tpu.memory_space<vmem>>, vector<64x4xbf16>,
    %c0_88 = arith.constant 0 : index
    %c2_89 = arith.constant 2 : index
    %c0_90 = arith.constant 0 : index
    %c0_91 = arith.constant 0 : index
    %44 = vector.load %arg13[%c0_88, %c2_89, %c0_90, %c0_91] : memref<1x10x10x4xf32, #tpu.memory_space<vmem>>, vector<1x8x8x4xf32>
    %45 = vector.shape_cast %44 : vector<1x8x8x4xf32> to vector<64x4xf32>
    %46 = arith.truncf %45 : vector<64x4xf32> to vector<64x4xbf16>
    %c0_92 = arith.constant 0 : index
    %c24 = arith.constant 24 : index
    %47 = vector.load %arg16[%c0_92, %c24] : memref<64x36xbf16, #tpu.memory_space<vmem>>, vector<64x4xbf16>
    tpu.vector_store %arg16[%c0_92, %c24], %46 {strides = array<i32>} : memref<64x36xbf16, #tpu.memory_space<vmem>>, vector<64x4xbf16>,
    %c0_93 = arith.constant 0 : index
    %c2_94 = arith.constant 2 : index
    %c1_95 = arith.constant 1 : index
    %c0_96 = arith.constant 0 : index
    %48 = vector.load %arg13[%c0_93, %c2_94, %c1_95, %c0_96] : memref<1x10x10x4xf32, #tpu.memory_space<vmem>>, vector<1x8x8x4xf32>
    %49 = vector.shape_cast %48 : vector<1x8x8x4xf32> to vector<64x4xf32>
    %50 = arith.truncf %49 : vector<64x4xf32> to vector<64x4xbf16>
    %c0_97 = arith.constant 0 : index
    %c28 = arith.constant 28 : index
    %51 = vector.load %arg16[%c0_97, %c28] : memref<64x36xbf16, #tpu.memory_space<vmem>>, vector<64x4xbf16>
    tpu.vector_store %arg16[%c0_97, %c28], %50 {strides = array<i32>} : memref<64x36xbf16, #tpu.memory_space<vmem>>, vector<64x4xbf16>,
    %c0_98 = arith.constant 0 : index
    %c2_99 = arith.constant 2 : index
    %c2_100 = arith.constant 2 : index
    %c0_101 = arith.constant 0 : index
    %52 = vector.load %arg13[%c0_98, %c2_99, %c2_100, %c0_101] : memref<1x10x10x4xf32, #tpu.memory_space<vmem>>, vector<1x8x8x4xf32>
    %53 = vector.shape_cast %52 : vector<1x8x8x4xf32> to vector<64x4xf32>
    %54 = arith.truncf %53 : vector<64x4xf32> to vector<64x4xbf16>
    %c0_102 = arith.constant 0 : index
    %c32 = arith.constant 32 : index
    %55 = vector.load %arg16[%c0_102, %c32] : memref<64x36xbf16, #tpu.memory_space<vmem>>, vector<64x4xbf16>
    tpu.vector_store %arg16[%c0_102, %c32], %54 {strides = array<i32>} : memref<64x36xbf16, #tpu.memory_space<vmem>>, vector<64x4xbf16>,
    %c0_103 = arith.constant 0 : index
    %c0_104 = arith.constant 0 : index
    %56 = vector.load %arg16[%c0_103, %c0_104] : memref<64x36xbf16, #tpu.memory_space<vmem>>, vector<64x36xbf16>
    %c0_105 = arith.constant 0 : index
    %c0_106 = arith.constant 0 : index
    %57 = vector.load %arg2[%c0_105, %c0_106] : memref<36x16xbf16, #tpu.memory_space<vmem>>, vector<36x16xbf16>
    %cst_107 = arith.constant dense<0.000000e+00> : vector<64x16xf32>
    %58 = tpu.matmul %56, %57, %cst_107 {dimension_numbers = #tpu.dot_dimension_numbers<[1], [0], [0], [1], [0, 0, 1, 1], [], []>} : vector<64x36xbf16>, vector<36x16xbf16>, vector<64x16xf32> -> vector<64x16xf32>
    %c0_108 = arith.constant 0 : index
    %c0_109 = arith.constant 0 : index
    %59 = vector.load %arg3[%c0_108, %c0_109] : memref<1x16xf32, #tpu.memory_space<vmem>>, vector<1x16xf32>
    %60 = vector.broadcast %59 : vector<1x16xf32> to vector<64x16xf32>
    %61 = arith.addf %58, %60 : vector<64x16xf32>
    %cst_110 = arith.constant 0.000000e+00 : f32
    %62 = vector.broadcast %cst_110 : f32 to vector<64x16xf32>
    %63 = arith.maximumf %61, %62 : vector<64x16xf32>
    %64 = vector.shape_cast %63 : vector<64x16xf32> to vector<1x8x8x16xf32>
    %c0_111 = arith.constant 0 : index
    %c1_112 = arith.constant 1 : index
    %c1_113 = arith.constant 1 : index
    %c0_114 = arith.constant 0 : index
    %65 = vector.load %arg14[%c0_111, %c1_112, %c1_113, %c0_114] : memref<1x10x10x16xf32, #tpu.memory_space<vmem>>, vector<1x8x8x16xf32>
    tpu.vector_store %arg14[%c0_111, %c1_112, %c1_113, %c0_114], %64 {strides = array<i32>} : memref<1x10x10x16xf32, #tpu.memory_space<vmem>>, vector<1x8x8x16xf32>,
    %c0_115 = arith.constant 0 : index
    %c0_116 = arith.constant 0 : index
    %c0_117 = arith.constant 0 : index
    %c0_118 = arith.constant 0 : index
    %66 = vector.load %arg14[%c0_115, %c0_116, %c0_117, %c0_118] : memref<1x10x10x16xf32, #tpu.memory_space<vmem>>, vector<1x8x8x16xf32>
    %67 = vector.shape_cast %66 : vector<1x8x8x16xf32> to vector<64x16xf32>
    %68 = arith.truncf %67 : vector<64x16xf32> to vector<64x16xbf16>
    %c0_119 = arith.constant 0 : index
    %c0_120 = arith.constant 0 : index
    %69 = vector.load %arg17[%c0_119, %c0_120] : memref<64x144xbf16, #tpu.memory_space<vmem>>, vector<64x16xbf16>
    tpu.vector_store %arg17[%c0_119, %c0_120], %68 {strides = array<i32>} : memref<64x144xbf16, #tpu.memory_space<vmem>>, vector<64x16xbf16>,
    %c0_121 = arith.constant 0 : index
    %c0_122 = arith.constant 0 : index
    %c1_123 = arith.constant 1 : index
    %c0_124 = arith.constant 0 : index
    %70 = vector.load %arg14[%c0_121, %c0_122, %c1_123, %c0_124] : memref<1x10x10x16xf32, #tpu.memory_space<vmem>>, vector<1x8x8x16xf32>
    %71 = vector.shape_cast %70 : vector<1x8x8x16xf32> to vector<64x16xf32>
    %72 = arith.truncf %71 : vector<64x16xf32> to vector<64x16xbf16>
    %c0_125 = arith.constant 0 : index
    %c16_126 = arith.constant 16 : index
    %73 = vector.load %arg17[%c0_125, %c16_126] : memref<64x144xbf16, #tpu.memory_space<vmem>>, vector<64x16xbf16>
    tpu.vector_store %arg17[%c0_125, %c16_126], %72 {strides = array<i32>} : memref<64x144xbf16, #tpu.memory_space<vmem>>, vector<64x16xbf16>,
    %c0_127 = arith.constant 0 : index
    %c0_128 = arith.constant 0 : index
    %c2_129 = arith.constant 2 : index
    %c0_130 = arith.constant 0 : index
    %74 = vector.load %arg14[%c0_127, %c0_128, %c2_129, %c0_130] : memref<1x10x10x16xf32, #tpu.memory_space<vmem>>, vector<1x8x8x16xf32>
    %75 = vector.shape_cast %74 : vector<1x8x8x16xf32> to vector<64x16xf32>
    %76 = arith.truncf %75 : vector<64x16xf32> to vector<64x16xbf16>
    %c0_131 = arith.constant 0 : index
    %c32_132 = arith.constant 32 : index
    %77 = vector.load %arg17[%c0_131, %c32_132] : memref<64x144xbf16, #tpu.memory_space<vmem>>, vector<64x16xbf16>
    tpu.vector_store %arg17[%c0_131, %c32_132], %76 {strides = array<i32>} : memref<64x144xbf16, #tpu.memory_space<vmem>>, vector<64x16xbf16>,
    %c0_133 = arith.constant 0 : index
    %c1_134 = arith.constant 1 : index
    %c0_135 = arith.constant 0 : index
    %c0_136 = arith.constant 0 : index
    %78 = vector.load %arg14[%c0_133, %c1_134, %c0_135, %c0_136] : memref<1x10x10x16xf32, #tpu.memory_space<vmem>>, vector<1x8x8x16xf32>
    %79 = vector.shape_cast %78 : vector<1x8x8x16xf32> to vector<64x16xf32>
    %80 = arith.truncf %79 : vector<64x16xf32> to vector<64x16xbf16>
    %c0_137 = arith.constant 0 : index
    %c48 = arith.constant 48 : index
    %81 = vector.load %arg17[%c0_137, %c48] : memref<64x144xbf16, #tpu.memory_space<vmem>>, vector<64x16xbf16>
    tpu.vector_store %arg17[%c0_137, %c48], %80 {strides = array<i32>} : memref<64x144xbf16, #tpu.memory_space<vmem>>, vector<64x16xbf16>,
    %c0_138 = arith.constant 0 : index
    %c1_139 = arith.constant 1 : index
    %c1_140 = arith.constant 1 : index
    %c0_141 = arith.constant 0 : index
    %82 = vector.load %arg14[%c0_138, %c1_139, %c1_140, %c0_141] : memref<1x10x10x16xf32, #tpu.memory_space<vmem>>, vector<1x8x8x16xf32>
    %83 = vector.shape_cast %82 : vector<1x8x8x16xf32> to vector<64x16xf32>
    %84 = arith.truncf %83 : vector<64x16xf32> to vector<64x16xbf16>
    %c0_142 = arith.constant 0 : index
    %c64 = arith.constant 64 : index
    %85 = vector.load %arg17[%c0_142, %c64] : memref<64x144xbf16, #tpu.memory_space<vmem>>, vector<64x16xbf16>
    tpu.vector_store %arg17[%c0_142, %c64], %84 {strides = array<i32>} : memref<64x144xbf16, #tpu.memory_space<vmem>>, vector<64x16xbf16>,
    %c0_143 = arith.constant 0 : index
    %c1_144 = arith.constant 1 : index
    %c2_145 = arith.constant 2 : index
    %c0_146 = arith.constant 0 : index
    %86 = vector.load %arg14[%c0_143, %c1_144, %c2_145, %c0_146] : memref<1x10x10x16xf32, #tpu.memory_space<vmem>>, vector<1x8x8x16xf32>
    %87 = vector.shape_cast %86 : vector<1x8x8x16xf32> to vector<64x16xf32>
    %88 = arith.truncf %87 : vector<64x16xf32> to vector<64x16xbf16>
    %c0_147 = arith.constant 0 : index
    %c80 = arith.constant 80 : index
    %89 = vector.load %arg17[%c0_147, %c80] : memref<64x144xbf16, #tpu.memory_space<vmem>>, vector<64x16xbf16>
    tpu.vector_store %arg17[%c0_147, %c80], %88 {strides = array<i32>} : memref<64x144xbf16, #tpu.memory_space<vmem>>, vector<64x16xbf16>,
    %c0_148 = arith.constant 0 : index
    %c2_149 = arith.constant 2 : index
    %c0_150 = arith.constant 0 : index
    %c0_151 = arith.constant 0 : index
    %90 = vector.load %arg14[%c0_148, %c2_149, %c0_150, %c0_151] : memref<1x10x10x16xf32, #tpu.memory_space<vmem>>, vector<1x8x8x16xf32>
    %91 = vector.shape_cast %90 : vector<1x8x8x16xf32> to vector<64x16xf32>
    %92 = arith.truncf %91 : vector<64x16xf32> to vector<64x16xbf16>
    %c0_152 = arith.constant 0 : index
    %c96 = arith.constant 96 : index
    %93 = vector.load %arg17[%c0_152, %c96] : memref<64x144xbf16, #tpu.memory_space<vmem>>, vector<64x16xbf16>
    tpu.vector_store %arg17[%c0_152, %c96], %92 {strides = array<i32>} : memref<64x144xbf16, #tpu.memory_space<vmem>>, vector<64x16xbf16>,
    %c0_153 = arith.constant 0 : index
    %c2_154 = arith.constant 2 : index
    %c1_155 = arith.constant 1 : index
    %c0_156 = arith.constant 0 : index
    %94 = vector.load %arg14[%c0_153, %c2_154, %c1_155, %c0_156] : memref<1x10x10x16xf32, #tpu.memory_space<vmem>>, vector<1x8x8x16xf32>
    %95 = vector.shape_cast %94 : vector<1x8x8x16xf32> to vector<64x16xf32>
    %96 = arith.truncf %95 : vector<64x16xf32> to vector<64x16xbf16>
    %c0_157 = arith.constant 0 : index
    %c112 = arith.constant 112 : index
    %97 = vector.load %arg17[%c0_157, %c112] : memref<64x144xbf16, #tpu.memory_space<vmem>>, vector<64x16xbf16>
    tpu.vector_store %arg17[%c0_157, %c112], %96 {strides = array<i32>} : memref<64x144xbf16, #tpu.memory_space<vmem>>, vector<64x16xbf16>,
    %c0_158 = arith.constant 0 : index
    %c2_159 = arith.constant 2 : index
    %c2_160 = arith.constant 2 : index
    %c0_161 = arith.constant 0 : index
    %98 = vector.load %arg14[%c0_158, %c2_159, %c2_160, %c0_161] : memref<1x10x10x16xf32, #tpu.memory_space<vmem>>, vector<1x8x8x16xf32>
    %99 = vector.shape_cast %98 : vector<1x8x8x16xf32> to vector<64x16xf32>
    %100 = arith.truncf %99 : vector<64x16xf32> to vector<64x16xbf16>
    %c0_162 = arith.constant 0 : index
    %c128 = arith.constant 128 : index
    %101 = vector.load %arg17[%c0_162, %c128] : memref<64x144xbf16, #tpu.memory_space<vmem>>, vector<64x16xbf16>
    tpu.vector_store %arg17[%c0_162, %c128], %100 {strides = array<i32>} : memref<64x144xbf16, #tpu.memory_space<vmem>>, vector<64x16xbf16>,
    %c0_163 = arith.constant 0 : index
    %c0_164 = arith.constant 0 : index
    %102 = vector.load %arg17[%c0_163, %c0_164] : memref<64x144xbf16, #tpu.memory_space<vmem>>, vector<64x144xbf16>
    %c0_165 = arith.constant 0 : index
    %c0_166 = arith.constant 0 : index
    %103 = vector.load %arg4[%c0_165, %c0_166] : memref<144x16xbf16, #tpu.memory_space<vmem>>, vector<144x16xbf16>
    %cst_167 = arith.constant dense<0.000000e+00> : vector<64x16xf32>
    %104 = tpu.matmul %102, %103, %cst_167 {dimension_numbers = #tpu.dot_dimension_numbers<[1], [0], [0], [1], [0, 0, 1, 1], [], []>} : vector<64x144xbf16>, vector<144x16xbf16>, vector<64x16xf32> -> vector<64x16xf32>
    %c0_168 = arith.constant 0 : index
    %c0_169 = arith.constant 0 : index
    %105 = vector.load %arg5[%c0_168, %c0_169] : memref<1x16xf32, #tpu.memory_space<vmem>>, vector<1x16xf32>
    %106 = vector.broadcast %105 : vector<1x16xf32> to vector<64x16xf32>
    %107 = arith.addf %104, %106 : vector<64x16xf32>
    %cst_170 = arith.constant 0.000000e+00 : f32
    %108 = vector.broadcast %cst_170 : f32 to vector<64x16xf32>
    %109 = arith.maximumf %107, %108 : vector<64x16xf32>
    %110 = vector.shape_cast %109 : vector<64x16xf32> to vector<1x8x8x16xf32>
    %c0_171 = arith.constant 0 : index
    %c1_172 = arith.constant 1 : index
    %c1_173 = arith.constant 1 : index
    %c0_174 = arith.constant 0 : index
    %111 = vector.load %arg14[%c0_171, %c1_172, %c1_173, %c0_174] : memref<1x10x10x16xf32, #tpu.memory_space<vmem>>, vector<1x8x8x16xf32>
    tpu.vector_store %arg14[%c0_171, %c1_172, %c1_173, %c0_174], %110 {strides = array<i32>} : memref<1x10x10x16xf32, #tpu.memory_space<vmem>>, vector<1x8x8x16xf32>,
    %c0_175 = arith.constant 0 : index
    %c0_176 = arith.constant 0 : index
    %c0_177 = arith.constant 0 : index
    %c0_178 = arith.constant 0 : index
    %112 = vector.load %arg14[%c0_175, %c0_176, %c0_177, %c0_178] : memref<1x10x10x16xf32, #tpu.memory_space<vmem>>, vector<1x8x8x16xf32>
    %113 = vector.shape_cast %112 : vector<1x8x8x16xf32> to vector<64x16xf32>
    %114 = arith.truncf %113 : vector<64x16xf32> to vector<64x16xbf16>
    %c0_179 = arith.constant 0 : index
    %c0_180 = arith.constant 0 : index
    %115 = vector.load %arg17[%c0_179, %c0_180] : memref<64x144xbf16, #tpu.memory_space<vmem>>, vector<64x16xbf16>
    tpu.vector_store %arg17[%c0_179, %c0_180], %114 {strides = array<i32>} : memref<64x144xbf16, #tpu.memory_space<vmem>>, vector<64x16xbf16>,
    %c0_181 = arith.constant 0 : index
    %c0_182 = arith.constant 0 : index
    %c1_183 = arith.constant 1 : index
    %c0_184 = arith.constant 0 : index
    %116 = vector.load %arg14[%c0_181, %c0_182, %c1_183, %c0_184] : memref<1x10x10x16xf32, #tpu.memory_space<vmem>>, vector<1x8x8x16xf32>
    %117 = vector.shape_cast %116 : vector<1x8x8x16xf32> to vector<64x16xf32>
    %118 = arith.truncf %117 : vector<64x16xf32> to vector<64x16xbf16>
    %c0_185 = arith.constant 0 : index
    %c16_186 = arith.constant 16 : index
    %119 = vector.load %arg17[%c0_185, %c16_186] : memref<64x144xbf16, #tpu.memory_space<vmem>>, vector<64x16xbf16>
    tpu.vector_store %arg17[%c0_185, %c16_186], %118 {strides = array<i32>} : memref<64x144xbf16, #tpu.memory_space<vmem>>, vector<64x16xbf16>,
    %c0_187 = arith.constant 0 : index
    %c0_188 = arith.constant 0 : index
    %c2_189 = arith.constant 2 : index
    %c0_190 = arith.constant 0 : index
    %120 = vector.load %arg14[%c0_187, %c0_188, %c2_189, %c0_190] : memref<1x10x10x16xf32, #tpu.memory_space<vmem>>, vector<1x8x8x16xf32>
    %121 = vector.shape_cast %120 : vector<1x8x8x16xf32> to vector<64x16xf32>
    %122 = arith.truncf %121 : vector<64x16xf32> to vector<64x16xbf16>
    %c0_191 = arith.constant 0 : index
    %c32_192 = arith.constant 32 : index
    %123 = vector.load %arg17[%c0_191, %c32_192] : memref<64x144xbf16, #tpu.memory_space<vmem>>, vector<64x16xbf16>
    tpu.vector_store %arg17[%c0_191, %c32_192], %122 {strides = array<i32>} : memref<64x144xbf16, #tpu.memory_space<vmem>>, vector<64x16xbf16>,
    %c0_193 = arith.constant 0 : index
    %c1_194 = arith.constant 1 : index
    %c0_195 = arith.constant 0 : index
    %c0_196 = arith.constant 0 : index
    %124 = vector.load %arg14[%c0_193, %c1_194, %c0_195, %c0_196] : memref<1x10x10x16xf32, #tpu.memory_space<vmem>>, vector<1x8x8x16xf32>
    %125 = vector.shape_cast %124 : vector<1x8x8x16xf32> to vector<64x16xf32>
    %126 = arith.truncf %125 : vector<64x16xf32> to vector<64x16xbf16>
    %c0_197 = arith.constant 0 : index
    %c48_198 = arith.constant 48 : index
    %127 = vector.load %arg17[%c0_197, %c48_198] : memref<64x144xbf16, #tpu.memory_space<vmem>>, vector<64x16xbf16>
    tpu.vector_store %arg17[%c0_197, %c48_198], %126 {strides = array<i32>} : memref<64x144xbf16, #tpu.memory_space<vmem>>, vector<64x16xbf16>,
    %c0_199 = arith.constant 0 : index
    %c1_200 = arith.constant 1 : index
    %c1_201 = arith.constant 1 : index
    %c0_202 = arith.constant 0 : index
    %128 = vector.load %arg14[%c0_199, %c1_200, %c1_201, %c0_202] : memref<1x10x10x16xf32, #tpu.memory_space<vmem>>, vector<1x8x8x16xf32>
    %129 = vector.shape_cast %128 : vector<1x8x8x16xf32> to vector<64x16xf32>
    %130 = arith.truncf %129 : vector<64x16xf32> to vector<64x16xbf16>
    %c0_203 = arith.constant 0 : index
    %c64_204 = arith.constant 64 : index
    %131 = vector.load %arg17[%c0_203, %c64_204] : memref<64x144xbf16, #tpu.memory_space<vmem>>, vector<64x16xbf16>
    tpu.vector_store %arg17[%c0_203, %c64_204], %130 {strides = array<i32>} : memref<64x144xbf16, #tpu.memory_space<vmem>>, vector<64x16xbf16>,
    %c0_205 = arith.constant 0 : index
    %c1_206 = arith.constant 1 : index
    %c2_207 = arith.constant 2 : index
    %c0_208 = arith.constant 0 : index
    %132 = vector.load %arg14[%c0_205, %c1_206, %c2_207, %c0_208] : memref<1x10x10x16xf32, #tpu.memory_space<vmem>>, vector<1x8x8x16xf32>
    %133 = vector.shape_cast %132 : vector<1x8x8x16xf32> to vector<64x16xf32>
    %134 = arith.truncf %133 : vector<64x16xf32> to vector<64x16xbf16>
    %c0_209 = arith.constant 0 : index
    %c80_210 = arith.constant 80 : index
    %135 = vector.load %arg17[%c0_209, %c80_210] : memref<64x144xbf16, #tpu.memory_space<vmem>>, vector<64x16xbf16>
    tpu.vector_store %arg17[%c0_209, %c80_210], %134 {strides = array<i32>} : memref<64x144xbf16, #tpu.memory_space<vmem>>, vector<64x16xbf16>,
    %c0_211 = arith.constant 0 : index
    %c2_212 = arith.constant 2 : index
    %c0_213 = arith.constant 0 : index
    %c0_214 = arith.constant 0 : index
    %136 = vector.load %arg14[%c0_211, %c2_212, %c0_213, %c0_214] : memref<1x10x10x16xf32, #tpu.memory_space<vmem>>, vector<1x8x8x16xf32>
    %137 = vector.shape_cast %136 : vector<1x8x8x16xf32> to vector<64x16xf32>
    %138 = arith.truncf %137 : vector<64x16xf32> to vector<64x16xbf16>
    %c0_215 = arith.constant 0 : index
    %c96_216 = arith.constant 96 : index
    %139 = vector.load %arg17[%c0_215, %c96_216] : memref<64x144xbf16, #tpu.memory_space<vmem>>, vector<64x16xbf16>
    tpu.vector_store %arg17[%c0_215, %c96_216], %138 {strides = array<i32>} : memref<64x144xbf16, #tpu.memory_space<vmem>>, vector<64x16xbf16>,
    %c0_217 = arith.constant 0 : index
    %c2_218 = arith.constant 2 : index
    %c1_219 = arith.constant 1 : index
    %c0_220 = arith.constant 0 : index
    %140 = vector.load %arg14[%c0_217, %c2_218, %c1_219, %c0_220] : memref<1x10x10x16xf32, #tpu.memory_space<vmem>>, vector<1x8x8x16xf32>
    %141 = vector.shape_cast %140 : vector<1x8x8x16xf32> to vector<64x16xf32>
    %142 = arith.truncf %141 : vector<64x16xf32> to vector<64x16xbf16>
    %c0_221 = arith.constant 0 : index
    %c112_222 = arith.constant 112 : index
    %143 = vector.load %arg17[%c0_221, %c112_222] : memref<64x144xbf16, #tpu.memory_space<vmem>>, vector<64x16xbf16>
    tpu.vector_store %arg17[%c0_221, %c112_222], %142 {strides = array<i32>} : memref<64x144xbf16, #tpu.memory_space<vmem>>, vector<64x16xbf16>,
    %c0_223 = arith.constant 0 : index
    %c2_224 = arith.constant 2 : index
    %c2_225 = arith.constant 2 : index
    %c0_226 = arith.constant 0 : index
    %144 = vector.load %arg14[%c0_223, %c2_224, %c2_225, %c0_226] : memref<1x10x10x16xf32, #tpu.memory_space<vmem>>, vector<1x8x8x16xf32>
    %145 = vector.shape_cast %144 : vector<1x8x8x16xf32> to vector<64x16xf32>
    %146 = arith.truncf %145 : vector<64x16xf32> to vector<64x16xbf16>
    %c0_227 = arith.constant 0 : index
    %c128_228 = arith.constant 128 : index
    %147 = vector.load %arg17[%c0_227, %c128_228] : memref<64x144xbf16, #tpu.memory_space<vmem>>, vector<64x16xbf16>
    tpu.vector_store %arg17[%c0_227, %c128_228], %146 {strides = array<i32>} : memref<64x144xbf16, #tpu.memory_space<vmem>>, vector<64x16xbf16>,
    %c0_229 = arith.constant 0 : index
    %c0_230 = arith.constant 0 : index
    %148 = vector.load %arg17[%c0_229, %c0_230] : memref<64x144xbf16, #tpu.memory_space<vmem>>, vector<64x144xbf16>
    %c0_231 = arith.constant 0 : index
    %c0_232 = arith.constant 0 : index
    %149 = vector.load %arg6[%c0_231, %c0_232] : memref<144x16xbf16, #tpu.memory_space<vmem>>, vector<144x16xbf16>
    %cst_233 = arith.constant dense<0.000000e+00> : vector<64x16xf32>
    %150 = tpu.matmul %148, %149, %cst_233 {dimension_numbers = #tpu.dot_dimension_numbers<[1], [0], [0], [1], [0, 0, 1, 1], [], []>} : vector<64x144xbf16>, vector<144x16xbf16>, vector<64x16xf32> -> vector<64x16xf32>
    %c0_234 = arith.constant 0 : index
    %c0_235 = arith.constant 0 : index
    %151 = vector.load %arg7[%c0_234, %c0_235] : memref<1x16xf32, #tpu.memory_space<vmem>>, vector<1x16xf32>
    %152 = vector.broadcast %151 : vector<1x16xf32> to vector<64x16xf32>
    %153 = arith.addf %150, %152 : vector<64x16xf32>
    %154 = vector.shape_cast %153 : vector<64x16xf32> to vector<1x64x16xf32>
    %cst_236 = arith.constant dense<0.000000e+00> : vector<1x16xf32>
    %155 = vector.multi_reduction <add>, %154, %cst_236 [1] : vector<1x64x16xf32> to vector<1x16xf32>
    %cst_237 = arith.constant 6.400000e+01 : f32
    %156 = vector.broadcast %cst_237 : f32 to vector<1x16xf32>
    %157 = arith.divf %155, %156 : vector<1x16xf32>
    %cst_238 = arith.constant dense<0xFF800000> : vector<1x16xf32>
    %158 = vector.multi_reduction <maximumf>, %154, %cst_238 [1] : vector<1x64x16xf32> to vector<1x16xf32>
    %159 = tpu.concatenate %157, %158 in 0 : vector<1x16xf32>, vector<1x16xf32> -> vector<2x16xf32>
    %c0_239 = arith.constant 0 : index
    %c0_240 = arith.constant 0 : index
    %160 = vector.load %arg8[%c0_239, %c0_240] : memref<16x1xf32, #tpu.memory_space<vmem>>, vector<16x1xf32>
    %cst_241 = arith.constant dense<0.000000e+00> : vector<2x1xf32>
    %161 = tpu.matmul %159, %160, %cst_241 {dimension_numbers = #tpu.dot_dimension_numbers<[1], [0], [0], [1], [0, 0, 1, 1], [], []>} : vector<2x16xf32>, vector<16x1xf32>, vector<2x1xf32> -> vector<2x1xf32>
    %cst_242 = arith.constant 0.000000e+00 : f32
    %162 = vector.broadcast %cst_242 : f32 to vector<2x1xf32>
    %163 = arith.maximumf %161, %162 : vector<2x1xf32>
    %c0_243 = arith.constant 0 : index
    %c0_244 = arith.constant 0 : index
    %164 = vector.load %arg9[%c0_243, %c0_244] : memref<1x16xf32, #tpu.memory_space<vmem>>, vector<1x16xf32>
    %cst_245 = arith.constant dense<0.000000e+00> : vector<2x16xf32>
    %165 = tpu.matmul %163, %164, %cst_245 {dimension_numbers = #tpu.dot_dimension_numbers<[1], [0], [0], [1], [0, 0, 1, 1], [], []>} : vector<2x1xf32>, vector<1x16xf32>, vector<2x16xf32> -> vector<2x16xf32>
    %166 = vector.extract_strided_slice %165 {offsets = [0, 0], sizes = [1, 16], strides = [1, 1]} : vector<2x16xf32> to vector<1x16xf32>
    %167 = vector.extract_strided_slice %165 {offsets = [1, 0], sizes = [1, 16], strides = [1, 1]} : vector<2x16xf32> to vector<1x16xf32>
    %168 = arith.addf %166, %167 : vector<1x16xf32>
    %169 = arith.negf %168 : vector<1x16xf32>
    %170 = math.exp %169 : vector<1x16xf32>
    %cst_246 = arith.constant 1.000000e+00 : f32
    %171 = vector.broadcast %cst_246 : f32 to vector<1x16xf32>
    %172 = arith.addf %171, %170 : vector<1x16xf32>
    %173 = arith.divf %171, %172 : vector<1x16xf32>
    %174 = vector.shape_cast %173 : vector<1x16xf32> to vector<1x1x16xf32>
    %175 = vector.broadcast %174 : vector<1x1x16xf32> to vector<1x64x16xf32>
    %176 = arith.mulf %154, %175 : vector<1x64x16xf32>
    %177 = vector.shape_cast %176 : vector<1x64x16xf32> to vector<64x16xf32>
    %cst_247 = arith.constant dense<0.000000e+00> : vector<64xf32>
    %178 = vector.multi_reduction <add>, %177, %cst_247 [1] : vector<64x16xf32> to vector<64xf32>
    %179 = vector.shape_cast %178 : vector<64xf32> to vector<64x1xf32>
    %cst_248 = arith.constant 1.600000e+01 : f32
    %180 = vector.broadcast %cst_248 : f32 to vector<64x1xf32>
    %181 = arith.divf %179, %180 : vector<64x1xf32>
    %182 = vector.broadcast %181 : vector<64x1xf32> to vector<64x16xf32>
    %183 = arith.subf %177, %182 : vector<64x16xf32>
    %184 = vector.shape_cast %183 : vector<64x16xf32> to vector<1x8x8x16xf32>
    %c0_249 = arith.constant 0 : index
    %c1_250 = arith.constant 1 : index
    %c1_251 = arith.constant 1 : index
    %c0_252 = arith.constant 0 : index
    %185 = vector.load %arg14[%c0_249, %c1_250, %c1_251, %c0_252] : memref<1x10x10x16xf32, #tpu.memory_space<vmem>>, vector<1x8x8x16xf32>
    tpu.vector_store %arg14[%c0_249, %c1_250, %c1_251, %c0_252], %184 {strides = array<i32>} : memref<1x10x10x16xf32, #tpu.memory_space<vmem>>, vector<1x8x8x16xf32>,
    %c0_253 = arith.constant 0 : index
    %c0_254 = arith.constant 0 : index
    %c0_255 = arith.constant 0 : index
    %c0_256 = arith.constant 0 : index
    %186 = vector.load %arg14[%c0_253, %c0_254, %c0_255, %c0_256] : memref<1x10x10x16xf32, #tpu.memory_space<vmem>>, vector<1x8x8x16xf32>
    %187 = vector.shape_cast %186 : vector<1x8x8x16xf32> to vector<64x16xf32>
    %188 = arith.truncf %187 : vector<64x16xf32> to vector<64x16xbf16>
    %c0_257 = arith.constant 0 : index
    %c0_258 = arith.constant 0 : index
    %189 = vector.load %arg17[%c0_257, %c0_258] : memref<64x144xbf16, #tpu.memory_space<vmem>>, vector<64x16xbf16>
    tpu.vector_store %arg17[%c0_257, %c0_258], %188 {strides = array<i32>} : memref<64x144xbf16, #tpu.memory_space<vmem>>, vector<64x16xbf16>,
    %c0_259 = arith.constant 0 : index
    %c0_260 = arith.constant 0 : index
    %c1_261 = arith.constant 1 : index
    %c0_262 = arith.constant 0 : index
    %190 = vector.load %arg14[%c0_259, %c0_260, %c1_261, %c0_262] : memref<1x10x10x16xf32, #tpu.memory_space<vmem>>, vector<1x8x8x16xf32>
    %191 = vector.shape_cast %190 : vector<1x8x8x16xf32> to vector<64x16xf32>
    %192 = arith.truncf %191 : vector<64x16xf32> to vector<64x16xbf16>
    %c0_263 = arith.constant 0 : index
    %c16_264 = arith.constant 16 : index
    %193 = vector.load %arg17[%c0_263, %c16_264] : memref<64x144xbf16, #tpu.memory_space<vmem>>, vector<64x16xbf16>
    tpu.vector_store %arg17[%c0_263, %c16_264], %192 {strides = array<i32>} : memref<64x144xbf16, #tpu.memory_space<vmem>>, vector<64x16xbf16>,
    %c0_265 = arith.constant 0 : index
    %c0_266 = arith.constant 0 : index
    %c2_267 = arith.constant 2 : index
    %c0_268 = arith.constant 0 : index
    %194 = vector.load %arg14[%c0_265, %c0_266, %c2_267, %c0_268] : memref<1x10x10x16xf32, #tpu.memory_space<vmem>>, vector<1x8x8x16xf32>
    %195 = vector.shape_cast %194 : vector<1x8x8x16xf32> to vector<64x16xf32>
    %196 = arith.truncf %195 : vector<64x16xf32> to vector<64x16xbf16>
    %c0_269 = arith.constant 0 : index
    %c32_270 = arith.constant 32 : index
    %197 = vector.load %arg17[%c0_269, %c32_270] : memref<64x144xbf16, #tpu.memory_space<vmem>>, vector<64x16xbf16>
    tpu.vector_store %arg17[%c0_269, %c32_270], %196 {strides = array<i32>} : memref<64x144xbf16, #tpu.memory_space<vmem>>, vector<64x16xbf16>,
    %c0_271 = arith.constant 0 : index
    %c1_272 = arith.constant 1 : index
    %c0_273 = arith.constant 0 : index
    %c0_274 = arith.constant 0 : index
    %198 = vector.load %arg14[%c0_271, %c1_272, %c0_273, %c0_274] : memref<1x10x10x16xf32, #tpu.memory_space<vmem>>, vector<1x8x8x16xf32>
    %199 = vector.shape_cast %198 : vector<1x8x8x16xf32> to vector<64x16xf32>
    %200 = arith.truncf %199 : vector<64x16xf32> to vector<64x16xbf16>
    %c0_275 = arith.constant 0 : index
    %c48_276 = arith.constant 48 : index
    %201 = vector.load %arg17[%c0_275, %c48_276] : memref<64x144xbf16, #tpu.memory_space<vmem>>, vector<64x16xbf16>
    tpu.vector_store %arg17[%c0_275, %c48_276], %200 {strides = array<i32>} : memref<64x144xbf16, #tpu.memory_space<vmem>>, vector<64x16xbf16>,
    %c0_277 = arith.constant 0 : index
    %c1_278 = arith.constant 1 : index
    %c1_279 = arith.constant 1 : index
    %c0_280 = arith.constant 0 : index
    %202 = vector.load %arg14[%c0_277, %c1_278, %c1_279, %c0_280] : memref<1x10x10x16xf32, #tpu.memory_space<vmem>>, vector<1x8x8x16xf32>
    %203 = vector.shape_cast %202 : vector<1x8x8x16xf32> to vector<64x16xf32>
    %204 = arith.truncf %203 : vector<64x16xf32> to vector<64x16xbf16>
    %c0_281 = arith.constant 0 : index
    %c64_282 = arith.constant 64 : index
    %205 = vector.load %arg17[%c0_281, %c64_282] : memref<64x144xbf16, #tpu.memory_space<vmem>>, vector<64x16xbf16>
    tpu.vector_store %arg17[%c0_281, %c64_282], %204 {strides = array<i32>} : memref<64x144xbf16, #tpu.memory_space<vmem>>, vector<64x16xbf16>,
    %c0_283 = arith.constant 0 : index
    %c1_284 = arith.constant 1 : index
    %c2_285 = arith.constant 2 : index
    %c0_286 = arith.constant 0 : index
    %206 = vector.load %arg14[%c0_283, %c1_284, %c2_285, %c0_286] : memref<1x10x10x16xf32, #tpu.memory_space<vmem>>, vector<1x8x8x16xf32>
    %207 = vector.shape_cast %206 : vector<1x8x8x16xf32> to vector<64x16xf32>
    %208 = arith.truncf %207 : vector<64x16xf32> to vector<64x16xbf16>
    %c0_287 = arith.constant 0 : index
    %c80_288 = arith.constant 80 : index
    %209 = vector.load %arg17[%c0_287, %c80_288] : memref<64x144xbf16, #tpu.memory_space<vmem>>, vector<64x16xbf16>
    tpu.vector_store %arg17[%c0_287, %c80_288], %208 {strides = array<i32>} : memref<64x144xbf16, #tpu.memory_space<vmem>>, vector<64x16xbf16>,
    %c0_289 = arith.constant 0 : index
    %c2_290 = arith.constant 2 : index
    %c0_291 = arith.constant 0 : index
    %c0_292 = arith.constant 0 : index
    %210 = vector.load %arg14[%c0_289, %c2_290, %c0_291, %c0_292] : memref<1x10x10x16xf32, #tpu.memory_space<vmem>>, vector<1x8x8x16xf32>
    %211 = vector.shape_cast %210 : vector<1x8x8x16xf32> to vector<64x16xf32>
    %212 = arith.truncf %211 : vector<64x16xf32> to vector<64x16xbf16>
    %c0_293 = arith.constant 0 : index
    %c96_294 = arith.constant 96 : index
    %213 = vector.load %arg17[%c0_293, %c96_294] : memref<64x144xbf16, #tpu.memory_space<vmem>>, vector<64x16xbf16>
    tpu.vector_store %arg17[%c0_293, %c96_294], %212 {strides = array<i32>} : memref<64x144xbf16, #tpu.memory_space<vmem>>, vector<64x16xbf16>,
    %c0_295 = arith.constant 0 : index
    %c2_296 = arith.constant 2 : index
    %c1_297 = arith.constant 1 : index
    %c0_298 = arith.constant 0 : index
    %214 = vector.load %arg14[%c0_295, %c2_296, %c1_297, %c0_298] : memref<1x10x10x16xf32, #tpu.memory_space<vmem>>, vector<1x8x8x16xf32>
    %215 = vector.shape_cast %214 : vector<1x8x8x16xf32> to vector<64x16xf32>
    %216 = arith.truncf %215 : vector<64x16xf32> to vector<64x16xbf16>
    %c0_299 = arith.constant 0 : index
    %c112_300 = arith.constant 112 : index
    %217 = vector.load %arg17[%c0_299, %c112_300] : memref<64x144xbf16, #tpu.memory_space<vmem>>, vector<64x16xbf16>
    tpu.vector_store %arg17[%c0_299, %c112_300], %216 {strides = array<i32>} : memref<64x144xbf16, #tpu.memory_space<vmem>>, vector<64x16xbf16>,
    %c0_301 = arith.constant 0 : index
    %c2_302 = arith.constant 2 : index
    %c2_303 = arith.constant 2 : index
    %c0_304 = arith.constant 0 : index
    %218 = vector.load %arg14[%c0_301, %c2_302, %c2_303, %c0_304] : memref<1x10x10x16xf32, #tpu.memory_space<vmem>>, vector<1x8x8x16xf32>
    %219 = vector.shape_cast %218 : vector<1x8x8x16xf32> to vector<64x16xf32>
    %220 = arith.truncf %219 : vector<64x16xf32> to vector<64x16xbf16>
    %c0_305 = arith.constant 0 : index
    %c128_306 = arith.constant 128 : index
    %221 = vector.load %arg17[%c0_305, %c128_306] : memref<64x144xbf16, #tpu.memory_space<vmem>>, vector<64x16xbf16>
    tpu.vector_store %arg17[%c0_305, %c128_306], %220 {strides = array<i32>} : memref<64x144xbf16, #tpu.memory_space<vmem>>, vector<64x16xbf16>,
    %c0_307 = arith.constant 0 : index
    %c0_308 = arith.constant 0 : index
    %222 = vector.load %arg17[%c0_307, %c0_308] : memref<64x144xbf16, #tpu.memory_space<vmem>>, vector<64x144xbf16>
    %c0_309 = arith.constant 0 : index
    %c0_310 = arith.constant 0 : index
    %223 = vector.load %arg10[%c0_309, %c0_310] : memref<144x8xbf16, #tpu.memory_space<vmem>>, vector<144x8xbf16>
    %cst_311 = arith.constant dense<0.000000e+00> : vector<64x8xf32>
    %224 = tpu.matmul %222, %223, %cst_311 {dimension_numbers = #tpu.dot_dimension_numbers<[1], [0], [0], [1], [0, 0, 1, 1], [], []>} : vector<64x144xbf16>, vector<144x8xbf16>, vector<64x8xf32> -> vector<64x8xf32>
    %225 = tpu.iota {dimensions = array<i32: 1>} : vector<64x8xi32>
    %c1_i32 = arith.constant 1 : i32
    %226 = vector.broadcast %c1_i32 : i32 to vector<64x8xi32>
    %227 = arith.cmpi eq, %225, %226 : vector<64x8xi32>
    %228 = vector.shape_cast %181 : vector<64x1xf32> to vector<64x1xf32>
    %229 = vector.broadcast %228 : vector<64x1xf32> to vector<64x8xf32>
    %230 = arith.select %227, %229, %224 : vector<64x8xi1>, vector<64x8xf32>
    %231 = vector.shape_cast %230 : vector<64x8xf32> to vector<1x8x8x8xf32>
    %c0_312 = arith.constant 0 : index
    %c1_313 = arith.constant 1 : index
    %c1_314 = arith.constant 1 : index
    %c0_315 = arith.constant 0 : index
    %232 = vector.load %arg15[%c0_312, %c1_313, %c1_314, %c0_315] : memref<1x10x10x8xf32, #tpu.memory_space<vmem>>, vector<1x8x8x8xf32>
    tpu.vector_store %arg15[%c0_312, %c1_313, %c1_314, %c0_315], %231 {strides = array<i32>} : memref<1x10x10x8xf32, #tpu.memory_space<vmem>>, vector<1x8x8x8xf32>,
    %c0_316 = arith.constant 0 : index
    %c0_317 = arith.constant 0 : index
    %c0_318 = arith.constant 0 : index
    %c0_319 = arith.constant 0 : index
    %233 = vector.load %arg15[%c0_316, %c0_317, %c0_318, %c0_319] : memref<1x10x10x8xf32, #tpu.memory_space<vmem>>, vector<1x8x8x8xf32>
    %234 = vector.shape_cast %233 : vector<1x8x8x8xf32> to vector<64x8xf32>
    %c0_320 = arith.constant 0 : index
    %c0_321 = arith.constant 0 : index
    %235 = vector.load %arg18[%c0_320, %c0_321] : memref<64x72xf32, #tpu.memory_space<vmem>>, vector<64x8xf32>
    tpu.vector_store %arg18[%c0_320, %c0_321], %234 {strides = array<i32>} : memref<64x72xf32, #tpu.memory_space<vmem>>, vector<64x8xf32>,
    %c0_322 = arith.constant 0 : index
    %c0_323 = arith.constant 0 : index
    %c1_324 = arith.constant 1 : index
    %c0_325 = arith.constant 0 : index
    %236 = vector.load %arg15[%c0_322, %c0_323, %c1_324, %c0_325] : memref<1x10x10x8xf32, #tpu.memory_space<vmem>>, vector<1x8x8x8xf32>
    %237 = vector.shape_cast %236 : vector<1x8x8x8xf32> to vector<64x8xf32>
    %c0_326 = arith.constant 0 : index
    %c8_327 = arith.constant 8 : index
    %238 = vector.load %arg18[%c0_326, %c8_327] : memref<64x72xf32, #tpu.memory_space<vmem>>, vector<64x8xf32>
    tpu.vector_store %arg18[%c0_326, %c8_327], %237 {strides = array<i32>} : memref<64x72xf32, #tpu.memory_space<vmem>>, vector<64x8xf32>,
    %c0_328 = arith.constant 0 : index
    %c0_329 = arith.constant 0 : index
    %c2_330 = arith.constant 2 : index
    %c0_331 = arith.constant 0 : index
    %239 = vector.load %arg15[%c0_328, %c0_329, %c2_330, %c0_331] : memref<1x10x10x8xf32, #tpu.memory_space<vmem>>, vector<1x8x8x8xf32>
    %240 = vector.shape_cast %239 : vector<1x8x8x8xf32> to vector<64x8xf32>
    %c0_332 = arith.constant 0 : index
    %c16_333 = arith.constant 16 : index
    %241 = vector.load %arg18[%c0_332, %c16_333] : memref<64x72xf32, #tpu.memory_space<vmem>>, vector<64x8xf32>
    tpu.vector_store %arg18[%c0_332, %c16_333], %240 {strides = array<i32>} : memref<64x72xf32, #tpu.memory_space<vmem>>, vector<64x8xf32>,
    %c0_334 = arith.constant 0 : index
    %c1_335 = arith.constant 1 : index
    %c0_336 = arith.constant 0 : index
    %c0_337 = arith.constant 0 : index
    %242 = vector.load %arg15[%c0_334, %c1_335, %c0_336, %c0_337] : memref<1x10x10x8xf32, #tpu.memory_space<vmem>>, vector<1x8x8x8xf32>
    %243 = vector.shape_cast %242 : vector<1x8x8x8xf32> to vector<64x8xf32>
    %c0_338 = arith.constant 0 : index
    %c24_339 = arith.constant 24 : index
    %244 = vector.load %arg18[%c0_338, %c24_339] : memref<64x72xf32, #tpu.memory_space<vmem>>, vector<64x8xf32>
    tpu.vector_store %arg18[%c0_338, %c24_339], %243 {strides = array<i32>} : memref<64x72xf32, #tpu.memory_space<vmem>>, vector<64x8xf32>,
    %c0_340 = arith.constant 0 : index
    %c1_341 = arith.constant 1 : index
    %c1_342 = arith.constant 1 : index
    %c0_343 = arith.constant 0 : index
    %245 = vector.load %arg15[%c0_340, %c1_341, %c1_342, %c0_343] : memref<1x10x10x8xf32, #tpu.memory_space<vmem>>, vector<1x8x8x8xf32>
    %246 = vector.shape_cast %245 : vector<1x8x8x8xf32> to vector<64x8xf32>
    %c0_344 = arith.constant 0 : index
    %c32_345 = arith.constant 32 : index
    %247 = vector.load %arg18[%c0_344, %c32_345] : memref<64x72xf32, #tpu.memory_space<vmem>>, vector<64x8xf32>
    tpu.vector_store %arg18[%c0_344, %c32_345], %246 {strides = array<i32>} : memref<64x72xf32, #tpu.memory_space<vmem>>, vector<64x8xf32>,
    %c0_346 = arith.constant 0 : index
    %c1_347 = arith.constant 1 : index
    %c2_348 = arith.constant 2 : index
    %c0_349 = arith.constant 0 : index
    %248 = vector.load %arg15[%c0_346, %c1_347, %c2_348, %c0_349] : memref<1x10x10x8xf32, #tpu.memory_space<vmem>>, vector<1x8x8x8xf32>
    %249 = vector.shape_cast %248 : vector<1x8x8x8xf32> to vector<64x8xf32>
    %c0_350 = arith.constant 0 : index
    %c40 = arith.constant 40 : index
    %250 = vector.load %arg18[%c0_350, %c40] : memref<64x72xf32, #tpu.memory_space<vmem>>, vector<64x8xf32>
    tpu.vector_store %arg18[%c0_350, %c40], %249 {strides = array<i32>} : memref<64x72xf32, #tpu.memory_space<vmem>>, vector<64x8xf32>,
    %c0_351 = arith.constant 0 : index
    %c2_352 = arith.constant 2 : index
    %c0_353 = arith.constant 0 : index
    %c0_354 = arith.constant 0 : index
    %251 = vector.load %arg15[%c0_351, %c2_352, %c0_353, %c0_354] : memref<1x10x10x8xf32, #tpu.memory_space<vmem>>, vector<1x8x8x8xf32>
    %252 = vector.shape_cast %251 : vector<1x8x8x8xf32> to vector<64x8xf32>
    %c0_355 = arith.constant 0 : index
    %c48_356 = arith.constant 48 : index
    %253 = vector.load %arg18[%c0_355, %c48_356] : memref<64x72xf32, #tpu.memory_space<vmem>>, vector<64x8xf32>
    tpu.vector_store %arg18[%c0_355, %c48_356], %252 {strides = array<i32>} : memref<64x72xf32, #tpu.memory_space<vmem>>, vector<64x8xf32>,
    %c0_357 = arith.constant 0 : index
    %c2_358 = arith.constant 2 : index
    %c1_359 = arith.constant 1 : index
    %c0_360 = arith.constant 0 : index
    %254 = vector.load %arg15[%c0_357, %c2_358, %c1_359, %c0_360] : memref<1x10x10x8xf32, #tpu.memory_space<vmem>>, vector<1x8x8x8xf32>
    %255 = vector.shape_cast %254 : vector<1x8x8x8xf32> to vector<64x8xf32>
    %c0_361 = arith.constant 0 : index
    %c56 = arith.constant 56 : index
    %256 = vector.load %arg18[%c0_361, %c56] : memref<64x72xf32, #tpu.memory_space<vmem>>, vector<64x8xf32>
    tpu.vector_store %arg18[%c0_361, %c56], %255 {strides = array<i32>} : memref<64x72xf32, #tpu.memory_space<vmem>>, vector<64x8xf32>,
    %c0_362 = arith.constant 0 : index
    %c2_363 = arith.constant 2 : index
    %c2_364 = arith.constant 2 : index
    %c0_365 = arith.constant 0 : index
    %257 = vector.load %arg15[%c0_362, %c2_363, %c2_364, %c0_365] : memref<1x10x10x8xf32, #tpu.memory_space<vmem>>, vector<1x8x8x8xf32>
    %258 = vector.shape_cast %257 : vector<1x8x8x8xf32> to vector<64x8xf32>
    %c0_366 = arith.constant 0 : index
    %c64_367 = arith.constant 64 : index
    %259 = vector.load %arg18[%c0_366, %c64_367] : memref<64x72xf32, #tpu.memory_space<vmem>>, vector<64x8xf32>
    tpu.vector_store %arg18[%c0_366, %c64_367], %258 {strides = array<i32>} : memref<64x72xf32, #tpu.memory_space<vmem>>, vector<64x8xf32>,
    %c0_368 = arith.constant 0 : index
    %c0_369 = arith.constant 0 : index
    %260 = vector.load %arg18[%c0_368, %c0_369] : memref<64x72xf32, #tpu.memory_space<vmem>>, vector<64x72xf32>
    %c0_370 = arith.constant 0 : index
    %c0_371 = arith.constant 0 : index
    %261 = vector.load %arg11[%c0_370, %c0_371] : memref<1x72xf32, #tpu.memory_space<vmem>>, vector<1x72xf32>
    %262 = vector.broadcast %261 : vector<1x72xf32> to vector<64x72xf32>
    %263 = arith.mulf %260, %262 : vector<64x72xf32>
    %cst_372 = arith.constant dense<0.000000e+00> : vector<64xf32>
    %264 = vector.multi_reduction <add>, %263, %cst_372 [1] : vector<64x72xf32> to vector<64xf32>
    %265 = vector.shape_cast %264 : vector<64xf32> to vector<64x1xf32>
    %266 = arith.negf %265 : vector<64x1xf32>
    %267 = math.exp %266 : vector<64x1xf32>
    %cst_373 = arith.constant 1.000000e+00 : f32
    %268 = vector.broadcast %cst_373 : f32 to vector<64x1xf32>
    %269 = arith.addf %268, %267 : vector<64x1xf32>
    %270 = arith.divf %268, %269 : vector<64x1xf32>
    %271 = vector.broadcast %270 : vector<64x1xf32> to vector<64x16xf32>
    %272 = arith.mulf %177, %271 : vector<64x16xf32>
    %273 = arith.addf %272, %63 : vector<64x16xf32>
    %cst_374 = arith.constant 0.000000e+00 : f32
    %274 = vector.broadcast %cst_374 : f32 to vector<64x16xf32>
    %275 = arith.maximumf %273, %274 : vector<64x16xf32>
    %276 = vector.shape_cast %275 : vector<64x16xf32> to vector<1x8x8x16xf32>
    %277 = vector.extract_strided_slice %276 {offsets = [0, 0, 0, 0], sizes = [1, 8, 1, 16], strides = [1, 1, 1, 1]} : vector<1x8x8x16xf32> to vector<1x8x1x16xf32>
    %278 = vector.shape_cast %277 : vector<1x8x1x16xf32> to vector<1x8x16xf32>
    %c0_375 = arith.constant 0 : index
    %c0_376 = arith.constant 0 : index
    %c0_377 = arith.constant 0 : index
    %279 = vector.load %arg12[%c0_375, %c0_376, %c0_377] : memref<1x8x128xf32, #tpu.memory_space<vmem>>, vector<1x8x16xf32>
    tpu.vector_store %arg12[%c0_375, %c0_376, %c0_377], %278 {strides = array<i32>} : memref<1x8x128xf32, #tpu.memory_space<vmem>>, vector<1x8x16xf32>,
    %280 = vector.extract_strided_slice %276 {offsets = [0, 0, 1, 0], sizes = [1, 8, 1, 16], strides = [1, 1, 1, 1]} : vector<1x8x8x16xf32> to vector<1x8x1x16xf32>
    %281 = vector.shape_cast %280 : vector<1x8x1x16xf32> to vector<1x8x16xf32>
    %c0_378 = arith.constant 0 : index
    %c0_379 = arith.constant 0 : index
    %c16_380 = arith.constant 16 : index
    %282 = vector.load %arg12[%c0_378, %c0_379, %c16_380] : memref<1x8x128xf32, #tpu.memory_space<vmem>>, vector<1x8x16xf32>
    tpu.vector_store %arg12[%c0_378, %c0_379, %c16_380], %281 {strides = array<i32>} : memref<1x8x128xf32, #tpu.memory_space<vmem>>, vector<1x8x16xf32>,
    %283 = vector.extract_strided_slice %276 {offsets = [0, 0, 2, 0], sizes = [1, 8, 1, 16], strides = [1, 1, 1, 1]} : vector<1x8x8x16xf32> to vector<1x8x1x16xf32>
    %284 = vector.shape_cast %283 : vector<1x8x1x16xf32> to vector<1x8x16xf32>
    %c0_381 = arith.constant 0 : index
    %c0_382 = arith.constant 0 : index
    %c32_383 = arith.constant 32 : index
    %285 = vector.load %arg12[%c0_381, %c0_382, %c32_383] : memref<1x8x128xf32, #tpu.memory_space<vmem>>, vector<1x8x16xf32>
    tpu.vector_store %arg12[%c0_381, %c0_382, %c32_383], %284 {strides = array<i32>} : memref<1x8x128xf32, #tpu.memory_space<vmem>>, vector<1x8x16xf32>,
    %286 = vector.extract_strided_slice %276 {offsets = [0, 0, 3, 0], sizes = [1, 8, 1, 16], strides = [1, 1, 1, 1]} : vector<1x8x8x16xf32> to vector<1x8x1x16xf32>
    %287 = vector.shape_cast %286 : vector<1x8x1x16xf32> to vector<1x8x16xf32>
    %c0_384 = arith.constant 0 : index
    %c0_385 = arith.constant 0 : index
    %c48_386 = arith.constant 48 : index
    %288 = vector.load %arg12[%c0_384, %c0_385, %c48_386] : memref<1x8x128xf32, #tpu.memory_space<vmem>>, vector<1x8x16xf32>
    tpu.vector_store %arg12[%c0_384, %c0_385, %c48_386], %287 {strides = array<i32>} : memref<1x8x128xf32, #tpu.memory_space<vmem>>, vector<1x8x16xf32>,
    %289 = vector.extract_strided_slice %276 {offsets = [0, 0, 4, 0], sizes = [1, 8, 1, 16], strides = [1, 1, 1, 1]} : vector<1x8x8x16xf32> to vector<1x8x1x16xf32>
    %290 = vector.shape_cast %289 : vector<1x8x1x16xf32> to vector<1x8x16xf32>
    %c0_387 = arith.constant 0 : index
    %c0_388 = arith.constant 0 : index
    %c64_389 = arith.constant 64 : index
    %291 = vector.load %arg12[%c0_387, %c0_388, %c64_389] : memref<1x8x128xf32, #tpu.memory_space<vmem>>, vector<1x8x16xf32>
    tpu.vector_store %arg12[%c0_387, %c0_388, %c64_389], %290 {strides = array<i32>} : memref<1x8x128xf32, #tpu.memory_space<vmem>>, vector<1x8x16xf32>,
    %292 = vector.extract_strided_slice %276 {offsets = [0, 0, 5, 0], sizes = [1, 8, 1, 16], strides = [1, 1, 1, 1]} : vector<1x8x8x16xf32> to vector<1x8x1x16xf32>
    %293 = vector.shape_cast %292 : vector<1x8x1x16xf32> to vector<1x8x16xf32>
    %c0_390 = arith.constant 0 : index
    %c0_391 = arith.constant 0 : index
    %c80_392 = arith.constant 80 : index
    %294 = vector.load %arg12[%c0_390, %c0_391, %c80_392] : memref<1x8x128xf32, #tpu.memory_space<vmem>>, vector<1x8x16xf32>
    tpu.vector_store %arg12[%c0_390, %c0_391, %c80_392], %293 {strides = array<i32>} : memref<1x8x128xf32, #tpu.memory_space<vmem>>, vector<1x8x16xf32>,
    %295 = vector.extract_strided_slice %276 {offsets = [0, 0, 6, 0], sizes = [1, 8, 1, 16], strides = [1, 1, 1, 1]} : vector<1x8x8x16xf32> to vector<1x8x1x16xf32>
    %296 = vector.shape_cast %295 : vector<1x8x1x16xf32> to vector<1x8x16xf32>
    %c0_393 = arith.constant 0 : index
    %c0_394 = arith.constant 0 : index
    %c96_395 = arith.constant 96 : index
    %297 = vector.load %arg12[%c0_393, %c0_394, %c96_395] : memref<1x8x128xf32, #tpu.memory_space<vmem>>, vector<1x8x16xf32>
    tpu.vector_store %arg12[%c0_393, %c0_394, %c96_395], %296 {strides = array<i32>} : memref<1x8x128xf32, #tpu.memory_space<vmem>>, vector<1x8x16xf32>,
    %298 = vector.extract_strided_slice %276 {offsets = [0, 0, 7, 0], sizes = [1, 8, 1, 16], strides = [1, 1, 1, 1]} : vector<1x8x8x16xf32> to vector<1x8x1x16xf32>
    %299 = vector.shape_cast %298 : vector<1x8x1x16xf32> to vector<1x8x16xf32>
    %c0_396 = arith.constant 0 : index
    %c0_397 = arith.constant 0 : index
    %c112_398 = arith.constant 112 : index
    %300 = vector.load %arg12[%c0_396, %c0_397, %c112_398] : memref<1x8x128xf32, #tpu.memory_space<vmem>>, vector<1x8x16xf32>
    tpu.vector_store %arg12[%c0_396, %c0_397, %c112_398], %299 {strides = array<i32>} : memref<1x8x128xf32, #tpu.memory_space<vmem>>, vector<1x8x16xf32>,
    return
  }
  func.func @transform_0(%arg0: i32) -> (i32, i32, i32, i32) {
    %c0_i32 = arith.constant 0 : i32
    %c0_i32_0 = arith.constant 0 : i32
    %c0_i32_1 = arith.constant 0 : i32
    %c0_i32_2 = arith.constant 0 : i32
    return %arg0, %c0_i32, %c0_i32_0, %c0_i32_1 : i32, i32, i32, i32
  }
  func.func @transform_1(%arg0: i32) -> (i32, i32) {
    %c0_i32 = arith.constant 0 : i32
    %c0_i32_0 = arith.constant 0 : i32
    %c0_i32_1 = arith.constant 0 : i32
    return %c0_i32, %c0_i32_0 : i32, i32
  }
  func.func @transform_2(%arg0: i32) -> (i32, i32) {
    %c0_i32 = arith.constant 0 : i32
    %c0_i32_0 = arith.constant 0 : i32
    %c0_i32_1 = arith.constant 0 : i32
    return %c0_i32, %c0_i32_0 : i32, i32
  }
  func.func @transform_3(%arg0: i32) -> (i32, i32) {
    %c0_i32 = arith.constant 0 : i32
    %c0_i32_0 = arith.constant 0 : i32
    %c0_i32_1 = arith.constant 0 : i32
    return %c0_i32, %c0_i32_0 : i32, i32
  }
  func.func @transform_4(%arg0: i32) -> (i32, i32) {
    %c0_i32 = arith.constant 0 : i32
    %c0_i32_0 = arith.constant 0 : i32
    %c0_i32_1 = arith.constant 0 : i32
    return %c0_i32, %c0_i32_0 : i32, i32
  }
  func.func @transform_5(%arg0: i32) -> (i32, i32) {
    %c0_i32 = arith.constant 0 : i32
    %c0_i32_0 = arith.constant 0 : i32
    %c0_i32_1 = arith.constant 0 : i32
    return %c0_i32, %c0_i32_0 : i32, i32
  }
  func.func @transform_6(%arg0: i32) -> (i32, i32) {
    %c0_i32 = arith.constant 0 : i32
    %c0_i32_0 = arith.constant 0 : i32
    %c0_i32_1 = arith.constant 0 : i32
    return %c0_i32, %c0_i32_0 : i32, i32
  }
  func.func @transform_7(%arg0: i32) -> (i32, i32) {
    %c0_i32 = arith.constant 0 : i32
    %c0_i32_0 = arith.constant 0 : i32
    %c0_i32_1 = arith.constant 0 : i32
    return %c0_i32, %c0_i32_0 : i32, i32
  }
  func.func @transform_8(%arg0: i32) -> (i32, i32) {
    %c0_i32 = arith.constant 0 : i32
    %c0_i32_0 = arith.constant 0 : i32
    %c0_i32_1 = arith.constant 0 : i32
    return %c0_i32, %c0_i32_0 : i32, i32
  }
  func.func @transform_9(%arg0: i32) -> (i32, i32) {
    %c0_i32 = arith.constant 0 : i32
    %c0_i32_0 = arith.constant 0 : i32
    %c0_i32_1 = arith.constant 0 : i32
    return %c0_i32, %c0_i32_0 : i32, i32
  }
  func.func @transform_10(%arg0: i32) -> (i32, i32) {
    %c0_i32 = arith.constant 0 : i32
    %c0_i32_0 = arith.constant 0 : i32
    %c0_i32_1 = arith.constant 0 : i32
    return %c0_i32, %c0_i32_0 : i32, i32
  }
  func.func @transform_11(%arg0: i32) -> (i32, i32, i32) {
    %c0_i32 = arith.constant 0 : i32
    %c0_i32_0 = arith.constant 0 : i32
    %c0_i32_1 = arith.constant 0 : i32
    return %arg0, %c0_i32, %c0_i32_0 : i32, i32, i32
  }
}

</mosaic_0001>

<llo_original>
// kernel: ecmba_forward.1
$region0: #{ecmba_forward.1}
  #allocation0 [shape = 'u32[]', space=smem, size = 0x4, offset = 0x4, fixed_abs, tag = 'smem constant byte address 0x4 - core index']
  #allocation1 [shape = 'u32[72,128]{1,0:T(1,128)}', space=vmem, size = 0x9000, scoped, tag = 'internal scratch']
  #allocation2 [shape = 'f32[1,10,10,4]{3,2,1,0:T(8,128)}', space=vmem, size = 0x14000, scoped, tag = 'scratch operand']
  #allocation3 [shape = 'f32[1,10,10,16]{3,2,1,0:T(8,128)}', space=vmem, size = 0x14000, scoped, tag = 'scratch operand']
  #allocation4 [shape = 'f32[1,10,10,8]{3,2,1,0:T(8,128)}', space=vmem, size = 0x14000, scoped, tag = 'scratch operand']
  #allocation5 [shape = 'bf16[64,36]{1,0:T(8,128)(2,1)}', space=vmem, size = 0x4000, scoped, tag = 'scratch operand']
  #allocation6 [shape = 'bf16[64,144]{1,0:T(8,128)(2,1)}', space=vmem, size = 0x8000, scoped, tag = 'scratch operand']
  #allocation7 [shape = 'f32[64,72]{1,0:T(8,128)}', space=vmem, size = 0x8000, scoped, tag = 'scratch operand']
  %s0 = inlined_call_operand.vmem [shape: f32[2,8,8,4], index: 0, kind: input, shape index: {}]
  %s1 = inlined_call_operand.vmem [shape: bf16[36,16], index: 1, kind: input, shape index: {}]
  %s2 = inlined_call_operand.vmem [shape: f32[1,16], index: 2, kind: input, shape index: {}]
  %s3 = inlined_call_operand.vmem [shape: bf16[144,16], index: 3, kind: input, shape index: {}]
  %s4 = inlined_call_operand.vmem [shape: f32[1,16], index: 4, kind: input, shape index: {}]
  %s5 = inlined_call_operand.vmem [shape: bf16[144,16], index: 5, kind: input, shape index: {}]
  %s6 = inlined_call_operand.vmem [shape: f32[1,16], index: 6, kind: input, shape index: {}]
  %s7 = inlined_call_operand.vmem [shape: f32[16,1], index: 7, kind: input, shape index: {}]
  %s8 = inlined_call_operand.vmem [shape: f32[1,16], index: 8, kind: input, shape index: {}]
  %s9 = inlined_call_operand.vmem [shape: bf16[144,8], index: 9, kind: input, shape index: {}]
  %s10 = inlined_call_operand.vmem [shape: f32[1,72], index: 10, kind: input, shape index: {}]
  %s11 = inlined_call_operand.vmem [shape: f32[2,8,128], index: 11, kind: output, shape index: {}]
  %s12 = sld [smem:[#allocation0]]
  $region77: #{ecmba_forward.1} parent=0
    _
  %s14 = ssub.s32 1, %s12
  %s15 = scalar_select 0, %s14, %s12
  loop: start=0, step=1, limit=4
  $region2: #{ecmba_forward.1} parent=0 // loop_pre_header
    _
  $region3: #{ecmba_forward.1} parent=0 // loop_header
    %s17 = sphi 0, %s21
    %p18 = scmp.ge.s32.totalorder %s17, 4
    %s27 = sphi 0, %s29
    %s30 = sphi 0, %s27
    %s31 = sphi 0, %s30
    %s47 = sphi 0, %s31
    %s51 = sphi 0, %s51
    %s53 = sphi 0, %s51
    %s54 = sphi 0, %s53
    %s68 = sphi 0, %s54
    %s72 = sphi 0, %s72
    %s74 = sphi 0, %s72
    %s75 = sphi 0, %s74
    %s89 = sphi 0, %s75
    %s93 = sphi 0, %s93
    %s95 = sphi 0, %s93
    %s96 = sphi 0, %s95
    %s110 = sphi 0, %s96
    %s114 = sphi 0, %s114
    %s116 = sphi 0, %s114
    %s117 = sphi 0, %s116
    %s131 = sphi 0, %s117
    %s135 = sphi 0, %s135
    %s137 = sphi 0, %s135
    %s138 = sphi 0, %s137
    %s152 = sphi 0, %s138
    %s156 = sphi 0, %s156
    %s158 = sphi 0, %s156
    %s159 = sphi 0, %s158
    %s173 = sphi 0, %s159
    %s177 = sphi 0, %s177
    %s179 = sphi 0, %s177
    %s180 = sphi 0, %s179
    %s194 = sphi 0, %s180
    %s198 = sphi 0, %s198
    %s200 = sphi 0, %s198
    %s201 = sphi 0, %s200
    %s215 = sphi 0, %s201
    %s219 = sphi 0, %s219
    %s221 = sphi 0, %s219
    %s222 = sphi 0, %s221
    %s236 = sphi 0, %s222
    %s240 = sphi 0, %s240
    %s242 = sphi 0, %s240
    %s243 = sphi 0, %s242
    %s257 = sphi 0, %s243
    %s263 = sphi 0, %s265
    %s266 = sphi 0, %s263
    %s267 = sphi 0, %s266
    %s283 = sphi 0, %s267
  $region4: #{ecmba_forward.1} parent=0 // loop_header_branch
    %20 = sbr.rel (%p18) target = $region8
  $region5: #{ecmba_forward.1} parent=0 // loop_body
    %s22 = ssub.s32 %s17, 1
    %s23 = ssub.s32 %s17, 2
    %s24 = sadd.s32 %s17, 1
    %s25 = ssub.s32 %s17, %s24
    %p26 = scmp.eq.s32.totalorder %s25, 0
    %s28 = sadd.s32 %s27, 1
    %s29 = scalar_select %p26, %s27, %s28
    %p32 = pneg %p26
    %p33 = scmp.eq.s32.totalorder %s17, 1
    %p34 = por %p32, %p33
    %p35 = scmp.ne.s32.totalorder %s27, %s30
    %p36 = scmp.eq.s32.totalorder %s17, 0
    %p37 = por %p35, %p36
    %p38 = scmp.ne.s32.totalorder %s27, %s30
    %p39 = scmp.eq.s32.totalorder %s22, 1
    %p40 = por %p38, %p39
    %p41 = scmp.ne.s32.totalorder %s30, %s31
    %p42 = scmp.eq.s32.totalorder %s22, 0
    %p43 = por %p41, %p42
    %p44 = scmp.ne.s32.totalorder %s30, %s31
    %p45 = scmp.eq.s32.totalorder %s23, 1
    %p46 = por %p44, %p45
    %p48 = scmp.ne.s32.totalorder %s31, %s47
    %p49 = scmp.eq.s32.totalorder %s23, 0
    %p50 = por %p48, %p49
    %s52 = sadd.s32 %s51, 1
    %p55 = scmp.eq.s32.totalorder %s17, 1
    %p56 = scmp.ne.s32.totalorder %s51, %s53
    %p57 = scmp.eq.s32.totalorder %s17, 0
    %p58 = por %p56, %p57
    %p59 = scmp.ne.s32.totalorder %s51, %s53
    %p60 = scmp.eq.s32.totalorder %s22, 1
    %p61 = por %p59, %p60
    %p62 = scmp.ne.s32.totalorder %s53, %s54
    %p63 = scmp.eq.s32.totalorder %s22, 0
    %p64 = por %p62, %p63
    %p65 = scmp.ne.s32.totalorder %s53, %s54
    %p66 = scmp.eq.s32.totalorder %s23, 1
    %p67 = por %p65, %p66
    %p69 = scmp.ne.s32.totalorder %s54, %s68
    %p70 = scmp.eq.s32.totalorder %s23, 0
    %p71 = por %p69, %p70
    %s73 = sadd.s32 %s72, 1
    %p76 = scmp.eq.s32.totalorder %s17, 1
    %p77 = scmp.ne.s32.totalorder %s72, %s74
    %p78 = scmp.eq.s32.totalorder %s17, 0
    %p79 = por %p77, %p78
    %p80 = scmp.ne.s32.totalorder %s72, %s74
    %p81 = scmp.eq.s32.totalorder %s22, 1
    %p82 = por %p80, %p81
    %p83 = scmp.ne.s32.totalorder %s74, %s75
    %p84 = scmp.eq.s32.totalorder %s22, 0
    %p85 = por %p83, %p84
    %p86 = scmp.ne.s32.totalorder %s74, %s75
    %p87 = scmp.eq.s32.totalorder %s23, 1
    %p88 = por %p86, %p87
    %p90 = scmp.ne.s32.totalorder %s75, %s89
    %p91 = scmp.eq.s32.totalorder %s23, 0
    %p92 = por %p90, %p91
    %s94 = sadd.s32 %s93, 1
    %p97 = scmp.eq.s32.totalorder %s17, 1
    %p98 = scmp.ne.s32.totalorder %s93, %s95
    %p99 = scmp.eq.s32.totalorder %s17, 0
    %p100 = por %p98, %p99
    %p101 = scmp.ne.s32.totalorder %s93, %s95
    %p102 = scmp.eq.s32.totalorder %s22, 1
    %p103 = por %p101, %p102
    %p104 = scmp.ne.s32.totalorder %s95, %s96
    %p105 = scmp.eq.s32.totalorder %s22, 0
    %p106 = por %p104, %p105
    %p107 = scmp.ne.s32.totalorder %s95, %s96
    %p108 = scmp.eq.s32.totalorder %s23, 1
    %p109 = por %p107, %p108
    %p111 = scmp.ne.s32.totalorder %s96, %s110
    %p112 = scmp.eq.s32.totalorder %s23, 0
    %p113 = por %p111, %p112
    %s115 = sadd.s32 %s114, 1
    %p118 = scmp.eq.s32.totalorder %s17, 1
    %p119 = scmp.ne.s32.totalorder %s114, %s116
    %p120 = scmp.eq.s32.totalorder %s17, 0
    %p121 = por %p119, %p120
    %p122 = scmp.ne.s32.totalorder %s114, %s116
    %p123 = scmp.eq.s32.totalorder %s22, 1
    %p124 = por %p122, %p123
    %p125 = scmp.ne.s32.totalorder %s116, %s117
    %p126 = scmp.eq.s32.totalorder %s22, 0
    %p127 = por %p125, %p126
    %p128 = scmp.ne.s32.totalorder %s116, %s117
    %p129 = scmp.eq.s32.totalorder %s23, 1
    %p130 = por %p128, %p129
    %p132 = scmp.ne.s32.totalorder %s117, %s131
    %p133 = scmp.eq.s32.totalorder %s23, 0
    %p134 = por %p132, %p133
    %s136 = sadd.s32 %s135, 1
    %p139 = scmp.eq.s32.totalorder %s17, 1
    %p140 = scmp.ne.s32.totalorder %s135, %s137
    %p141 = scmp.eq.s32.totalorder %s17, 0
    %p142 = por %p140, %p141
    %p143 = scmp.ne.s32.totalorder %s135, %s137
    %p144 = scmp.eq.s32.totalorder %s22, 1
    %p145 = por %p143, %p144
    %p146 = scmp.ne.s32.totalorder %s137, %s138
    %p147 = scmp.eq.s32.totalorder %s22, 0
    %p148 = por %p146, %p147
    %p149 = scmp.ne.s32.totalorder %s137, %s138
    %p150 = scmp.eq.s32.totalorder %s23, 1
    %p151 = por %p149, %p150
    %p153 = scmp.ne.s32.totalorder %s138, %s152
    %p154 = scmp.eq.s32.totalorder %s23, 0
    %p155 = por %p153, %p154
    %s157 = sadd.s32 %s156, 1
    %p160 = scmp.eq.s32.totalorder %s17, 1
    %p161 = scmp.ne.s32.totalorder %s156, %s158
    %p162 = scmp.eq.s32.totalorder %s17, 0
    %p163 = por %p161, %p162
    %p164 = scmp.ne.s32.totalorder %s156, %s158
    %p165 = scmp.eq.s32.totalorder %s22, 1
    %p166 = por %p164, %p165
    %p167 = scmp.ne.s32.totalorder %s158, %s159
    %p168 = scmp.eq.s32.totalorder %s22, 0
    %p169 = por %p167, %p168
    %p170 = scmp.ne.s32.totalorder %s158, %s159
    %p171 = scmp.eq.s32.totalorder %s23, 1
    %p172 = por %p170, %p171
    %p174 = scmp.ne.s32.totalorder %s159, %s173
    %p175 = scmp.eq.s32.totalorder %s23, 0
    %p176 = por %p174, %p175
    %s178 = sadd.s32 %s177, 1
    %p181 = scmp.eq.s32.totalorder %s17, 1
    %p182 = scmp.ne.s32.totalorder %s177, %s179
    %p183 = scmp.eq.s32.totalorder %s17, 0
    %p184 = por %p182, %p183
    %p185 = scmp.ne.s32.totalorder %s177, %s179
    %p186 = scmp.eq.s32.totalorder %s22, 1
    %p187 = por %p185, %p186
    %p188 = scmp.ne.s32.totalorder %s179, %s180
    %p189 = scmp.eq.s32.totalorder %s22, 0
    %p190 = por %p188, %p189
    %p191 = scmp.ne.s32.totalorder %s179, %s180
    %p192 = scmp.eq.s32.totalorder %s23, 1
    %p193 = por %p191, %p192
    %p195 = scmp.ne.s32.totalorder %s180, %s194
    %p196 = scmp.eq.s32.totalorder %s23, 0
    %p197 = por %p195, %p196
    %s199 = sadd.s32 %s198, 1
    %p202 = scmp.eq.s32.totalorder %s17, 1
    %p203 = scmp.ne.s32.totalorder %s198, %s200
    %p204 = scmp.eq.s32.totalorder %s17, 0
    %p205 = por %p203, %p204
    %p206 = scmp.ne.s32.totalorder %s198, %s200
    %p207 = scmp.eq.s32.totalorder %s22, 1
    %p208 = por %p206, %p207
    %p209 = scmp.ne.s32.totalorder %s200, %s201
    %p210 = scmp.eq.s32.totalorder %s22, 0
    %p211 = por %p209, %p210
    %p212 = scmp.ne.s32.totalorder %s200, %s201
    %p213 = scmp.eq.s32.totalorder %s23, 1
    %p214 = por %p212, %p213
    %p216 = scmp.ne.s32.totalorder %s201, %s215
    %p217 = scmp.eq.s32.totalorder %s23, 0
    %p218 = por %p216, %p217
    %s220 = sadd.s32 %s219, 1
    %p223 = scmp.eq.s32.totalorder %s17, 1
    %p224 = scmp.ne.s32.totalorder %s219, %s221
    %p225 = scmp.eq.s32.totalorder %s17, 0
    %p226 = por %p224, %p225
    %p227 = scmp.ne.s32.totalorder %s219, %s221
    %p228 = scmp.eq.s32.totalorder %s22, 1
    %p229 = por %p227, %p228
    %p230 = scmp.ne.s32.totalorder %s221, %s222
    %p231 = scmp.eq.s32.totalorder %s22, 0
    %p232 = por %p230, %p231
    %p233 = scmp.ne.s32.totalorder %s221, %s222
    %p234 = scmp.eq.s32.totalorder %s23, 1
    %p235 = por %p233, %p234
    %p237 = scmp.ne.s32.totalorder %s222, %s236
    %p238 = scmp.eq.s32.totalorder %s23, 0
    %p239 = por %p237, %p238
    %s241 = sadd.s32 %s240, 1
    %p244 = scmp.eq.s32.totalorder %s17, 1
    %p245 = scmp.ne.s32.totalorder %s240, %s242
    %p246 = scmp.eq.s32.totalorder %s17, 0
    %p247 = por %p245, %p246
    %p248 = scmp.ne.s32.totalorder %s240, %s242
    %p249 = scmp.eq.s32.totalorder %s22, 1
    %p250 = por %p248, %p249
    %p251 = scmp.ne.s32.totalorder %s242, %s243
    %p252 = scmp.eq.s32.totalorder %s22, 0
    %p253 = por %p251, %p252
    %p254 = scmp.ne.s32.totalorder %s242, %s243
    %p255 = scmp.eq.s32.totalorder %s23, 1
    %p256 = por %p254, %p255
    %p258 = scmp.ne.s32.totalorder %s243, %s257
    %p259 = scmp.eq.s32.totalorder %s23, 0
    %p260 = por %p258, %p259
    %s261 = ssub.s32 %s17, %s24
    %p262 = scmp.eq.s32.totalorder %s261, 0
    %s264 = sadd.s32 %s263, 1
    %s265 = scalar_select %p262, %s263, %s264
    %p268 = pneg %p262
    %p269 = scmp.eq.s32.totalorder %s17, 1
    %p270 = por %p268, %p269
    %p271 = scmp.ne.s32.totalorder %s263, %s266
    %p272 = scmp.eq.s32.totalorder %s17, 0
    %p273 = por %p271, %p272
    %p274 = scmp.ne.s32.totalorder %s263, %s266
    %p275 = scmp.eq.s32.totalorder %s22, 1
    %p276 = por %p274, %p275
    %p277 = scmp.ne.s32.totalorder %s266, %s267
    %p278 = scmp.eq.s32.totalorder %s22, 0
    %p279 = por %p277, %p278
    %p280 = scmp.ne.s32.totalorder %s266, %s267
    %p281 = scmp.eq.s32.totalorder %s23, 1
    %p282 = por %p280, %p281
    %p284 = scmp.ne.s32.totalorder %s267, %s283
    %p285 = scmp.eq.s32.totalorder %s23, 0
    %p286 = por %p284, %p285
    %p287 = scmp.le.s32.totalorder 1, %s17
    %p288 = scmp.lt.s32.totalorder %s17, 3
    %p289 = pnand %p287, %p288
    %p290 = pneg %p289
    // Predicated region
    $region9: #{ecmba_forward.1} parent=5 // pred_check
      _
    $region10: #{ecmba_forward.1} parent=5 // pred_check_branch
      %292 = sbr.rel (%p289) target = $region12
    $region11: #{ecmba_forward.1} parent=5 // pred_region
      %s293 = ssub.s32 %s17, 1
      // Predicated region
      $region13: #{ecmba_forward.1} parent=11 // pred_check
        %p294 = pneg %p64
      $region14: #{ecmba_forward.1} parent=11 // pred_check_branch
        %296 = sbr.rel (%p294) target = $region16
      $region15: #{ecmba_forward.1} parent=11 // pred_region
        _
      $region16: #{ecmba_forward.1} parent=11 // pred_fallthru
        _
      // Predicated region
      $region17: #{ecmba_forward.1} parent=11 // pred_check
        %p297 = pneg %p85
      $region18: #{ecmba_forward.1} parent=11 // pred_check_branch
        %299 = sbr.rel (%p297) target = $region20
      $region19: #{ecmba_forward.1} parent=11 // pred_region
        _
      $region20: #{ecmba_forward.1} parent=11 // pred_fallthru
        _
      // Predicated region
      $region21: #{ecmba_forward.1} parent=11 // pred_check
        %p300 = pneg %p106
      $region22: #{ecmba_forward.1} parent=11 // pred_check_branch
        %302 = sbr.rel (%p300) target = $region24
      $region23: #{ecmba_forward.1} parent=11 // pred_region
        _
      $region24: #{ecmba_forward.1} parent=11 // pred_fallthru
        _
      // Predicated region
      $region25: #{ecmba_forward.1} parent=11 // pred_check
        %p303 = pneg %p127
      $region26: #{ecmba_forward.1} parent=11 // pred_check_branch
        %305 = sbr.rel (%p303) target = $region28
      $region27: #{ecmba_forward.1} parent=11 // pred_region
        _
      $region28: #{ecmba_forward.1} parent=11 // pred_fallthru
        _
      // Predicated region
      $region29: #{ecmba_forward.1} parent=11 // pred_check
        %p306 = pneg %p148
      $region30: #{ecmba_forward.1} parent=11 // pred_check_branch
        %308 = sbr.rel (%p306) target = $region32
      $region31: #{ecmba_forward.1} parent=11 // pred_region
        _
      $region32: #{ecmba_forward.1} parent=11 // pred_fallthru
        _
      // Predicated region
      $region33: #{ecmba_forward.1} parent=11 // pred_check
        %p309 = pneg %p169
      $region34: #{ecmba_forward.1} parent=11 // pred_check_branch
        %311 = sbr.rel (%p309) target = $region36
      $region35: #{ecmba_forward.1} parent=11 // pred_region
        _
      $region36: #{ecmba_forward.1} parent=11 // pred_fallthru
        _
      // Predicated region
      $region37: #{ecmba_forward.1} parent=11 // pred_check
        %p312 = pneg %p190
      $region38: #{ecmba_forward.1} parent=11 // pred_check_branch
        %314 = sbr.rel (%p312) target = $region40
      $region39: #{ecmba_forward.1} parent=11 // pred_region
        _
      $region40: #{ecmba_forward.1} parent=11 // pred_fallthru
        _
      // Predicated region
      $region41: #{ecmba_forward.1} parent=11 // pred_check
        %p315 = pneg %p211
      $region42: #{ecmba_forward.1} parent=11 // pred_check_branch
        %317 = sbr.rel (%p315) target = $region44
      $region43: #{ecmba_forward.1} parent=11 // pred_region
        _
      $region44: #{ecmba_forward.1} parent=11 // pred_fallthru
        _
      // Predicated region
      $region45: #{ecmba_forward.1} parent=11 // pred_check
        %p318 = pneg %p232
      $region46: #{ecmba_forward.1} parent=11 // pred_check_branch
        %320 = sbr.rel (%p318) target = $region48
      $region47: #{ecmba_forward.1} parent=11 // pred_region
        _
      $region48: #{ecmba_forward.1} parent=11 // pred_fallthru
        _
      // Predicated region
      $region49: #{ecmba_forward.1} parent=11 // pred_check
        %p321 = pneg %p253
      $region50: #{ecmba_forward.1} parent=11 // pred_check_branch
        %323 = sbr.rel (%p321) target = $region52
      $region51: #{ecmba_forward.1} parent=11 // pred_region
        _
      $region52: #{ecmba_forward.1} parent=11 // pred_fallthru
        _
    $region12: #{ecmba_forward.1} parent=5 // pred_fallthru
      _
    %p324 = scmp.lt.s32.totalorder %s17, 2
    // Predicated region
    $region53: #{ecmba_forward.1} parent=5 // pred_check
      %p325 = pneg %p324
    $region54: #{ecmba_forward.1} parent=5 // pred_check_branch
      %327 = sbr.rel (%p325) target = $region56
    $region55: #{ecmba_forward.1} parent=5 // pred_region
      // Predicated region
      $region57: #{ecmba_forward.1} parent=55 // pred_check
        %p328 = pneg %p37
      $region58: #{ecmba_forward.1} parent=55 // pred_check_branch
        %330 = sbr.rel (%p328) target = $region60
      $region59: #{ecmba_forward.1} parent=55 // pred_region
        %p331 = scmp.lt.s32.totalorder %s17, 1
        %s332 = scalar_select %p331, %s17, 1
        %s333 = smul.addr %s332, 8
        %s334 = smul.addr %s333, 8
        %s335 = scalar_lea.vmem %s0, %s334
      $region60: #{ecmba_forward.1} parent=55 // pred_fallthru
        _
    $region56: #{ecmba_forward.1} parent=5 // pred_fallthru
      _
    %p336 = scmp.le.s32.totalorder 1, %s17
    %p337 = scmp.lt.s32.totalorder %s17, 3
    %p338 = pnand %p336, %p337
    %p339 = pneg %p338
    // Predicated region
    $region61: #{ecmba_forward.1} parent=5 // pred_check
      _
    $region62: #{ecmba_forward.1} parent=5 // pred_check_branch
      %341 = sbr.rel (%p338) target = $region64
    $region63: #{ecmba_forward.1} parent=5 // pred_region
      %s342 = ssub.s32 %s17, 1
      %p343 = scmp.lt.s32.totalorder %s22, 1
      %s344 = scalar_select %p343, %s22, 1
      %s345 = smul.addr %s344, 8
      %s346 = smul.addr %s345, 8
      %s347 = scalar_lea.vmem %s0, %s346
      %p348 = pneg %p43
      %p349 = pneg %p40
      %p350 = pneg %p64
      %p351 = pneg %p61
      %p352 = pneg %p85
      %p353 = pneg %p82
      %p354 = pneg %p106
      %p355 = pneg %p103
      %p356 = pneg %p127
      %p357 = pneg %p124
      %p358 = pneg %p148
      %p359 = pneg %p145
      %p360 = pneg %p169
      %p361 = pneg %p166
      %p362 = pneg %p190
      %p363 = pneg %p187
      %p364 = pneg %p211
      %p365 = pneg %p208
      %p366 = pneg %p232
      %p367 = pneg %p229
      %p368 = pneg %p253
      %p369 = pneg %p250
      %p370 = pneg %p279
      %p371 = pneg %p276
      %p372 = scmp.lt.s32.totalorder %s22, 1
      %s373 = scalar_select %p372, %s22, 1
      %s374 = smul.addr %s373, 8
      %s375 = scalar_lea.vmem %s11, %s374
      %p376 = scmp.lt.s32.totalorder %s22, 1
      %s377 = scalar_select %p376, %s22, 1
      %s378 = smul.addr %s377, 8
      %s379 = smul.addr %s378, 8
      %s380 = scalar_lea.vmem %s0, %s379
      %p381 = scmp.lt.s32.totalorder %s22, 1
      %s382 = scalar_select %p381, %s22, 1
      %s383 = smul.addr %s382, 8
      %s384 = scalar_lea.vmem %s11, %s383
      %vm386 = vcmask 31744
      %387 = vst.msk [vmem:[#allocation2] sm:$0xff] %vm386, 0.0
      %vm388 = vcmask 25600
      %389 = vst.msk [vmem:[#allocation2 + $0x8] sm:$0x3] %vm388, 0.0
      %s390 = scalar_lea.vmem [#allocation2], 144
      %391 = vst.msk [vmem:[%s390] sm:$0xff] %vm386, 0.0
      %392 = vst.msk [vmem:[%s390 + $0x8] sm:$0x3] %vm388, 0.0
      %vm393 = vcmask 24576
      %394 = vst.msk [vmem:[#allocation2] sm:$0x1] %vm393, 0.0
      %395 = vst.msk [vmem:[#allocation2 + $0x10] sm:$0x1] %vm393, 0.0
      %396 = vst.msk [vmem:[#allocation2 + $0x20] sm:$0x1] %vm393, 0.0
      %397 = vst.msk [vmem:[#allocation2 + $0x30] sm:$0x1] %vm393, 0.0
      %398 = vst.msk [vmem:[#allocation2 + $0x40] sm:$0x1] %vm393, 0.0
      %399 = vst.msk [vmem:[#allocation2 + $0x50] sm:$0x1] %vm393, 0.0
      %400 = vst.msk [vmem:[#allocation2 + $0x60] sm:$0x1] %vm393, 0.0
      %401 = vst.msk [vmem:[#allocation2 + $0x70] sm:$0x1] %vm393, 0.0
      %402 = vst.msk [vmem:[#allocation2 + $0x80] sm:$0x1] %vm393, 0.0
      %403 = vst.msk [vmem:[#allocation2 + $0x90] sm:$0x1] %vm393, 0.0
      %404 = vst.msk [vmem:[#allocation2 + $0x9] sm:$0x1] %vm393, 0.0
      %405 = vst.msk [vmem:[#allocation2 + $0x19] sm:$0x1] %vm393, 0.0
      %406 = vst.msk [vmem:[#allocation2 + $0x29] sm:$0x1] %vm393, 0.0
      %407 = vst.msk [vmem:[#allocation2 + $0x39] sm:$0x1] %vm393, 0.0
      %408 = vst.msk [vmem:[#allocation2 + $0x49] sm:$0x1] %vm393, 0.0
      %409 = vst.msk [vmem:[#allocation2 + $0x59] sm:$0x1] %vm393, 0.0
      %410 = vst.msk [vmem:[#allocation2 + $0x69] sm:$0x1] %vm393, 0.0
      %411 = vst.msk [vmem:[#allocation2 + $0x79] sm:$0x1] %vm393, 0.0
      %412 = vst.msk [vmem:[#allocation2 + $0x89] sm:$0x1] %vm393, 0.0
      %413 = vst.msk [vmem:[#allocation2 + $0x99] sm:$0x1] %vm393, 0.0
      %vm414 = vcmask 130048
      %415 = vst.msk [vmem:[#allocation3] sm:$0xff] %vm414, 0.0
      %vm416 = vcmask 123904
      %417 = vst.msk [vmem:[#allocation3 + $0x8] sm:$0x3] %vm416, 0.0
      %s418 = scalar_lea.vmem [#allocation3], 144
      %419 = vst.msk [vmem:[%s418] sm:$0xff] %vm414, 0.0
      %420 = vst.msk [vmem:[%s418 + $0x8] sm:$0x3] %vm416, 0.0
      %vm421 = vcmask 122880
      %422 = vst.msk [vmem:[#allocation3] sm:$0x1] %vm421, 0.0
      %423 = vst.msk [vmem:[#allocation3 + $0x10] sm:$0x1] %vm421, 0.0
      %424 = vst.msk [vmem:[#allocation3 + $0x20] sm:$0x1] %vm421, 0.0
      %425 = vst.msk [vmem:[#allocation3 + $0x30] sm:$0x1] %vm421, 0.0
      %426 = vst.msk [vmem:[#allocation3 + $0x40] sm:$0x1] %vm421, 0.0
      %427 = vst.msk [vmem:[#allocation3 + $0x50] sm:$0x1] %vm421, 0.0
      %428 = vst.msk [vmem:[#allocation3 + $0x60] sm:$0x1] %vm421, 0.0
      %429 = vst.msk [vmem:[#allocation3 + $0x70] sm:$0x1] %vm421, 0.0
      %430 = vst.msk [vmem:[#allocation3 + $0x80] sm:$0x1] %vm421, 0.0
      %431 = vst.msk [vmem:[#allocation3 + $0x90] sm:$0x1] %vm421, 0.0
      %432 = vst.msk [vmem:[#allocation3 + $0x9] sm:$0x1] %vm421, 0.0
      %433 = vst.msk [vmem:[#allocation3 + $0x19] sm:$0x1] %vm421, 0.0
      %434 = vst.msk [vmem:[#allocation3 + $0x29] sm:$0x1] %vm421, 0.0
      %435 = vst.msk [vmem:[#allocation3 + $0x39] sm:$0x1] %vm421, 0.0
      %436 = vst.msk [vmem:[#allocation3 + $0x49] sm:$0x1] %vm421, 0.0
      %437 = vst.msk [vmem:[#allocation3 + $0x59] sm:$0x1] %vm421, 0.0
      %438 = vst.msk [vmem:[#allocation3 + $0x69] sm:$0x1] %vm421, 0.0
      %439 = vst.msk [vmem:[#allocation3 + $0x79] sm:$0x1] %vm421, 0.0
      %440 = vst.msk [vmem:[#allocation3 + $0x89] sm:$0x1] %vm421, 0.0
      %441 = vst.msk [vmem:[#allocation3 + $0x99] sm:$0x1] %vm421, 0.0
      %vm442 = vcmask 64512
      %443 = vst.msk [vmem:[#allocation4] sm:$0xff] %vm442, 0.0
      %vm444 = vcmask 58368
      %445 = vst.msk [vmem:[#allocation4 + $0x8] sm:$0x3] %vm444, 0.0
      %s446 = scalar_lea.vmem [#allocation4], 144
      %447 = vst.msk [vmem:[%s446] sm:$0xff] %vm442, 0.0
      %448 = vst.msk [vmem:[%s446 + $0x8] sm:$0x3] %vm444, 0.0
      %vm449 = vcmask 57344
      %450 = vst.msk [vmem:[#allocation4] sm:$0x1] %vm449, 0.0
      %451 = vst.msk [vmem:[#allocation4 + $0x10] sm:$0x1] %vm449, 0.0
      %452 = vst.msk [vmem:[#allocation4 + $0x20] sm:$0x1] %vm449, 0.0
      %453 = vst.msk [vmem:[#allocation4 + $0x30] sm:$0x1] %vm449, 0.0
      %454 = vst.msk [vmem:[#allocation4 + $0x40] sm:$0x1] %vm449, 0.0
      %455 = vst.msk [vmem:[#allocation4 + $0x50] sm:$0x1] %vm449, 0.0
      %456 = vst.msk [vmem:[#allocation4 + $0x60] sm:$0x1] %vm449, 0.0
      %457 = vst.msk [vmem:[#allocation4 + $0x70] sm:$0x1] %vm449, 0.0
      %458 = vst.msk [vmem:[#allocation4 + $0x80] sm:$0x1] %vm449, 0.0
      %459 = vst.msk [vmem:[#allocation4 + $0x90] sm:$0x1] %vm449, 0.0
      %460 = vst.msk [vmem:[#allocation4 + $0x9] sm:$0x1] %vm449, 0.0
      %461 = vst.msk [vmem:[#allocation4 + $0x19] sm:$0x1] %vm449, 0.0
      %462 = vst.msk [vmem:[#allocation4 + $0x29] sm:$0x1] %vm449, 0.0
      %463 = vst.msk [vmem:[#allocation4 + $0x39] sm:$0x1] %vm449, 0.0
      %464 = vst.msk [vmem:[#allocation4 + $0x49] sm:$0x1] %vm449, 0.0
      %465 = vst.msk [vmem:[#allocation4 + $0x59] sm:$0x1] %vm449, 0.0
      %466 = vst.msk [vmem:[#allocation4 + $0x69] sm:$0x1] %vm449, 0.0
      %467 = vst.msk [vmem:[#allocation4 + $0x79] sm:$0x1] %vm449, 0.0
      %468 = vst.msk [vmem:[#allocation4 + $0x89] sm:$0x1] %vm449, 0.0
      %469 = vst.msk [vmem:[#allocation4 + $0x99] sm:$0x1] %vm449, 0.0
      %v470 = vld [vmem:[%s380] sm:$0xff]
      %v471 = vld [vmem:[%s380 + $0x8] sm:$0xff]
      %v472 = vld [vmem:[%s380 + $0x10] sm:$0xff]
      %v473 = vld [vmem:[%s380 + $0x18] sm:$0xff]
      %v474 = vld [vmem:[%s380 + $0x20] sm:$0xff]
      %v475 = vld [vmem:[%s380 + $0x28] sm:$0xff]
      %v476 = vld [vmem:[%s380 + $0x30] sm:$0xff]
      %v477 = vld [vmem:[%s380 + $0x38] sm:$0xff]
      %s478 = scalar_lea.vmem [#allocation2], 16
      %479 = vst.msk [vmem:[%s478 + $0x1] sm:$0xff] %vm386, %v470
      %480 = vst.msk [vmem:[%s478 + $0x11] sm:$0xff] %vm386, %v471
      %481 = vst.msk [vmem:[%s478 + $0x21] sm:$0xff] %vm386, %v472
      %482 = vst.msk [vmem:[%s478 + $0x31] sm:$0xff] %vm386, %v473
      %483 = vst.msk [vmem:[%s478 + $0x41] sm:$0xff] %vm386, %v474
      %484 = vst.msk [vmem:[%s478 + $0x51] sm:$0xff] %vm386, %v475
      %485 = vst.msk [vmem:[%s478 + $0x61] sm:$0xff] %vm386, %v476
      %486 = vst.msk [vmem:[%s478 + $0x71] sm:$0xff] %vm386, %v477
      %v487 = vld [vmem:[#allocation2] sm:$0xff]
      %v488 = vld [vmem:[#allocation2 + $0x10] sm:$0xff]
      %v489 = vld [vmem:[#allocation2 + $0x20] sm:$0xff]
      %v490 = vld [vmem:[#allocation2 + $0x30] sm:$0xff]
      %v491 = vld [vmem:[#allocation2 + $0x40] sm:$0xff]
      %v492 = vld [vmem:[#allocation2 + $0x50] sm:$0xff]
      %v493 = vld [vmem:[#allocation2 + $0x60] sm:$0xff]
      %v494 = vld [vmem:[#allocation2 + $0x70] sm:$0xff]
      %v495 = vpack.c.bf16 %v487, %v487
      %v496 = vpack.c.bf16 %v488, %v488
      %v497 = vpack.c.bf16 %v489, %v489
      %v498 = vpack.c.bf16 %v490, %v490
      %v499 = vpack.c.bf16 %v491, %v491
      %v500 = vpack.c.bf16 %v492, %v492
      %v501 = vpack.c.bf16 %v493, %v493
      %v502 = vpack.c.bf16 %v494, %v494
      %vm503 = vcmask 27648
      %504 = vst.msk [vmem:[#allocation5] sm:$0xf] %vm503, %v495
      %505 = vst.msk [vmem:[#allocation5 + $0x4] sm:$0xf] %vm503, %v496
      %506 = vst.msk [vmem:[#allocation5 + $0x8] sm:$0xf] %vm503, %v497
      %507 = vst.msk [vmem:[#allocation5 + $0xc] sm:$0xf] %vm503, %v498
      %508 = vst.msk [vmem:[#allocation5 + $0x10] sm:$0xf] %vm503, %v499
      %509 = vst.msk [vmem:[#allocation5 + $0x14] sm:$0xf] %vm503, %v500
      %510 = vst.msk [vmem:[#allocation5 + $0x18] sm:$0xf] %vm503, %v501
      %511 = vst.msk [vmem:[#allocation5 + $0x1c] sm:$0xf] %vm503, %v502
      %v512 = vld [vmem:[#allocation2 + $0x1] sm:$0xff]
      %v513 = vld [vmem:[#allocation2 + $0x11] sm:$0xff]
      %v514 = vld [vmem:[#allocation2 + $0x21] sm:$0xff]
      %v515 = vld [vmem:[#allocation2 + $0x31] sm:$0xff]
      %v516 = vld [vmem:[#allocation2 + $0x41] sm:$0xff]
      %v517 = vld [vmem:[#allocation2 + $0x51] sm:$0xff]
      %v518 = vld [vmem:[#allocation2 + $0x61] sm:$0xff]
      %v519 = vld [vmem:[#allocation2 + $0x71] sm:$0xff]
      %v520 = vpack.c.bf16 %v512, %v512
      %v521 = vpack.c.bf16 %v513, %v513
      %v522 = vpack.c.bf16 %v514, %v514
      %v523 = vpack.c.bf16 %v515, %v515
      %v524 = vpack.c.bf16 %v516, %v516
      %v525 = vpack.c.bf16 %v517, %v517
      %v526 = vpack.c.bf16 %v518, %v518
      %v527 = vpack.c.bf16 %v519, %v519
      %536 = vrot.lane.b32.xlu0 %v520, 4
      %v537 = vpop.permute.xlu0 %536
      %538 = vrot.lane.b32.xlu0 %v521, 4
      %v539 = vpop.permute.xlu0 %538
      %540 = vrot.lane.b32.xlu0 %v522, 4
      %v541 = vpop.permute.xlu0 %540
      %542 = vrot.lane.b32.xlu0 %v523, 4
      %v543 = vpop.permute.xlu0 %542
      %544 = vrot.lane.b32.xlu0 %v524, 4
      %v545 = vpop.permute.xlu0 %544
      %546 = vrot.lane.b32.xlu0 %v525, 4
      %v547 = vpop.permute.xlu0 %546
      %548 = vrot.lane.b32.xlu0 %v526, 4
      %v549 = vpop.permute.xlu0 %548
      %550 = vrot.lane.b32.xlu0 %v527, 4
      %v551 = vpop.permute.xlu0 %550
      %vm560 = vcmask 60448
      %561 = vst.msk [vmem:[#allocation5] sm:$0xf] %vm560, %v537
      %562 = vst.msk [vmem:[#allocation5 + $0x4] sm:$0xf] %vm560, %v539
      %563 = vst.msk [vmem:[#allocation5 + $0x8] sm:$0xf] %vm560, %v541
      %564 = vst.msk [vmem:[#allocation5 + $0xc] sm:$0xf] %vm560, %v543
      %565 = vst.msk [vmem:[#allocation5 + $0x10] sm:$0xf] %vm560, %v545
      %566 = vst.msk [vmem:[#allocation5 + $0x14] sm:$0xf] %vm560, %v547
      %567 = vst.msk [vmem:[#allocation5 + $0x18] sm:$0xf] %vm560, %v549
      %568 = vst.msk [vmem:[#allocation5 + $0x1c] sm:$0xf] %vm560, %v551
      %v569 = vld [vmem:[#allocation2 + $0x2] sm:$0xff]
      %v570 = vld [vmem:[#allocation2 + $0x12] sm:$0xff]
      %v571 = vld [vmem:[#allocation2 + $0x22] sm:$0xff]
      %v572 = vld [vmem:[#allocation2 + $0x32] sm:$0xff]
      %v573 = vld [vmem:[#allocation2 + $0x42] sm:$0xff]
      %v574 = vld [vmem:[#allocation2 + $0x52] sm:$0xff]
      %v575 = vld [vmem:[#allocation2 + $0x62] sm:$0xff]
      %v576 = vld [vmem:[#allocation2 + $0x72] sm:$0xff]
      %v577 = vpack.c.bf16 %v569, %v569
      %v578 = vpack.c.bf16 %v570, %v570
      %v579 = vpack.c.bf16 %v571, %v571
      %v580 = vpack.c.bf16 %v572, %v572
      %v581 = vpack.c.bf16 %v573, %v573
      %v582 = vpack.c.bf16 %v574, %v574
      %v583 = vpack.c.bf16 %v575, %v575
      %v584 = vpack.c.bf16 %v576, %v576
      %593 = vrot.lane.b32.xlu0 %v577, 8
      %v594 = vpop.permute.xlu0 %593
      %595 = vrot.lane.b32.xlu0 %v578, 8
      %v596 = vpop.permute.xlu0 %595
      %597 = vrot.lane.b32.xlu0 %v579, 8
      %v598 = vpop.permute.xlu0 %597
      %599 = vrot.lane.b32.xlu0 %v580, 8
      %v600 = vpop.permute.xlu0 %599
      %601 = vrot.lane.b32.xlu0 %v581, 8
      %v602 = vpop.permute.xlu0 %601
      %603 = vrot.lane.b32.xlu0 %v582, 8
      %v604 = vpop.permute.xlu0 %603
      %605 = vrot.lane.b32.xlu0 %v583, 8
      %v606 = vpop.permute.xlu0 %605
      %607 = vrot.lane.b32.xlu0 %v584, 8
      %v608 = vpop.permute.xlu0 %607
      %vm617 = vcmask 93248
      %618 = vst.msk [vmem:[#allocation5] sm:$0xf] %vm617, %v594
      %619 = vst.msk [vmem:[#allocation5 + $0x4] sm:$0xf] %vm617, %v596
      %620 = vst.msk [vmem:[#allocation5 + $0x8] sm:$0xf] %vm617, %v598
      %621 = vst.msk [vmem:[#allocation5 + $0xc] sm:$0xf] %vm617, %v600
      %622 = vst.msk [vmem:[#allocation5 + $0x10] sm:$0xf] %vm617, %v602
      %623 = vst.msk [vmem:[#allocation5 + $0x14] sm:$0xf] %vm617, %v604
      %624 = vst.msk [vmem:[#allocation5 + $0x18] sm:$0xf] %vm617, %v606
      %625 = vst.msk [vmem:[#allocation5 + $0x1c] sm:$0xf] %vm617, %v608
      %v626 = vld [vmem:[%s478] sm:$0xff]
      %v627 = vld [vmem:[%s478 + $0x10] sm:$0xff]
      %v628 = vld [vmem:[%s478 + $0x20] sm:$0xff]
      %v629 = vld [vmem:[%s478 + $0x30] sm:$0xff]
      %v630 = vld [vmem:[%s478 + $0x40] sm:$0xff]
      %v631 = vld [vmem:[%s478 + $0x50] sm:$0xff]
      %v632 = vld [vmem:[%s478 + $0x60] sm:$0xff]
      %v633 = vld [vmem:[%s478 + $0x70] sm:$0xff]
      %v634 = vpack.c.bf16 %v626, %v626
      %v635 = vpack.c.bf16 %v627, %v627
      %v636 = vpack.c.bf16 %v628, %v628
      %v637 = vpack.c.bf16 %v629, %v629
      %v638 = vpack.c.bf16 %v630, %v630
      %v639 = vpack.c.bf16 %v631, %v631
      %v640 = vpack.c.bf16 %v632, %v632
      %v641 = vpack.c.bf16 %v633, %v633
      %650 = vrot.lane.b32.xlu0 %v634, 12
      %v651 = vpop.permute.xlu0 %650
      %652 = vrot.lane.b32.xlu0 %v635, 12
      %v653 = vpop.permute.xlu0 %652
      %654 = vrot.lane.b32.xlu0 %v636, 12
      %v655 = vpop.permute.xlu0 %654
      %656 = vrot.lane.b32.xlu0 %v637, 12
      %v657 = vpop.permute.xlu0 %656
      %658 = vrot.lane.b32.xlu0 %v638, 12
      %v659 = vpop.permute.xlu0 %658
      %660 = vrot.lane.b32.xlu0 %v639, 12
      %v661 = vpop.permute.xlu0 %660
      %662 = vrot.lane.b32.xlu0 %v640, 12
      %v663 = vpop.permute.xlu0 %662
      %664 = vrot.lane.b32.xlu0 %v641, 12
      %v665 = vpop.permute.xlu0 %664
      %vm674 = vcmask 126048
      %675 = vst.msk [vmem:[#allocation5] sm:$0xf] %vm674, %v651
      %676 = vst.msk [vmem:[#allocation5 + $0x4] sm:$0xf] %vm674, %v653
      %677 = vst.msk [vmem:[#allocation5 + $0x8] sm:$0xf] %vm674, %v655
      %678 = vst.msk [vmem:[#allocation5 + $0xc] sm:$0xf] %vm674, %v657
      %679 = vst.msk [vmem:[#allocation5 + $0x10] sm:$0xf] %vm674, %v659
      %680 = vst.msk [vmem:[#allocation5 + $0x14] sm:$0xf] %vm674, %v661
      %681 = vst.msk [vmem:[#allocation5 + $0x18] sm:$0xf] %vm674, %v663
      %682 = vst.msk [vmem:[#allocation5 + $0x1c] sm:$0xf] %vm674, %v665
      %v683 = vld [vmem:[%s478 + $0x1] sm:$0xff]
      %v684 = vld [vmem:[%s478 + $0x11] sm:$0xff]
      %v685 = vld [vmem:[%s478 + $0x21] sm:$0xff]
      %v686 = vld [vmem:[%s478 + $0x31] sm:$0xff]
      %v687 = vld [vmem:[%s478 + $0x41] sm:$0xff]
      %v688 = vld [vmem:[%s478 + $0x51] sm:$0xff]
      %v689 = vld [vmem:[%s478 + $0x61] sm:$0xff]
      %v690 = vld [vmem:[%s478 + $0x71] sm:$0xff]
      %v691 = vpack.c.bf16 %v683, %v683
      %v692 = vpack.c.bf16 %v684, %v684
      %v693 = vpack.c.bf16 %v685, %v685
      %v694 = vpack.c.bf16 %v686, %v686
      %v695 = vpack.c.bf16 %v687, %v687
      %v696 = vpack.c.bf16 %v688, %v688
      %v697 = vpack.c.bf16 %v689, %v689
      %v698 = vpack.c.bf16 %v690, %v690
      %707 = vrot.lane.b32.xlu0 %v691, 16
      %v708 = vpop.permute.xlu0 %707
      %709 = vrot.lane.b32.xlu0 %v692, 16
      %v710 = vpop.permute.xlu0 %709
      %711 = vrot.lane.b32.xlu0 %v693, 16
      %v712 = vpop.permute.xlu0 %711
      %713 = vrot.lane.b32.xlu0 %v694, 16
      %v714 = vpop.permute.xlu0 %713
      %715 = vrot.lane.b32.xlu0 %v695, 16
      %v716 = vpop.permute.xlu0 %715
      %717 = vrot.lane.b32.xlu0 %v696, 16
      %v718 = vpop.permute.xlu0 %717
      %719 = vrot.lane.b32.xlu0 %v697, 16
      %v720 = vpop.permute.xlu0 %719
      %721 = vrot.lane.b32.xlu0 %v698, 16
      %v722 = vpop.permute.xlu0 %721
      %vm731 = vcmask 158848
      %732 = vst.msk [vmem:[#allocation5] sm:$0xf] %vm731, %v708
      %733 = vst.msk [vmem:[#allocation5 + $0x4] sm:$0xf] %vm731, %v710
      %734 = vst.msk [vmem:[#allocation5 + $0x8] sm:$0xf] %vm731, %v712
      %735 = vst.msk [vmem:[#allocation5 + $0xc] sm:$0xf] %vm731, %v714
      %736 = vst.msk [vmem:[#allocation5 + $0x10] sm:$0xf] %vm731, %v716
      %737 = vst.msk [vmem:[#allocation5 + $0x14] sm:$0xf] %vm731, %v718
      %738 = vst.msk [vmem:[#allocation5 + $0x18] sm:$0xf] %vm731, %v720
      %739 = vst.msk [vmem:[#allocation5 + $0x1c] sm:$0xf] %vm731, %v722
      %v740 = vld [vmem:[%s478 + $0x2] sm:$0xff]
      %v741 = vld [vmem:[%s478 + $0x12] sm:$0xff]
      %v742 = vld [vmem:[%s478 + $0x22] sm:$0xff]
      %v743 = vld [vmem:[%s478 + $0x32] sm:$0xff]
      %v744 = vld [vmem:[%s478 + $0x42] sm:$0xff]
      %v745 = vld [vmem:[%s478 + $0x52] sm:$0xff]
      %v746 = vld [vmem:[%s478 + $0x62] sm:$0xff]
      %v747 = vld [vmem:[%s478 + $0x72] sm:$0xff]
      %v748 = vpack.c.bf16 %v740, %v740
      %v749 = vpack.c.bf16 %v741, %v741
      %v750 = vpack.c.bf16 %v742, %v742
      %v751 = vpack.c.bf16 %v743, %v743
      %v752 = vpack.c.bf16 %v744, %v744
      %v753 = vpack.c.bf16 %v745, %v745
      %v754 = vpack.c.bf16 %v746, %v746
      %v755 = vpack.c.bf16 %v747, %v747
      %764 = vrot.lane.b32.xlu0 %v748, 20
      %v765 = vpop.permute.xlu0 %764
      %766 = vrot.lane.b32.xlu0 %v749, 20
      %v767 = vpop.permute.xlu0 %766
      %768 = vrot.lane.b32.xlu0 %v750, 20
      %v769 = vpop.permute.xlu0 %768
      %770 = vrot.lane.b32.xlu0 %v751, 20
      %v771 = vpop.permute.xlu0 %770
      %772 = vrot.lane.b32.xlu0 %v752, 20
      %v773 = vpop.permute.xlu0 %772
      %774 = vrot.lane.b32.xlu0 %v753, 20
      %v775 = vpop.permute.xlu0 %774
      %776 = vrot.lane.b32.xlu0 %v754, 20
      %v777 = vpop.permute.xlu0 %776
      %778 = vrot.lane.b32.xlu0 %v755, 20
      %v779 = vpop.permute.xlu0 %778
      %vm788 = vcmask 191648
      %789 = vst.msk [vmem:[#allocation5] sm:$0xf] %vm788, %v765
      %790 = vst.msk [vmem:[#allocation5 + $0x4] sm:$0xf] %vm788, %v767
      %791 = vst.msk [vmem:[#allocation5 + $0x8] sm:$0xf] %vm788, %v769
      %792 = vst.msk [vmem:[#allocation5 + $0xc] sm:$0xf] %vm788, %v771
      %793 = vst.msk [vmem:[#allocation5 + $0x10] sm:$0xf] %vm788, %v773
      %794 = vst.msk [vmem:[#allocation5 + $0x14] sm:$0xf] %vm788, %v775
      %795 = vst.msk [vmem:[#allocation5 + $0x18] sm:$0xf] %vm788, %v777
      %796 = vst.msk [vmem:[#allocation5 + $0x1c] sm:$0xf] %vm788, %v779
      %s797 = scalar_lea.vmem [#allocation2], 32
      %v798 = vld [vmem:[%s797] sm:$0xff]
      %v799 = vld [vmem:[%s797 + $0x10] sm:$0xff]
      %v800 = vld [vmem:[%s797 + $0x20] sm:$0xff]
      %v801 = vld [vmem:[%s797 + $0x30] sm:$0xff]
      %v802 = vld [vmem:[%s797 + $0x40] sm:$0xff]
      %v803 = vld [vmem:[%s797 + $0x50] sm:$0xff]
      %v804 = vld [vmem:[%s797 + $0x60] sm:$0xff]
      %v805 = vld [vmem:[%s797 + $0x70] sm:$0xff]
      %v806 = vpack.c.bf16 %v798, %v798
      %v807 = vpack.c.bf16 %v799, %v799
      %v808 = vpack.c.bf16 %v800, %v800
      %v809 = vpack.c.bf16 %v801, %v801
      %v810 = vpack.c.bf16 %v802, %v802
      %v811 = vpack.c.bf16 %v803, %v803
      %v812 = vpack.c.bf16 %v804, %v804
      %v813 = vpack.c.bf16 %v805, %v805
      %822 = vrot.lane.b32.xlu0 %v806, 24
      %v823 = vpop.permute.xlu0 %822
      %824 = vrot.lane.b32.xlu0 %v807, 24
      %v825 = vpop.permute.xlu0 %824
      %826 = vrot.lane.b32.xlu0 %v808, 24
      %v827 = vpop.permute.xlu0 %826
      %828 = vrot.lane.b32.xlu0 %v809, 24
      %v829 = vpop.permute.xlu0 %828
      %830 = vrot.lane.b32.xlu0 %v810, 24
      %v831 = vpop.permute.xlu0 %830
      %832 = vrot.lane.b32.xlu0 %v811, 24
      %v833 = vpop.permute.xlu0 %832
      %834 = vrot.lane.b32.xlu0 %v812, 24
      %v835 = vpop.permute.xlu0 %834
      %836 = vrot.lane.b32.xlu0 %v813, 24
      %v837 = vpop.permute.xlu0 %836
      %vm846 = vcmask 224448
      %847 = vst.msk [vmem:[#allocation5] sm:$0xf] %vm846, %v823
      %848 = vst.msk [vmem:[#allocation5 + $0x4] sm:$0xf] %vm846, %v825
      %849 = vst.msk [vmem:[#allocation5 + $0x8] sm:$0xf] %vm846, %v827
      %850 = vst.msk [vmem:[#allocation5 + $0xc] sm:$0xf] %vm846, %v829
      %851 = vst.msk [vmem:[#allocation5 + $0x10] sm:$0xf] %vm846, %v831
      %852 = vst.msk [vmem:[#allocation5 + $0x14] sm:$0xf] %vm846, %v833
      %853 = vst.msk [vmem:[#allocation5 + $0x18] sm:$0xf] %vm846, %v835
      %854 = vst.msk [vmem:[#allocation5 + $0x1c] sm:$0xf] %vm846, %v837
      %v855 = vld [vmem:[%s797 + $0x1] sm:$0xff]
      %v856 = vld [vmem:[%s797 + $0x11] sm:$0xff]
      %v857 = vld [vmem:[%s797 + $0x21] sm:$0xff]
      %v858 = vld [vmem:[%s797 + $0x31] sm:$0xff]
      %v859 = vld [vmem:[%s797 + $0x41] sm:$0xff]
      %v860 = vld [vmem:[%s797 + $0x51] sm:$0xff]
      %v861 = vld [vmem:[%s797 + $0x61] sm:$0xff]
      %v862 = vld [vmem:[%s797 + $0x71] sm:$0xff]
      %v863 = vpack.c.bf16 %v855, %v855
      %v864 = vpack.c.bf16 %v856, %v856
      %v865 = vpack.c.bf16 %v857, %v857
      %v866 = vpack.c.bf16 %v858, %v858
      %v867 = vpack.c.bf16 %v859, %v859
      %v868 = vpack.c.bf16 %v860, %v860
      %v869 = vpack.c.bf16 %v861, %v861
      %v870 = vpack.c.bf16 %v862, %v862
      %879 = vrot.lane.b32.xlu0 %v863, 28
      %v880 = vpop.permute.xlu0 %879
      %881 = vrot.lane.b32.xlu0 %v864, 28
      %v882 = vpop.permute.xlu0 %881
      %883 = vrot.lane.b32.xlu0 %v865, 28
      %v884 = vpop.permute.xlu0 %883
      %885 = vrot.lane.b32.xlu0 %v866, 28
      %v886 = vpop.permute.xlu0 %885
      %887 = vrot.lane.b32.xlu0 %v867, 28
      %v888 = vpop.permute.xlu0 %887
      %889 = vrot.lane.b32.xlu0 %v868, 28
      %v890 = vpop.permute.xlu0 %889
      %891 = vrot.lane.b32.xlu0 %v869, 28
      %v892 = vpop.permute.xlu0 %891
      %893 = vrot.lane.b32.xlu0 %v870, 28
      %v894 = vpop.permute.xlu0 %893
      %vm903 = vcmask 257248
      %904 = vst.msk [vmem:[#allocation5] sm:$0xf] %vm903, %v880
      %905 = vst.msk [vmem:[#allocation5 + $0x4] sm:$0xf] %vm903, %v882
      %906 = vst.msk [vmem:[#allocation5 + $0x8] sm:$0xf] %vm903, %v884
      %907 = vst.msk [vmem:[#allocation5 + $0xc] sm:$0xf] %vm903, %v886
      %908 = vst.msk [vmem:[#allocation5 + $0x10] sm:$0xf] %vm903, %v888
      %909 = vst.msk [vmem:[#allocation5 + $0x14] sm:$0xf] %vm903, %v890
      %910 = vst.msk [vmem:[#allocation5 + $0x18] sm:$0xf] %vm903, %v892
      %911 = vst.msk [vmem:[#allocation5 + $0x1c] sm:$0xf] %vm903, %v894
      %v912 = vld [vmem:[%s797 + $0x2] sm:$0xff]
      %v913 = vld [vmem:[%s797 + $0x12] sm:$0xff]
      %v914 = vld [vmem:[%s797 + $0x22] sm:$0xff]
      %v915 = vld [vmem:[%s797 + $0x32] sm:$0xff]
      %v916 = vld [vmem:[%s797 + $0x42] sm:$0xff]
      %v917 = vld [vmem:[%s797 + $0x52] sm:$0xff]
      %v918 = vld [vmem:[%s797 + $0x62] sm:$0xff]
      %v919 = vld [vmem:[%s797 + $0x72] sm:$0xff]
      %v920 = vpack.c.bf16 %v912, %v912
      %v921 = vpack.c.bf16 %v913, %v913
      %v922 = vpack.c.bf16 %v914, %v914
      %v923 = vpack.c.bf16 %v915, %v915
      %v924 = vpack.c.bf16 %v916, %v916
      %v925 = vpack.c.bf16 %v917, %v917
      %v926 = vpack.c.bf16 %v918, %v918
      %v927 = vpack.c.bf16 %v919, %v919
      %936 = vrot.lane.b32.xlu0 %v920, 32
      %v937 = vpop.permute.xlu0 %936
      %938 = vrot.lane.b32.xlu0 %v921, 32
      %v939 = vpop.permute.xlu0 %938
      %940 = vrot.lane.b32.xlu0 %v922, 32
      %v941 = vpop.permute.xlu0 %940
      %942 = vrot.lane.b32.xlu0 %v923, 32
      %v943 = vpop.permute.xlu0 %942
      %944 = vrot.lane.b32.xlu0 %v924, 32
      %v945 = vpop.permute.xlu0 %944
      %946 = vrot.lane.b32.xlu0 %v925, 32
      %v947 = vpop.permute.xlu0 %946
      %948 = vrot.lane.b32.xlu0 %v926, 32
      %v949 = vpop.permute.xlu0 %948
      %950 = vrot.lane.b32.xlu0 %v927, 32
      %v951 = vpop.permute.xlu0 %950
      %vm960 = vcmask 290048
      %961 = vst.msk [vmem:[#allocation5] sm:$0xf] %vm960, %v937
      %962 = vst.msk [vmem:[#allocation5 + $0x4] sm:$0xf] %vm960, %v939
      %963 = vst.msk [vmem:[#allocation5 + $0x8] sm:$0xf] %vm960, %v941
      %964 = vst.msk [vmem:[#allocation5 + $0xc] sm:$0xf] %vm960, %v943
      %965 = vst.msk [vmem:[#allocation5 + $0x10] sm:$0xf] %vm960, %v945
      %966 = vst.msk [vmem:[#allocation5 + $0x14] sm:$0xf] %vm960, %v947
      %967 = vst.msk [vmem:[#allocation5 + $0x18] sm:$0xf] %vm960, %v949
      %968 = vst.msk [vmem:[#allocation5 + $0x1c] sm:$0xf] %vm960, %v951
      %v969 = vld [vmem:[#allocation5] sm:$0xf]
      %v970 = vld [vmem:[#allocation5 + $0x4] sm:$0xf]
      %v971 = vld [vmem:[#allocation5 + $0x8] sm:$0xf]
      %v972 = vld [vmem:[#allocation5 + $0xc] sm:$0xf]
      %v973 = vld [vmem:[#allocation5 + $0x10] sm:$0xf]
      %v974 = vld [vmem:[#allocation5 + $0x14] sm:$0xf]
      %v975 = vld [vmem:[#allocation5 + $0x18] sm:$0xf]
      %v976 = vld [vmem:[#allocation5 + $0x1c] sm:$0xf]
      %v977 = vld [vmem:[%s1] sm:$0xf]
      %v978 = vld [vmem:[%s1 + $0x4] sm:$0xf]
      %v979 = vld [vmem:[%s1 + $0x8] sm:$0xf]
      %v980 = vld [vmem:[%s1 + $0xc] sm:$0xf]
      %v981 = vld [vmem:[%s1 + $0x10] sm:$0x3]
      %v982 = vld [vmem:[%s2] sm:$0x1]
      %v984 = vperm.slane %v982, 0
      %v994 = vunpack.c.l.b16 %v969
      %v995 = vunpack.c.l.b16 %v970
      %v996 = vunpack.c.l.b16 %v971
      %v997 = vunpack.c.l.b16 %v972
      %v998 = vunpack.c.l.b16 %v973
      %v999 = vunpack.c.l.b16 %v974
      %v1000 = vunpack.c.l.b16 %v975
      %v1001 = vunpack.c.l.b16 %v976
      %v1002 = vpack.c.b16 %v995, %v994
      %v1003 = vpack.c.b16 %v997, %v996
      %v1004 = vpack.c.b16 %v999, %v998
      %v1005 = vpack.c.b16 %v1001, %v1000
      %v1011 = vunpack.c.l.b16 %v977
      %v1012 = vunpack.c.l.b16 %v978
      %v1013 = vunpack.c.l.b16 %v979
      %v1014 = vunpack.c.l.b16 %v980
      %v1015 = vunpack.c.l.b16 %v981
      %v1016 = vpack.c.b16 %v1012, %v1011
      %v1017 = vpack.c.b16 %v1014, %v1013
      %v1018 = vpack.c.b16 %v1015, %v1015
      %vm1021 = vcmask 293888
      %v1023 = vsel %vm1021, %v1002, 0
      %v1026 = vsel %vm1021, %v1003, 0
      %v1029 = vsel %vm1021, %v1004, 0
      %v1032 = vsel %vm1021, %v1005, 0
      %vm1034 = vcmask 1041408
      %v1036 = vsel %vm1034, %v1018, 0
      %1038 = vmatpush.bf16.msra.mxu0 0
      %1039 = vmatpush.bf16.msra.mxu0 0
      %1040 = vmatpush.bf16.msra.mxu0 0
      %1041 = vmatpush.bf16.msra.mxu0 0
      %1042 = vmatpush.bf16.msra.mxu0 0
      %1043 = vmatpush.bf16.msra.mxu0 %v1036
      %1044 = vmatpush.bf16.msra.mxu0 %v1017
      %1045 = vmatpush.bf16.msra.mxu0 %v1016
      %1046 = vmatmul.bf16.gmra.mxu0 %v1023
      %v1047 = vpop.f32.mrf.mxu0
      %v1048 = vadd.f32 %v984, %v1047
      %v1049 = vpop.f32.mrf.mxu0
      %v1050 = vadd.f32 %v984, %v1049
      %1051 = vmatmul.bf16.gmra.mxu0 %v1026
      %v1052 = vpop.f32.mrf.mxu0
      %v1053 = vadd.f32 %v984, %v1052
      %v1054 = vpop.f32.mrf.mxu0
      %v1055 = vadd.f32 %v984, %v1054
      %1056 = vmatmul.bf16.gmra.mxu0 %v1029
      %v1057 = vpop.f32.mrf.mxu0
      %v1058 = vadd.f32 %v984, %v1057
      %v1059 = vpop.f32.mrf.mxu0
      %v1060 = vadd.f32 %v984, %v1059
      %1061 = vmatmul.bf16.gmra.mxu0 %v1032
      %v1062 = vpop.f32.mrf.mxu0
      %v1063 = vadd.f32 %v984, %v1062
      %v1064 = vpop.f32.mrf.mxu0
      %v1065 = vadd.f32 %v984, %v1064
      %1066 = vdwg.mxu0
      %v1067 = vmax.f32 %v1048, 0.0
      %v1068 = vmax.f32 %v1050, 0.0
      %v1069 = vmax.f32 %v1053, 0.0
      %v1070 = vmax.f32 %v1055, 0.0
      %v1071 = vmax.f32 %v1058, 0.0
      %v1072 = vmax.f32 %v1060, 0.0
      %v1073 = vmax.f32 %v1063, 0.0
      %v1074 = vmax.f32 %v1065, 0.0
      %s1075 = scalar_lea.vmem [#allocation3], 16
      %1076 = vst.msk [vmem:[%s1075 + $0x1] sm:$0xff] %vm414, %v1067
      %1077 = vst.msk [vmem:[%s1075 + $0x11] sm:$0xff] %vm414, %v1068
      %1078 = vst.msk [vmem:[%s1075 + $0x21] sm:$0xff] %vm414, %v1069
      %1079 = vst.msk [vmem:[%s1075 + $0x31] sm:$0xff] %vm414, %v1070
      %1080 = vst.msk [vmem:[%s1075 + $0x41] sm:$0xff] %vm414, %v1071
      %1081 = vst.msk [vmem:[%s1075 + $0x51] sm:$0xff] %vm414, %v1072
      %1082 = vst.msk [vmem:[%s1075 + $0x61] sm:$0xff] %vm414, %v1073
      %1083 = vst.msk [vmem:[%s1075 + $0x71] sm:$0xff] %vm414, %v1074
      %v1084 = vld [vmem:[#allocation3] sm:$0xff]
      %v1085 = vld [vmem:[#allocation3 + $0x10] sm:$0xff]
      %v1086 = vld [vmem:[#allocation3 + $0x20] sm:$0xff]
      %v1087 = vld [vmem:[#allocation3 + $0x30] sm:$0xff]
      %v1088 = vld [vmem:[#allocation3 + $0x40] sm:$0xff]
      %v1089 = vld [vmem:[#allocation3 + $0x50] sm:$0xff]
      %v1090 = vld [vmem:[#allocation3 + $0x60] sm:$0xff]
      %v1091 = vld [vmem:[#allocation3 + $0x70] sm:$0xff]
      %v1092 = vpack.c.bf16 %v1084, %v1084
      %v1093 = vpack.c.bf16 %v1085, %v1085
      %v1094 = vpack.c.bf16 %v1086, %v1086
      %v1095 = vpack.c.bf16 %v1087, %v1087
      %v1096 = vpack.c.bf16 %v1088, %v1088
      %v1097 = vpack.c.bf16 %v1089, %v1089
      %v1098 = vpack.c.bf16 %v1090, %v1090
      %v1099 = vpack.c.bf16 %v1091, %v1091
      %vm1100 = vcmask 125952
      %1101 = vst.msk [vmem:[#allocation6] sm:$0xf] %vm1100, %v1092
      %1102 = vst.msk [vmem:[#allocation6 + $0x8] sm:$0xf] %vm1100, %v1093
      %1103 = vst.msk [vmem:[#allocation6 + $0x10] sm:$0xf] %vm1100, %v1094
      %1104 = vst.msk [vmem:[#allocation6 + $0x18] sm:$0xf] %vm1100, %v1095
      %1105 = vst.msk [vmem:[#allocation6 + $0x20] sm:$0xf] %vm1100, %v1096
      %1106 = vst.msk [vmem:[#allocation6 + $0x28] sm:$0xf] %vm1100, %v1097
      %1107 = vst.msk [vmem:[#allocation6 + $0x30] sm:$0xf] %vm1100, %v1098
      %1108 = vst.msk [vmem:[#allocation6 + $0x38] sm:$0xf] %vm1100, %v1099
      %v1109 = vld [vmem:[#allocation3 + $0x1] sm:$0xff]
      %v1110 = vld [vmem:[#allocation3 + $0x11] sm:$0xff]
      %v1111 = vld [vmem:[#allocation3 + $0x21] sm:$0xff]
      %v1112 = vld [vmem:[#allocation3 + $0x31] sm:$0xff]
      %v1113 = vld [vmem:[#allocation3 + $0x41] sm:$0xff]
      %v1114 = vld [vmem:[#allocation3 + $0x51] sm:$0xff]
      %v1115 = vld [vmem:[#allocation3 + $0x61] sm:$0xff]
      %v1116 = vld [vmem:[#allocation3 + $0x71] sm:$0xff]
      %v1117 = vpack.c.bf16 %v1109, %v1109
      %v1118 = vpack.c.bf16 %v1110, %v1110
      %v1119 = vpack.c.bf16 %v1111, %v1111
      %v1120 = vpack.c.bf16 %v1112, %v1112
      %v1121 = vpack.c.bf16 %v1113, %v1113
      %v1122 = vpack.c.bf16 %v1114, %v1114
      %v1123 = vpack.c.bf16 %v1115, %v1115
      %v1124 = vpack.c.bf16 %v1116, %v1116
      %1133 = vrot.lane.b32.xlu0 %v1117, 16
      %v1134 = vpop.permute.xlu0 %1133
      %1135 = vrot.lane.b32.xlu0 %v1118, 16
      %v1136 = vpop.permute.xlu0 %1135
      %1137 = vrot.lane.b32.xlu0 %v1119, 16
      %v1138 = vpop.permute.xlu0 %1137
      %1139 = vrot.lane.b32.xlu0 %v1120, 16
      %v1140 = vpop.permute.xlu0 %1139
      %1141 = vrot.lane.b32.xlu0 %v1121, 16
      %v1142 = vpop.permute.xlu0 %1141
      %1143 = vrot.lane.b32.xlu0 %v1122, 16
      %v1144 = vpop.permute.xlu0 %1143
      %1145 = vrot.lane.b32.xlu0 %v1123, 16
      %v1146 = vpop.permute.xlu0 %1145
      %1147 = vrot.lane.b32.xlu0 %v1124, 16
      %v1148 = vpop.permute.xlu0 %1147
      %vm1157 = vcmask 257152
      %1158 = vst.msk [vmem:[#allocation6] sm:$0xf] %vm1157, %v1134
      %1159 = vst.msk [vmem:[#allocation6 + $0x8] sm:$0xf] %vm1157, %v1136
      %1160 = vst.msk [vmem:[#allocation6 + $0x10] sm:$0xf] %vm1157, %v1138
      %1161 = vst.msk [vmem:[#allocation6 + $0x18] sm:$0xf] %vm1157, %v1140
      %1162 = vst.msk [vmem:[#allocation6 + $0x20] sm:$0xf] %vm1157, %v1142
      %1163 = vst.msk [vmem:[#allocation6 + $0x28] sm:$0xf] %vm1157, %v1144
      %1164 = vst.msk [vmem:[#allocation6 + $0x30] sm:$0xf] %vm1157, %v1146
      %1165 = vst.msk [vmem:[#allocation6 + $0x38] sm:$0xf] %vm1157, %v1148
      %v1166 = vld [vmem:[#allocation3 + $0x2] sm:$0xff]
      %v1167 = vld [vmem:[#allocation3 + $0x12] sm:$0xff]
      %v1168 = vld [vmem:[#allocation3 + $0x22] sm:$0xff]
      %v1169 = vld [vmem:[#allocation3 + $0x32] sm:$0xff]
      %v1170 = vld [vmem:[#allocation3 + $0x42] sm:$0xff]
      %v1171 = vld [vmem:[#allocation3 + $0x52] sm:$0xff]
      %v1172 = vld [vmem:[#allocation3 + $0x62] sm:$0xff]
      %v1173 = vld [vmem:[#allocation3 + $0x72] sm:$0xff]
      %v1174 = vpack.c.bf16 %v1166, %v1166
      %v1175 = vpack.c.bf16 %v1167, %v1167
      %v1176 = vpack.c.bf16 %v1168, %v1168
      %v1177 = vpack.c.bf16 %v1169, %v1169
      %v1178 = vpack.c.bf16 %v1170, %v1170
      %v1179 = vpack.c.bf16 %v1171, %v1171
      %v1180 = vpack.c.bf16 %v1172, %v1172
      %v1181 = vpack.c.bf16 %v1173, %v1173
      %1190 = vrot.lane.b32.xlu0 %v1174, 32
      %v1191 = vpop.permute.xlu0 %1190
      %1192 = vrot.lane.b32.xlu0 %v1175, 32
      %v1193 = vpop.permute.xlu0 %1192
      %1194 = vrot.lane.b32.xlu0 %v1176, 32
      %v1195 = vpop.permute.xlu0 %1194
      %1196 = vrot.lane.b32.xlu0 %v1177, 32
      %v1197 = vpop.permute.xlu0 %1196
      %1198 = vrot.lane.b32.xlu0 %v1178, 32
      %v1199 = vpop.permute.xlu0 %1198
      %1200 = vrot.lane.b32.xlu0 %v1179, 32
      %v1201 = vpop.permute.xlu0 %1200
      %1202 = vrot.lane.b32.xlu0 %v1180, 32
      %v1203 = vpop.permute.xlu0 %1202
      %1204 = vrot.lane.b32.xlu0 %v1181, 32
      %v1205 = vpop.permute.xlu0 %1204
      %vm1214 = vcmask 388352
      %1215 = vst.msk [vmem:[#allocation6] sm:$0xf] %vm1214, %v1191
      %1216 = vst.msk [vmem:[#allocation6 + $0x8] sm:$0xf] %vm1214, %v1193
      %1217 = vst.msk [vmem:[#allocation6 + $0x10] sm:$0xf] %vm1214, %v1195
      %1218 = vst.msk [vmem:[#allocation6 + $0x18] sm:$0xf] %vm1214, %v1197
      %1219 = vst.msk [vmem:[#allocation6 + $0x20] sm:$0xf] %vm1214, %v1199
      %1220 = vst.msk [vmem:[#allocation6 + $0x28] sm:$0xf] %vm1214, %v1201
      %1221 = vst.msk [vmem:[#allocation6 + $0x30] sm:$0xf] %vm1214, %v1203
      %1222 = vst.msk [vmem:[#allocation6 + $0x38] sm:$0xf] %vm1214, %v1205
      %v1223 = vld [vmem:[%s1075] sm:$0xff]
      %v1224 = vld [vmem:[%s1075 + $0x10] sm:$0xff]
      %v1225 = vld [vmem:[%s1075 + $0x20] sm:$0xff]
      %v1226 = vld [vmem:[%s1075 + $0x30] sm:$0xff]
      %v1227 = vld [vmem:[%s1075 + $0x40] sm:$0xff]
      %v1228 = vld [vmem:[%s1075 + $0x50] sm:$0xff]
      %v1229 = vld [vmem:[%s1075 + $0x60] sm:$0xff]
      %v1230 = vld [vmem:[%s1075 + $0x70] sm:$0xff]
      %v1231 = vpack.c.bf16 %v1223, %v1223
      %v1232 = vpack.c.bf16 %v1224, %v1224
      %v1233 = vpack.c.bf16 %v1225, %v1225
      %v1234 = vpack.c.bf16 %v1226, %v1226
      %v1235 = vpack.c.bf16 %v1227, %v1227
      %v1236 = vpack.c.bf16 %v1228, %v1228
      %v1237 = vpack.c.bf16 %v1229, %v1229
      %v1238 = vpack.c.bf16 %v1230, %v1230
      %1247 = vrot.lane.b32.xlu0 %v1231, 48
      %v1248 = vpop.permute.xlu0 %1247
      %1249 = vrot.lane.b32.xlu0 %v1232, 48
      %v1250 = vpop.permute.xlu0 %1249
      %1251 = vrot.lane.b32.xlu0 %v1233, 48
      %v1252 = vpop.permute.xlu0 %1251
      %1253 = vrot.lane.b32.xlu0 %v1234, 48
      %v1254 = vpop.permute.xlu0 %1253
      %1255 = vrot.lane.b32.xlu0 %v1235, 48
      %v1256 = vpop.permute.xlu0 %1255
      %1257 = vrot.lane.b32.xlu0 %v1236, 48
      %v1258 = vpop.permute.xlu0 %1257
      %1259 = vrot.lane.b32.xlu0 %v1237, 48
      %v1260 = vpop.permute.xlu0 %1259
      %1261 = vrot.lane.b32.xlu0 %v1238, 48
      %v1262 = vpop.permute.xlu0 %1261
      %vm1271 = vcmask 519552
      %1272 = vst.msk [vmem:[#allocation6] sm:$0xf] %vm1271, %v1248
      %1273 = vst.msk [vmem:[#allocation6 + $0x8] sm:$0xf] %vm1271, %v1250
      %1274 = vst.msk [vmem:[#allocation6 + $0x10] sm:$0xf] %vm1271, %v1252
      %1275 = vst.msk [vmem:[#allocation6 + $0x18] sm:$0xf] %vm1271, %v1254
      %1276 = vst.msk [vmem:[#allocation6 + $0x20] sm:$0xf] %vm1271, %v1256
      %1277 = vst.msk [vmem:[#allocation6 + $0x28] sm:$0xf] %vm1271, %v1258
      %1278 = vst.msk [vmem:[#allocation6 + $0x30] sm:$0xf] %vm1271, %v1260
      %1279 = vst.msk [vmem:[#allocation6 + $0x38] sm:$0xf] %vm1271, %v1262
      %v1280 = vld [vmem:[%s1075 + $0x1] sm:$0xff]
      %v1281 = vld [vmem:[%s1075 + $0x11] sm:$0xff]
      %v1282 = vld [vmem:[%s1075 + $0x21] sm:$0xff]
      %v1283 = vld [vmem:[%s1075 + $0x31] sm:$0xff]
      %v1284 = vld [vmem:[%s1075 + $0x41] sm:$0xff]
      %v1285 = vld [vmem:[%s1075 + $0x51] sm:$0xff]
      %v1286 = vld [vmem:[%s1075 + $0x61] sm:$0xff]
      %v1287 = vld [vmem:[%s1075 + $0x71] sm:$0xff]
      %v1288 = vpack.c.bf16 %v1280, %v1280
      %v1289 = vpack.c.bf16 %v1281, %v1281
      %v1290 = vpack.c.bf16 %v1282, %v1282
      %v1291 = vpack.c.bf16 %v1283, %v1283
      %v1292 = vpack.c.bf16 %v1284, %v1284
      %v1293 = vpack.c.bf16 %v1285, %v1285
      %v1294 = vpack.c.bf16 %v1286, %v1286
      %v1295 = vpack.c.bf16 %v1287, %v1287
      %1304 = vrot.lane.b32.xlu0 %v1288, 64
      %v1305 = vpop.permute.xlu0 %1304
      %1306 = vrot.lane.b32.xlu0 %v1289, 64
      %v1307 = vpop.permute.xlu0 %1306
      %1308 = vrot.lane.b32.xlu0 %v1290, 64
      %v1309 = vpop.permute.xlu0 %1308
      %1310 = vrot.lane.b32.xlu0 %v1291, 64
      %v1311 = vpop.permute.xlu0 %1310
      %1312 = vrot.lane.b32.xlu0 %v1292, 64
      %v1313 = vpop.permute.xlu0 %1312
      %1314 = vrot.lane.b32.xlu0 %v1293, 64
      %v1315 = vpop.permute.xlu0 %1314
      %1316 = vrot.lane.b32.xlu0 %v1294, 64
      %v1317 = vpop.permute.xlu0 %1316
      %1318 = vrot.lane.b32.xlu0 %v1295, 64
      %v1319 = vpop.permute.xlu0 %1318
      %vm1328 = vcmask 650752
      %1329 = vst.msk [vmem:[#allocation6] sm:$0xf] %vm1328, %v1305
      %1330 = vst.msk [vmem:[#allocation6 + $0x8] sm:$0xf] %vm1328, %v1307
      %1331 = vst.msk [vmem:[#allocation6 + $0x10] sm:$0xf] %vm1328, %v1309
      %1332 = vst.msk [vmem:[#allocation6 + $0x18] sm:$0xf] %vm1328, %v1311
      %1333 = vst.msk [vmem:[#allocation6 + $0x20] sm:$0xf] %vm1328, %v1313
      %1334 = vst.msk [vmem:[#allocation6 + $0x28] sm:$0xf] %vm1328, %v1315
      %1335 = vst.msk [vmem:[#allocation6 + $0x30] sm:$0xf] %vm1328, %v1317
      %1336 = vst.msk [vmem:[#allocation6 + $0x38] sm:$0xf] %vm1328, %v1319
      %v1337 = vld [vmem:[%s1075 + $0x2] sm:$0xff]
      %v1338 = vld [vmem:[%s1075 + $0x12] sm:$0xff]
      %v1339 = vld [vmem:[%s1075 + $0x22] sm:$0xff]
      %v1340 = vld [vmem:[%s1075 + $0x32] sm:$0xff]
      %v1341 = vld [vmem:[%s1075 + $0x42] sm:$0xff]
      %v1342 = vld [vmem:[%s1075 + $0x52] sm:$0xff]
      %v1343 = vld [vmem:[%s1075 + $0x62] sm:$0xff]
      %v1344 = vld [vmem:[%s1075 + $0x72] sm:$0xff]
      %v1345 = vpack.c.bf16 %v1337, %v1337
      %v1346 = vpack.c.bf16 %v1338, %v1338
      %v1347 = vpack.c.bf16 %v1339, %v1339
      %v1348 = vpack.c.bf16 %v1340, %v1340
      %v1349 = vpack.c.bf16 %v1341, %v1341
      %v1350 = vpack.c.bf16 %v1342, %v1342
      %v1351 = vpack.c.bf16 %v1343, %v1343
      %v1352 = vpack.c.bf16 %v1344, %v1344
      %1361 = vrot.lane.b32.xlu0 %v1345, 80
      %v1362 = vpop.permute.xlu0 %1361
      %1363 = vrot.lane.b32.xlu0 %v1346, 80
      %v1364 = vpop.permute.xlu0 %1363
      %1365 = vrot.lane.b32.xlu0 %v1347, 80
      %v1366 = vpop.permute.xlu0 %1365
      %1367 = vrot.lane.b32.xlu0 %v1348, 80
      %v1368 = vpop.permute.xlu0 %1367
      %1369 = vrot.lane.b32.xlu0 %v1349, 80
      %v1370 = vpop.permute.xlu0 %1369
      %1371 = vrot.lane.b32.xlu0 %v1350, 80
      %v1372 = vpop.permute.xlu0 %1371
      %1373 = vrot.lane.b32.xlu0 %v1351, 80
      %v1374 = vpop.permute.xlu0 %1373
      %1375 = vrot.lane.b32.xlu0 %v1352, 80
      %v1376 = vpop.permute.xlu0 %1375
      %vm1385 = vcmask 781952
      %1386 = vst.msk [vmem:[#allocation6] sm:$0xf] %vm1385, %v1362
      %1387 = vst.msk [vmem:[#allocation6 + $0x8] sm:$0xf] %vm1385, %v1364
      %1388 = vst.msk [vmem:[#allocation6 + $0x10] sm:$0xf] %vm1385, %v1366
      %1389 = vst.msk [vmem:[#allocation6 + $0x18] sm:$0xf] %vm1385, %v1368
      %1390 = vst.msk [vmem:[#allocation6 + $0x20] sm:$0xf] %vm1385, %v1370
      %1391 = vst.msk [vmem:[#allocation6 + $0x28] sm:$0xf] %vm1385, %v1372
      %1392 = vst.msk [vmem:[#allocation6 + $0x30] sm:$0xf] %vm1385, %v1374
      %1393 = vst.msk [vmem:[#allocation6 + $0x38] sm:$0xf] %vm1385, %v1376
      %s1394 = scalar_lea.vmem [#allocation3], 32
      %v1395 = vld [vmem:[%s1394] sm:$0xff]
      %v1396 = vld [vmem:[%s1394 + $0x10] sm:$0xff]
      %v1397 = vld [vmem:[%s1394 + $0x20] sm:$0xff]
      %v1398 = vld [vmem:[%s1394 + $0x30] sm:$0xff]
      %v1399 = vld [vmem:[%s1394 + $0x40] sm:$0xff]
      %v1400 = vld [vmem:[%s1394 + $0x50] sm:$0xff]
      %v1401 = vld [vmem:[%s1394 + $0x60] sm:$0xff]
      %v1402 = vld [vmem:[%s1394 + $0x70] sm:$0xff]
      %v1403 = vpack.c.bf16 %v1395, %v1395
      %v1404 = vpack.c.bf16 %v1396, %v1396
      %v1405 = vpack.c.bf16 %v1397, %v1397
      %v1406 = vpack.c.bf16 %v1398, %v1398
      %v1407 = vpack.c.bf16 %v1399, %v1399
      %v1408 = vpack.c.bf16 %v1400, %v1400
      %v1409 = vpack.c.bf16 %v1401, %v1401
      %v1410 = vpack.c.bf16 %v1402, %v1402
      %1419 = vrot.lane.b32.xlu0 %v1403, 96
      %v1420 = vpop.permute.xlu0 %1419
      %1421 = vrot.lane.b32.xlu0 %v1404, 96
      %v1422 = vpop.permute.xlu0 %1421
      %1423 = vrot.lane.b32.xlu0 %v1405, 96
      %v1424 = vpop.permute.xlu0 %1423
      %1425 = vrot.lane.b32.xlu0 %v1406, 96
      %v1426 = vpop.permute.xlu0 %1425
      %1427 = vrot.lane.b32.xlu0 %v1407, 96
      %v1428 = vpop.permute.xlu0 %1427
      %1429 = vrot.lane.b32.xlu0 %v1408, 96
      %v1430 = vpop.permute.xlu0 %1429
      %1431 = vrot.lane.b32.xlu0 %v1409, 96
      %v1432 = vpop.permute.xlu0 %1431
      %1433 = vrot.lane.b32.xlu0 %v1410, 96
      %v1434 = vpop.permute.xlu0 %1433
      %vm1443 = vcmask 913152
      %1444 = vst.msk [vmem:[#allocation6] sm:$0xf] %vm1443, %v1420
      %1445 = vst.msk [vmem:[#allocation6 + $0x8] sm:$0xf] %vm1443, %v1422
      %1446 = vst.msk [vmem:[#allocation6 + $0x10] sm:$0xf] %vm1443, %v1424
      %1447 = vst.msk [vmem:[#allocation6 + $0x18] sm:$0xf] %vm1443, %v1426
      %1448 = vst.msk [vmem:[#allocation6 + $0x20] sm:$0xf] %vm1443, %v1428
      %1449 = vst.msk [vmem:[#allocation6 + $0x28] sm:$0xf] %vm1443, %v1430
      %1450 = vst.msk [vmem:[#allocation6 + $0x30] sm:$0xf] %vm1443, %v1432
      %1451 = vst.msk [vmem:[#allocation6 + $0x38] sm:$0xf] %vm1443, %v1434
      %v1452 = vld [vmem:[%s1394 + $0x1] sm:$0xff]
      %v1453 = vld [vmem:[%s1394 + $0x11] sm:$0xff]
      %v1454 = vld [vmem:[%s1394 + $0x21] sm:$0xff]
      %v1455 = vld [vmem:[%s1394 + $0x31] sm:$0xff]
      %v1456 = vld [vmem:[%s1394 + $0x41] sm:$0xff]
      %v1457 = vld [vmem:[%s1394 + $0x51] sm:$0xff]
      %v1458 = vld [vmem:[%s1394 + $0x61] sm:$0xff]
      %v1459 = vld [vmem:[%s1394 + $0x71] sm:$0xff]
      %v1460 = vpack.c.bf16 %v1452, %v1452
      %v1461 = vpack.c.bf16 %v1453, %v1453
      %v1462 = vpack.c.bf16 %v1454, %v1454
      %v1463 = vpack.c.bf16 %v1455, %v1455
      %v1464 = vpack.c.bf16 %v1456, %v1456
      %v1465 = vpack.c.bf16 %v1457, %v1457
      %v1466 = vpack.c.bf16 %v1458, %v1458
      %v1467 = vpack.c.bf16 %v1459, %v1459
      %1476 = vrot.lane.b32.xlu0 %v1460, 112
      %v1477 = vpop.permute.xlu0 %1476
      %1478 = vrot.lane.b32.xlu0 %v1461, 112
      %v1479 = vpop.permute.xlu0 %1478
      %1480 = vrot.lane.b32.xlu0 %v1462, 112
      %v1481 = vpop.permute.xlu0 %1480
      %1482 = vrot.lane.b32.xlu0 %v1463, 112
      %v1483 = vpop.permute.xlu0 %1482
      %1484 = vrot.lane.b32.xlu0 %v1464, 112
      %v1485 = vpop.permute.xlu0 %1484
      %1486 = vrot.lane.b32.xlu0 %v1465, 112
      %v1487 = vpop.permute.xlu0 %1486
      %1488 = vrot.lane.b32.xlu0 %v1466, 112
      %v1489 = vpop.permute.xlu0 %1488
      %1490 = vrot.lane.b32.xlu0 %v1467, 112
      %v1491 = vpop.permute.xlu0 %1490
      %vm1500 = vcmask 1044352
      %1501 = vst.msk [vmem:[#allocation6] sm:$0xf] %vm1500, %v1477
      %1502 = vst.msk [vmem:[#allocation6 + $0x8] sm:$0xf] %vm1500, %v1479
      %1503 = vst.msk [vmem:[#allocation6 + $0x10] sm:$0xf] %vm1500, %v1481
      %1504 = vst.msk [vmem:[#allocation6 + $0x18] sm:$0xf] %vm1500, %v1483
      %1505 = vst.msk [vmem:[#allocation6 + $0x20] sm:$0xf] %vm1500, %v1485
      %1506 = vst.msk [vmem:[#allocation6 + $0x28] sm:$0xf] %vm1500, %v1487
      %1507 = vst.msk [vmem:[#allocation6 + $0x30] sm:$0xf] %vm1500, %v1489
      %1508 = vst.msk [vmem:[#allocation6 + $0x38] sm:$0xf] %vm1500, %v1491
      %v1509 = vld [vmem:[%s1394 + $0x2] sm:$0xff]
      %v1510 = vld [vmem:[%s1394 + $0x12] sm:$0xff]
      %v1511 = vld [vmem:[%s1394 + $0x22] sm:$0xff]
      %v1512 = vld [vmem:[%s1394 + $0x32] sm:$0xff]
      %v1513 = vld [vmem:[%s1394 + $0x42] sm:$0xff]
      %v1514 = vld [vmem:[%s1394 + $0x52] sm:$0xff]
      %v1515 = vld [vmem:[%s1394 + $0x62] sm:$0xff]
      %v1516 = vld [vmem:[%s1394 + $0x72] sm:$0xff]
      %v1517 = vpack.c.bf16 %v1509, %v1509
      %v1518 = vpack.c.bf16 %v1510, %v1510
      %v1519 = vpack.c.bf16 %v1511, %v1511
      %v1520 = vpack.c.bf16 %v1512, %v1512
      %v1521 = vpack.c.bf16 %v1513, %v1513
      %v1522 = vpack.c.bf16 %v1514, %v1514
      %v1523 = vpack.c.bf16 %v1515, %v1515
      %v1524 = vpack.c.bf16 %v1516, %v1516
      %1525 = vst.msk [vmem:[#allocation6 + $0x4] sm:$0xf] %vm1100, %v1517
      %1526 = vst.msk [vmem:[#allocation6 + $0xc] sm:$0xf] %vm1100, %v1518
      %1527 = vst.msk [vmem:[#allocation6 + $0x14] sm:$0xf] %vm1100, %v1519
      %1528 = vst.msk [vmem:[#allocation6 + $0x1c] sm:$0xf] %vm1100, %v1520
      %1529 = vst.msk [vmem:[#allocation6 + $0x24] sm:$0xf] %vm1100, %v1521
      %1530 = vst.msk [vmem:[#allocation6 + $0x2c] sm:$0xf] %vm1100, %v1522
      %1531 = vst.msk [vmem:[#allocation6 + $0x34] sm:$0xf] %vm1100, %v1523
      %1532 = vst.msk [vmem:[#allocation6 + $0x3c] sm:$0xf] %vm1100, %v1524
      %v1533 = vld [vmem:[#allocation6] sm:$0xff]
      %v1534 = vld [vmem:[#allocation6 + $0x8] sm:$0xff]
      %v1535 = vld [vmem:[#allocation6 + $0x10] sm:$0xff]
      %v1536 = vld [vmem:[#allocation6 + $0x18] sm:$0xff]
      %v1537 = vld [vmem:[#allocation6 + $0x20] sm:$0xff]
      %v1538 = vld [vmem:[#allocation6 + $0x28] sm:$0xff]
      %v1539 = vld [vmem:[#allocation6 + $0x30] sm:$0xff]
      %v1540 = vld [vmem:[#allocation6 + $0x38] sm:$0xff]
      %v1541 = vld [vmem:[%s3] sm:$0xf]
      %v1542 = vld [vmem:[%s3 + $0x4] sm:$0xf]
      %v1543 = vld [vmem:[%s3 + $0x8] sm:$0xf]
      %v1544 = vld [vmem:[%s3 + $0xc] sm:$0xf]
      %v1545 = vld [vmem:[%s3 + $0x10] sm:$0xf]
      %v1546 = vld [vmem:[%s3 + $0x14] sm:$0xf]
      %v1547 = vld [vmem:[%s3 + $0x18] sm:$0xf]
      %v1548 = vld [vmem:[%s3 + $0x1c] sm:$0xf]
      %v1549 = vld [vmem:[%s3 + $0x20] sm:$0xf]
      %v1550 = vld [vmem:[%s3 + $0x24] sm:$0xf]
      %v1551 = vld [vmem:[%s3 + $0x28] sm:$0xf]
      %v1552 = vld [vmem:[%s3 + $0x2c] sm:$0xf]
      %v1553 = vld [vmem:[%s3 + $0x30] sm:$0xf]
      %v1554 = vld [vmem:[%s3 + $0x34] sm:$0xf]
      %v1555 = vld [vmem:[%s3 + $0x38] sm:$0xf]
      %v1556 = vld [vmem:[%s3 + $0x3c] sm:$0xf]
      %v1557 = vld [vmem:[%s3 + $0x40] sm:$0xf]
      %v1558 = vld [vmem:[%s3 + $0x44] sm:$0xf]
      %v1559 = vld [vmem:[%s4] sm:$0x1]
      %v1561 = vperm.slane %v1559, 0
      %v1571 = vunpack.c.l.b16 %v1533
      %v1572 = vunpack.c.h.b16 %v1533
      %v1573 = vunpack.c.l.b16 %v1534
      %v1574 = vunpack.c.h.b16 %v1534
      %v1575 = vunpack.c.l.b16 %v1535
      %v1576 = vunpack.c.h.b16 %v1535
      %v1577 = vunpack.c.l.b16 %v1536
      %v1578 = vunpack.c.h.b16 %v1536
      %v1579 = vunpack.c.l.b16 %v1537
      %v1580 = vunpack.c.h.b16 %v1537
      %v1581 = vunpack.c.l.b16 %v1538
      %v1582 = vunpack.c.h.b16 %v1538
      %v1583 = vunpack.c.l.b16 %v1539
      %v1584 = vunpack.c.h.b16 %v1539
      %v1585 = vunpack.c.l.b16 %v1540
      %v1586 = vunpack.c.h.b16 %v1540
      %v1587 = vpack.c.b16 %v1573, %v1571
      %v1588 = vpack.c.b16 %v1574, %v1572
      %v1589 = vpack.c.b16 %v1577, %v1575
      %v1590 = vpack.c.b16 %v1578, %v1576
      %v1591 = vpack.c.b16 %v1581, %v1579
      %v1592 = vpack.c.b16 %v1582, %v1580
      %v1593 = vpack.c.b16 %v1585, %v1583
      %v1594 = vpack.c.b16 %v1586, %v1584
      %v1617 = vunpack.c.l.b16 %v1541
      %v1618 = vunpack.c.l.b16 %v1542
      %v1619 = vunpack.c.l.b16 %v1543
      %v1620 = vunpack.c.l.b16 %v1544
      %v1621 = vunpack.c.l.b16 %v1545
      %v1622 = vunpack.c.l.b16 %v1546
      %v1623 = vunpack.c.l.b16 %v1547
      %v1624 = vunpack.c.l.b16 %v1548
      %v1625 = vunpack.c.l.b16 %v1549
      %v1626 = vunpack.c.l.b16 %v1550
      %v1627 = vunpack.c.l.b16 %v1551
      %v1628 = vunpack.c.l.b16 %v1552
      %v1629 = vunpack.c.l.b16 %v1553
      %v1630 = vunpack.c.l.b16 %v1554
      %v1631 = vunpack.c.l.b16 %v1555
      %v1632 = vunpack.c.l.b16 %v1556
      %v1633 = vunpack.c.l.b16 %v1557
      %v1634 = vunpack.c.l.b16 %v1558
      %v1635 = vpack.c.b16 %v1618, %v1617
      %v1636 = vpack.c.b16 %v1620, %v1619
      %v1637 = vpack.c.b16 %v1622, %v1621
      %v1638 = vpack.c.b16 %v1624, %v1623
      %v1639 = vpack.c.b16 %v1626, %v1625
      %v1640 = vpack.c.b16 %v1628, %v1627
      %v1641 = vpack.c.b16 %v1630, %v1629
      %v1642 = vpack.c.b16 %v1632, %v1631
      %v1643 = vpack.c.b16 %v1634, %v1633
      %v1654 = vsel %vm414, %v1588, 0
      %v1657 = vsel %vm414, %v1590, 0
      %v1660 = vsel %vm414, %v1592, 0
      %v1663 = vsel %vm414, %v1594, 0
      %1665 = vmatpush.bf16.msra.mxu0 %v1642
      %1666 = vmatpush.bf16.msra.mxu0 %v1641
      %1667 = vmatpush.bf16.msra.mxu0 %v1640
      %1668 = vmatpush.bf16.msra.mxu0 %v1639
      %1669 = vmatpush.bf16.msra.mxu0 %v1638
      %1670 = vmatpush.bf16.msra.mxu0 %v1637
      %1671 = vmatpush.bf16.msra.mxu0 %v1636
      %1672 = vmatpush.bf16.msra.mxu0 %v1635
      %1673 = vmatmul.bf16.gmra.mxu0 %v1587
      %v1674 = vpop.f32.mrf.mxu0
      %v1675 = vadd.f32 %v1561, %v1674
      %v1676 = vpop.f32.mrf.mxu0
      %v1677 = vadd.f32 %v1561, %v1676
      %1678 = vmatmul.bf16.gmra.mxu0 %v1589
      %v1679 = vpop.f32.mrf.mxu0
      %v1680 = vadd.f32 %v1561, %v1679
      %v1681 = vpop.f32.mrf.mxu0
      %v1682 = vadd.f32 %v1561, %v1681
      %1683 = vmatmul.bf16.gmra.mxu0 %v1591
      %v1684 = vpop.f32.mrf.mxu0
      %v1685 = vadd.f32 %v1561, %v1684
      %v1686 = vpop.f32.mrf.mxu0
      %v1687 = vadd.f32 %v1561, %v1686
      %1688 = vmatmul.bf16.gmra.mxu0 %v1593
      %v1689 = vpop.f32.mrf.mxu0
      %v1690 = vadd.f32 %v1561, %v1689
      %v1691 = vpop.f32.mrf.mxu0
      %v1692 = vadd.f32 %v1561, %v1691
      %1693 = vdwg.mxu0
      %1694 = vmatpush.bf16.msra.mxu0 0
      %1695 = vmatpush.bf16.msra.mxu0 0
      %1696 = vmatpush.bf16.msra.mxu0 0
      %1697 = vmatpush.bf16.msra.mxu0 0
      %1698 = vmatpush.bf16.msra.mxu0 0
      %1699 = vmatpush.bf16.msra.mxu0 0
      %1700 = vmatpush.bf16.msra.mxu0 0
      %1701 = vmatpush.bf16.msra.mxu0 %v1643
      %1702 = vmatmul.bf16.gmra.mxu0 %v1654
      %v1703 = vpop.f32.mrf.mxu0
      %v1704 = vadd.f32 %v1675, %v1703
      %v1705 = vpop.f32.mrf.mxu0
      %v1706 = vadd.f32 %v1677, %v1705
      %1707 = vmatmul.bf16.gmra.mxu0 %v1657
      %v1708 = vpop.f32.mrf.mxu0
      %v1709 = vadd.f32 %v1680, %v1708
      %v1710 = vpop.f32.mrf.mxu0
      %v1711 = vadd.f32 %v1682, %v1710
      %1712 = vmatmul.bf16.gmra.mxu0 %v1660
      %v1713 = vpop.f32.mrf.mxu0
      %v1714 = vadd.f32 %v1685, %v1713
      %v1715 = vpop.f32.mrf.mxu0
      %v1716 = vadd.f32 %v1687, %v1715
      %1717 = vmatmul.bf16.gmra.mxu0 %v1663
      %v1718 = vpop.f32.mrf.mxu0
      %v1719 = vadd.f32 %v1690, %v1718
      %v1720 = vpop.f32.mrf.mxu0
      %v1721 = vadd.f32 %v1692, %v1720
      %1722 = vdwg.mxu0
      %v1723 = vmax.f32 %v1704, 0.0
      %v1724 = vmax.f32 %v1706, 0.0
      %v1725 = vmax.f32 %v1709, 0.0
      %v1726 = vmax.f32 %v1711, 0.0
      %v1727 = vmax.f32 %v1714, 0.0
      %v1728 = vmax.f32 %v1716, 0.0
      %v1729 = vmax.f32 %v1719, 0.0
      %v1730 = vmax.f32 %v1721, 0.0
      %1731 = vst.msk [vmem:[%s1075 + $0x1] sm:$0xff] %vm414, %v1723
      %1732 = vst.msk [vmem:[%s1075 + $0x11] sm:$0xff] %vm414, %v1724
      %1733 = vst.msk [vmem:[%s1075 + $0x21] sm:$0xff] %vm414, %v1725
      %1734 = vst.msk [vmem:[%s1075 + $0x31] sm:$0xff] %vm414, %v1726
      %1735 = vst.msk [vmem:[%s1075 + $0x41] sm:$0xff] %vm414, %v1727
      %1736 = vst.msk [vmem:[%s1075 + $0x51] sm:$0xff] %vm414, %v1728
      %1737 = vst.msk [vmem:[%s1075 + $0x61] sm:$0xff] %vm414, %v1729
      %1738 = vst.msk [vmem:[%s1075 + $0x71] sm:$0xff] %vm414, %v1730
      %v1739 = vld [vmem:[#allocation3] sm:$0xff]
      %v1740 = vld [vmem:[#allocation3 + $0x10] sm:$0xff]
      %v1741 = vld [vmem:[#allocation3 + $0x20] sm:$0xff]
      %v1742 = vld [vmem:[#allocation3 + $0x30] sm:$0xff]
      %v1743 = vld [vmem:[#allocation3 + $0x40] sm:$0xff]
      %v1744 = vld [vmem:[#allocation3 + $0x50] sm:$0xff]
      %v1745 = vld [vmem:[#allocation3 + $0x60] sm:$0xff]
      %v1746 = vld [vmem:[#allocation3 + $0x70] sm:$0xff]
      %v1747 = vpack.c.bf16 %v1739, %v1739
      %v1748 = vpack.c.bf16 %v1740, %v1740
      %v1749 = vpack.c.bf16 %v1741, %v1741
      %v1750 = vpack.c.bf16 %v1742, %v1742
      %v1751 = vpack.c.bf16 %v1743, %v1743
      %v1752 = vpack.c.bf16 %v1744, %v1744
      %v1753 = vpack.c.bf16 %v1745, %v1745
      %v1754 = vpack.c.bf16 %v1746, %v1746
      %1755 = vst.msk [vmem:[#allocation6] sm:$0xf] %vm1100, %v1747
      %1756 = vst.msk [vmem:[#allocation6 + $0x8] sm:$0xf] %vm1100, %v1748
      %1757 = vst.msk [vmem:[#allocation6 + $0x10] sm:$0xf] %vm1100, %v1749
      %1758 = vst.msk [vmem:[#allocation6 + $0x18] sm:$0xf] %vm1100, %v1750
      %1759 = vst.msk [vmem:[#allocation6 + $0x20] sm:$0xf] %vm1100, %v1751
      %1760 = vst.msk [vmem:[#allocation6 + $0x28] sm:$0xf] %vm1100, %v1752
      %1761 = vst.msk [vmem:[#allocation6 + $0x30] sm:$0xf] %vm1100, %v1753
      %1762 = vst.msk [vmem:[#allocation6 + $0x38] sm:$0xf] %vm1100, %v1754
      %v1763 = vld [vmem:[#allocation3 + $0x1] sm:$0xff]
      %v1764 = vld [vmem:[#allocation3 + $0x11] sm:$0xff]
      %v1765 = vld [vmem:[#allocation3 + $0x21] sm:$0xff]
      %v1766 = vld [vmem:[#allocation3 + $0x31] sm:$0xff]
      %v1767 = vld [vmem:[#allocation3 + $0x41] sm:$0xff]
      %v1768 = vld [vmem:[#allocation3 + $0x51] sm:$0xff]
      %v1769 = vld [vmem:[#allocation3 + $0x61] sm:$0xff]
      %v1770 = vld [vmem:[#allocation3 + $0x71] sm:$0xff]
      %v1771 = vpack.c.bf16 %v1763, %v1763
      %v1772 = vpack.c.bf16 %v1764, %v1764
      %v1773 = vpack.c.bf16 %v1765, %v1765
      %v1774 = vpack.c.bf16 %v1766, %v1766
      %v1775 = vpack.c.bf16 %v1767, %v1767
      %v1776 = vpack.c.bf16 %v1768, %v1768
      %v1777 = vpack.c.bf16 %v1769, %v1769
      %v1778 = vpack.c.bf16 %v1770, %v1770
      %1787 = vrot.lane.b32.xlu0 %v1771, 16
      %v1788 = vpop.permute.xlu0 %1787
      %1789 = vrot.lane.b32.xlu0 %v1772, 16
      %v1790 = vpop.permute.xlu0 %1789
      %1791 = vrot.lane.b32.xlu0 %v1773, 16
      %v1792 = vpop.permute.xlu0 %1791
      %1793 = vrot.lane.b32.xlu0 %v1774, 16
      %v1794 = vpop.permute.xlu0 %1793
      %1795 = vrot.lane.b32.xlu0 %v1775, 16
      %v1796 = vpop.permute.xlu0 %1795
      %1797 = vrot.lane.b32.xlu0 %v1776, 16
      %v1798 = vpop.permute.xlu0 %1797
      %1799 = vrot.lane.b32.xlu0 %v1777, 16
      %v1800 = vpop.permute.xlu0 %1799
      %1801 = vrot.lane.b32.xlu0 %v1778, 16
      %v1802 = vpop.permute.xlu0 %1801
      %1811 = vst.msk [vmem:[#allocation6] sm:$0xf] %vm1157, %v1788
      %1812 = vst.msk [vmem:[#allocation6 + $0x8] sm:$0xf] %vm1157, %v1790
      %1813 = vst.msk [vmem:[#allocation6 + $0x10] sm:$0xf] %vm1157, %v1792
      %1814 = vst.msk [vmem:[#allocation6 + $0x18] sm:$0xf] %vm1157, %v1794
      %1815 = vst.msk [vmem:[#allocation6 + $0x20] sm:$0xf] %vm1157, %v1796
      %1816 = vst.msk [vmem:[#allocation6 + $0x28] sm:$0xf] %vm1157, %v1798
      %1817 = vst.msk [vmem:[#allocation6 + $0x30] sm:$0xf] %vm1157, %v1800
      %1818 = vst.msk [vmem:[#allocation6 + $0x38] sm:$0xf] %vm1157, %v1802
      %v1819 = vld [vmem:[#allocation3 + $0x2] sm:$0xff]
      %v1820 = vld [vmem:[#allocation3 + $0x12] sm:$0xff]
      %v1821 = vld [vmem:[#allocation3 + $0x22] sm:$0xff]
      %v1822 = vld [vmem:[#allocation3 + $0x32] sm:$0xff]
      %v1823 = vld [vmem:[#allocation3 + $0x42] sm:$0xff]
      %v1824 = vld [vmem:[#allocation3 + $0x52] sm:$0xff]
      %v1825 = vld [vmem:[#allocation3 + $0x62] sm:$0xff]
      %v1826 = vld [vmem:[#allocation3 + $0x72] sm:$0xff]
      %v1827 = vpack.c.bf16 %v1819, %v1819
      %v1828 = vpack.c.bf16 %v1820, %v1820
      %v1829 = vpack.c.bf16 %v1821, %v1821
      %v1830 = vpack.c.bf16 %v1822, %v1822
      %v1831 = vpack.c.bf16 %v1823, %v1823
      %v1832 = vpack.c.bf16 %v1824, %v1824
      %v1833 = vpack.c.bf16 %v1825, %v1825
      %v1834 = vpack.c.bf16 %v1826, %v1826
      %1843 = vrot.lane.b32.xlu0 %v1827, 32
      %v1844 = vpop.permute.xlu0 %1843
      %1845 = vrot.lane.b32.xlu0 %v1828, 32
      %v1846 = vpop.permute.xlu0 %1845
      %1847 = vrot.lane.b32.xlu0 %v1829, 32
      %v1848 = vpop.permute.xlu0 %1847
      %1849 = vrot.lane.b32.xlu0 %v1830, 32
      %v1850 = vpop.permute.xlu0 %1849
      %1851 = vrot.lane.b32.xlu0 %v1831, 32
      %v1852 = vpop.permute.xlu0 %1851
      %1853 = vrot.lane.b32.xlu0 %v1832, 32
      %v1854 = vpop.permute.xlu0 %1853
      %1855 = vrot.lane.b32.xlu0 %v1833, 32
      %v1856 = vpop.permute.xlu0 %1855
      %1857 = vrot.lane.b32.xlu0 %v1834, 32
      %v1858 = vpop.permute.xlu0 %1857
      %1867 = vst.msk [vmem:[#allocation6] sm:$0xf] %vm1214, %v1844
      %1868 = vst.msk [vmem:[#allocation6 + $0x8] sm:$0xf] %vm1214, %v1846
      %1869 = vst.msk [vmem:[#allocation6 + $0x10] sm:$0xf] %vm1214, %v1848
      %1870 = vst.msk [vmem:[#allocation6 + $0x18] sm:$0xf] %vm1214, %v1850
      %1871 = vst.msk [vmem:[#allocation6 + $0x20] sm:$0xf] %vm1214, %v1852
      %1872 = vst.msk [vmem:[#allocation6 + $0x28] sm:$0xf] %vm1214, %v1854
      %1873 = vst.msk [vmem:[#allocation6 + $0x30] sm:$0xf] %vm1214, %v1856
      %1874 = vst.msk [vmem:[#allocation6 + $0x38] sm:$0xf] %vm1214, %v1858
      %v1875 = vld [vmem:[%s1075] sm:$0xff]
      %v1876 = vld [vmem:[%s1075 + $0x10] sm:$0xff]
      %v1877 = vld [vmem:[%s1075 + $0x20] sm:$0xff]
      %v1878 = vld [vmem:[%s1075 + $0x30] sm:$0xff]
      %v1879 = vld [vmem:[%s1075 + $0x40] sm:$0xff]
      %v1880 = vld [vmem:[%s1075 + $0x50] sm:$0xff]
      %v1881 = vld [vmem:[%s1075 + $0x60] sm:$0xff]
      %v1882 = vld [vmem:[%s1075 + $0x70] sm:$0xff]
      %v1883 = vpack.c.bf16 %v1875, %v1875
      %v1884 = vpack.c.bf16 %v1876, %v1876
      %v1885 = vpack.c.bf16 %v1877, %v1877
      %v1886 = vpack.c.bf16 %v1878, %v1878
      %v1887 = vpack.c.bf16 %v1879, %v1879
      %v1888 = vpack.c.bf16 %v1880, %v1880
      %v1889 = vpack.c.bf16 %v1881, %v1881
      %v1890 = vpack.c.bf16 %v1882, %v1882
      %1899 = vrot.lane.b32.xlu0 %v1883, 48
      %v1900 = vpop.permute.xlu0 %1899
      %1901 = vrot.lane.b32.xlu0 %v1884, 48
      %v1902 = vpop.permute.xlu0 %1901
      %1903 = vrot.lane.b32.xlu0 %v1885, 48
      %v1904 = vpop.permute.xlu0 %1903
      %1905 = vrot.lane.b32.xlu0 %v1886, 48
      %v1906 = vpop.permute.xlu0 %1905
      %1907 = vrot.lane.b32.xlu0 %v1887, 48
      %v1908 = vpop.permute.xlu0 %1907
      %1909 = vrot.lane.b32.xlu0 %v1888, 48
      %v1910 = vpop.permute.xlu0 %1909
      %1911 = vrot.lane.b32.xlu0 %v1889, 48
      %v1912 = vpop.permute.xlu0 %1911
      %1913 = vrot.lane.b32.xlu0 %v1890, 48
      %v1914 = vpop.permute.xlu0 %1913
      %1923 = vst.msk [vmem:[#allocation6] sm:$0xf] %vm1271, %v1900
      %1924 = vst.msk [vmem:[#allocation6 + $0x8] sm:$0xf] %vm1271, %v1902
      %1925 = vst.msk [vmem:[#allocation6 + $0x10] sm:$0xf] %vm1271, %v1904
      %1926 = vst.msk [vmem:[#allocation6 + $0x18] sm:$0xf] %vm1271, %v1906
      %1927 = vst.msk [vmem:[#allocation6 + $0x20] sm:$0xf] %vm1271, %v1908
      %1928 = vst.msk [vmem:[#allocation6 + $0x28] sm:$0xf] %vm1271, %v1910
      %1929 = vst.msk [vmem:[#allocation6 + $0x30] sm:$0xf] %vm1271, %v1912
      %1930 = vst.msk [vmem:[#allocation6 + $0x38] sm:$0xf] %vm1271, %v1914
      %v1931 = vld [vmem:[%s1075 + $0x1] sm:$0xff]
      %v1932 = vld [vmem:[%s1075 + $0x11] sm:$0xff]
      %v1933 = vld [vmem:[%s1075 + $0x21] sm:$0xff]
      %v1934 = vld [vmem:[%s1075 + $0x31] sm:$0xff]
      %v1935 = vld [vmem:[%s1075 + $0x41] sm:$0xff]
      %v1936 = vld [vmem:[%s1075 + $0x51] sm:$0xff]
      %v1937 = vld [vmem:[%s1075 + $0x61] sm:$0xff]
      %v1938 = vld [vmem:[%s1075 + $0x71] sm:$0xff]
      %v1939 = vpack.c.bf16 %v1931, %v1931
      %v1940 = vpack.c.bf16 %v1932, %v1932
      %v1941 = vpack.c.bf16 %v1933, %v1933
      %v1942 = vpack.c.bf16 %v1934, %v1934
      %v1943 = vpack.c.bf16 %v1935, %v1935
      %v1944 = vpack.c.bf16 %v1936, %v1936
      %v1945 = vpack.c.bf16 %v1937, %v1937
      %v1946 = vpack.c.bf16 %v1938, %v1938
      %1955 = vrot.lane.b32.xlu0 %v1939, 64
      %v1956 = vpop.permute.xlu0 %1955
      %1957 = vrot.lane.b32.xlu0 %v1940, 64
      %v1958 = vpop.permute.xlu0 %1957
      %1959 = vrot.lane.b32.xlu0 %v1941, 64
      %v1960 = vpop.permute.xlu0 %1959
      %1961 = vrot.lane.b32.xlu0 %v1942, 64
      %v1962 = vpop.permute.xlu0 %1961
      %1963 = vrot.lane.b32.xlu0 %v1943, 64
      %v1964 = vpop.permute.xlu0 %1963
      %1965 = vrot.lane.b32.xlu0 %v1944, 64
      %v1966 = vpop.permute.xlu0 %1965
      %1967 = vrot.lane.b32.xlu0 %v1945, 64
      %v1968 = vpop.permute.xlu0 %1967
      %1969 = vrot.lane.b32.xlu0 %v1946, 64
      %v1970 = vpop.permute.xlu0 %1969
      %1979 = vst.msk [vmem:[#allocation6] sm:$0xf] %vm1328, %v1956
      %1980 = vst.msk [vmem:[#allocation6 + $0x8] sm:$0xf] %vm1328, %v1958
      %1981 = vst.msk [vmem:[#allocation6 + $0x10] sm:$0xf] %vm1328, %v1960
      %1982 = vst.msk [vmem:[#allocation6 + $0x18] sm:$0xf] %vm1328, %v1962
      %1983 = vst.msk [vmem:[#allocation6 + $0x20] sm:$0xf] %vm1328, %v1964
      %1984 = vst.msk [vmem:[#allocation6 + $0x28] sm:$0xf] %vm1328, %v1966
      %1985 = vst.msk [vmem:[#allocation6 + $0x30] sm:$0xf] %vm1328, %v1968
      %1986 = vst.msk [vmem:[#allocation6 + $0x38] sm:$0xf] %vm1328, %v1970
      %v1987 = vld [vmem:[%s1075 + $0x2] sm:$0xff]
      %v1988 = vld [vmem:[%s1075 + $0x12] sm:$0xff]
      %v1989 = vld [vmem:[%s1075 + $0x22] sm:$0xff]
      %v1990 = vld [vmem:[%s1075 + $0x32] sm:$0xff]
      %v1991 = vld [vmem:[%s1075 + $0x42] sm:$0xff]
      %v1992 = vld [vmem:[%s1075 + $0x52] sm:$0xff]
      %v1993 = vld [vmem:[%s1075 + $0x62] sm:$0xff]
      %v1994 = vld [vmem:[%s1075 + $0x72] sm:$0xff]
      %v1995 = vpack.c.bf16 %v1987, %v1987
      %v1996 = vpack.c.bf16 %v1988, %v1988
      %v1997 = vpack.c.bf16 %v1989, %v1989
      %v1998 = vpack.c.bf16 %v1990, %v1990
      %v1999 = vpack.c.bf16 %v1991, %v1991
      %v2000 = vpack.c.bf16 %v1992, %v1992
      %v2001 = vpack.c.bf16 %v1993, %v1993
      %v2002 = vpack.c.bf16 %v1994, %v1994
      %2011 = vrot.lane.b32.xlu0 %v1995, 80
      %v2012 = vpop.permute.xlu0 %2011
      %2013 = vrot.lane.b32.xlu0 %v1996, 80
      %v2014 = vpop.permute.xlu0 %2013
      %2015 = vrot.lane.b32.xlu0 %v1997, 80
      %v2016 = vpop.permute.xlu0 %2015
      %2017 = vrot.lane.b32.xlu0 %v1998, 80
      %v2018 = vpop.permute.xlu0 %2017
      %2019 = vrot.lane.b32.xlu0 %v1999, 80
      %v2020 = vpop.permute.xlu0 %2019
      %2021 = vrot.lane.b32.xlu0 %v2000, 80
      %v2022 = vpop.permute.xlu0 %2021
      %2023 = vrot.lane.b32.xlu0 %v2001, 80
      %v2024 = vpop.permute.xlu0 %2023
      %2025 = vrot.lane.b32.xlu0 %v2002, 80
      %v2026 = vpop.permute.xlu0 %2025
      %2035 = vst.msk [vmem:[#allocation6] sm:$0xf] %vm1385, %v2012
      %2036 = vst.msk [vmem:[#allocation6 + $0x8] sm:$0xf] %vm1385, %v2014
      %2037 = vst.msk [vmem:[#allocation6 + $0x10] sm:$0xf] %vm1385, %v2016
      %2038 = vst.msk [vmem:[#allocation6 + $0x18] sm:$0xf] %vm1385, %v2018
      %2039 = vst.msk [vmem:[#allocation6 + $0x20] sm:$0xf] %vm1385, %v2020
      %2040 = vst.msk [vmem:[#allocation6 + $0x28] sm:$0xf] %vm1385, %v2022
      %2041 = vst.msk [vmem:[#allocation6 + $0x30] sm:$0xf] %vm1385, %v2024
      %2042 = vst.msk [vmem:[#allocation6 + $0x38] sm:$0xf] %vm1385, %v2026
      %v2043 = vld [vmem:[%s1394] sm:$0xff]
      %v2044 = vld [vmem:[%s1394 + $0x10] sm:$0xff]
      %v2045 = vld [vmem:[%s1394 + $0x20] sm:$0xff]
      %v2046 = vld [vmem:[%s1394 + $0x30] sm:$0xff]
      %v2047 = vld [vmem:[%s1394 + $0x40] sm:$0xff]
      %v2048 = vld [vmem:[%s1394 + $0x50] sm:$0xff]
      %v2049 = vld [vmem:[%s1394 + $0x60] sm:$0xff]
      %v2050 = vld [vmem:[%s1394 + $0x70] sm:$0xff]
      %v2051 = vpack.c.bf16 %v2043, %v2043
      %v2052 = vpack.c.bf16 %v2044, %v2044
      %v2053 = vpack.c.bf16 %v2045, %v2045
      %v2054 = vpack.c.bf16 %v2046, %v2046
      %v2055 = vpack.c.bf16 %v2047, %v2047
      %v2056 = vpack.c.bf16 %v2048, %v2048
      %v2057 = vpack.c.bf16 %v2049, %v2049
      %v2058 = vpack.c.bf16 %v2050, %v2050
      %2067 = vrot.lane.b32.xlu0 %v2051, 96
      %v2068 = vpop.permute.xlu0 %2067
      %2069 = vrot.lane.b32.xlu0 %v2052, 96
      %v2070 = vpop.permute.xlu0 %2069
      %2071 = vrot.lane.b32.xlu0 %v2053, 96
      %v2072 = vpop.permute.xlu0 %2071
      %2073 = vrot.lane.b32.xlu0 %v2054, 96
      %v2074 = vpop.permute.xlu0 %2073
      %2075 = vrot.lane.b32.xlu0 %v2055, 96
      %v2076 = vpop.permute.xlu0 %2075
      %2077 = vrot.lane.b32.xlu0 %v2056, 96
      %v2078 = vpop.permute.xlu0 %2077
      %2079 = vrot.lane.b32.xlu0 %v2057, 96
      %v2080 = vpop.permute.xlu0 %2079
      %2081 = vrot.lane.b32.xlu0 %v2058, 96
      %v2082 = vpop.permute.xlu0 %2081
      %2091 = vst.msk [vmem:[#allocation6] sm:$0xf] %vm1443, %v2068
      %2092 = vst.msk [vmem:[#allocation6 + $0x8] sm:$0xf] %vm1443, %v2070
      %2093 = vst.msk [vmem:[#allocation6 + $0x10] sm:$0xf] %vm1443, %v2072
      %2094 = vst.msk [vmem:[#allocation6 + $0x18] sm:$0xf] %vm1443, %v2074
      %2095 = vst.msk [vmem:[#allocation6 + $0x20] sm:$0xf] %vm1443, %v2076
      %2096 = vst.msk [vmem:[#allocation6 + $0x28] sm:$0xf] %vm1443, %v2078
      %2097 = vst.msk [vmem:[#allocation6 + $0x30] sm:$0xf] %vm1443, %v2080
      %2098 = vst.msk [vmem:[#allocation6 + $0x38] sm:$0xf] %vm1443, %v2082
      %v2099 = vld [vmem:[%s1394 + $0x1] sm:$0xff]
      %v2100 = vld [vmem:[%s1394 + $0x11] sm:$0xff]
      %v2101 = vld [vmem:[%s1394 + $0x21] sm:$0xff]
      %v2102 = vld [vmem:[%s1394 + $0x31] sm:$0xff]
      %v2103 = vld [vmem:[%s1394 + $0x41] sm:$0xff]
      %v2104 = vld [vmem:[%s1394 + $0x51] sm:$0xff]
      %v2105 = vld [vmem:[%s1394 + $0x61] sm:$0xff]
      %v2106 = vld [vmem:[%s1394 + $0x71] sm:$0xff]
      %v2107 = vpack.c.bf16 %v2099, %v2099
      %v2108 = vpack.c.bf16 %v2100, %v2100
      %v2109 = vpack.c.bf16 %v2101, %v2101
      %v2110 = vpack.c.bf16 %v2102, %v2102
      %v2111 = vpack.c.bf16 %v2103, %v2103
      %v2112 = vpack.c.bf16 %v2104, %v2104
      %v2113 = vpack.c.bf16 %v2105, %v2105
      %v2114 = vpack.c.bf16 %v2106, %v2106
      %2123 = vrot.lane.b32.xlu0 %v2107, 112
      %v2124 = vpop.permute.xlu0 %2123
      %2125 = vrot.lane.b32.xlu0 %v2108, 112
      %v2126 = vpop.permute.xlu0 %2125
      %2127 = vrot.lane.b32.xlu0 %v2109, 112
      %v2128 = vpop.permute.xlu0 %2127
      %2129 = vrot.lane.b32.xlu0 %v2110, 112
      %v2130 = vpop.permute.xlu0 %2129
      %2131 = vrot.lane.b32.xlu0 %v2111, 112
      %v2132 = vpop.permute.xlu0 %2131
      %2133 = vrot.lane.b32.xlu0 %v2112, 112
      %v2134 = vpop.permute.xlu0 %2133
      %2135 = vrot.lane.b32.xlu0 %v2113, 112
      %v2136 = vpop.permute.xlu0 %2135
      %2137 = vrot.lane.b32.xlu0 %v2114, 112
      %v2138 = vpop.permute.xlu0 %2137
      %2147 = vst.msk [vmem:[#allocation6] sm:$0xf] %vm1500, %v2124
      %2148 = vst.msk [vmem:[#allocation6 + $0x8] sm:$0xf] %vm1500, %v2126
      %2149 = vst.msk [vmem:[#allocation6 + $0x10] sm:$0xf] %vm1500, %v2128
      %2150 = vst.msk [vmem:[#allocation6 + $0x18] sm:$0xf] %vm1500, %v2130
      %2151 = vst.msk [vmem:[#allocation6 + $0x20] sm:$0xf] %vm1500, %v2132
      %2152 = vst.msk [vmem:[#allocation6 + $0x28] sm:$0xf] %vm1500, %v2134
      %2153 = vst.msk [vmem:[#allocation6 + $0x30] sm:$0xf] %vm1500, %v2136
      %2154 = vst.msk [vmem:[#allocation6 + $0x38] sm:$0xf] %vm1500, %v2138
      %v2155 = vld [vmem:[%s1394 + $0x2] sm:$0xff]
      %v2156 = vld [vmem:[%s1394 + $0x12] sm:$0xff]
      %v2157 = vld [vmem:[%s1394 + $0x22] sm:$0xff]
      %v2158 = vld [vmem:[%s1394 + $0x32] sm:$0xff]
      %v2159 = vld [vmem:[%s1394 + $0x42] sm:$0xff]
      %v2160 = vld [vmem:[%s1394 + $0x52] sm:$0xff]
      %v2161 = vld [vmem:[%s1394 + $0x62] sm:$0xff]
      %v2162 = vld [vmem:[%s1394 + $0x72] sm:$0xff]
      %v2163 = vpack.c.bf16 %v2155, %v2155
      %v2164 = vpack.c.bf16 %v2156, %v2156
      %v2165 = vpack.c.bf16 %v2157, %v2157
      %v2166 = vpack.c.bf16 %v2158, %v2158
      %v2167 = vpack.c.bf16 %v2159, %v2159
      %v2168 = vpack.c.bf16 %v2160, %v2160
      %v2169 = vpack.c.bf16 %v2161, %v2161
      %v2170 = vpack.c.bf16 %v2162, %v2162
      %2171 = vst.msk [vmem:[#allocation6 + $0x4] sm:$0xf] %vm1100, %v2163
      %2172 = vst.msk [vmem:[#allocation6 + $0xc] sm:$0xf] %vm1100, %v2164
      %2173 = vst.msk [vmem:[#allocation6 + $0x14] sm:$0xf] %vm1100, %v2165
      %2174 = vst.msk [vmem:[#allocation6 + $0x1c] sm:$0xf] %vm1100, %v2166
      %2175 = vst.msk [vmem:[#allocation6 + $0x24] sm:$0xf] %vm1100, %v2167
      %2176 = vst.msk [vmem:[#allocation6 + $0x2c] sm:$0xf] %vm1100, %v2168
      %2177 = vst.msk [vmem:[#allocation6 + $0x34] sm:$0xf] %vm1100, %v2169
      %2178 = vst.msk [vmem:[#allocation6 + $0x3c] sm:$0xf] %vm1100, %v2170
      %v2179 = vld [vmem:[#allocation6] sm:$0xff]
      %v2180 = vld [vmem:[#allocation6 + $0x8] sm:$0xff]
      %v2181 = vld [vmem:[#allocation6 + $0x10] sm:$0xff]
      %v2182 = vld [vmem:[#allocation6 + $0x18] sm:$0xff]
      %v2183 = vld [vmem:[#allocation6 + $0x20] sm:$0xff]
      %v2184 = vld [vmem:[#allocation6 + $0x28] sm:$0xff]
      %v2185 = vld [vmem:[#allocation6 + $0x30] sm:$0xff]
      %v2186 = vld [vmem:[#allocation6 + $0x38] sm:$0xff]
      %v2187 = vld [vmem:[%s5] sm:$0xf]
      %v2188 = vld [vmem:[%s5 + $0x4] sm:$0xf]
      %v2189 = vld [vmem:[%s5 + $0x8] sm:$0xf]
      %v2190 = vld [vmem:[%s5 + $0xc] sm:$0xf]
      %v2191 = vld [vmem:[%s5 + $0x10] sm:$0xf]
      %v2192 = vld [vmem:[%s5 + $0x14] sm:$0xf]
      %v2193 = vld [vmem:[%s5 + $0x18] sm:$0xf]
      %v2194 = vld [vmem:[%s5 + $0x1c] sm:$0xf]
      %v2195 = vld [vmem:[%s5 + $0x20] sm:$0xf]
      %v2196 = vld [vmem:[%s5 + $0x24] sm:$0xf]
      %v2197 = vld [vmem:[%s5 + $0x28] sm:$0xf]
      %v2198 = vld [vmem:[%s5 + $0x2c] sm:$0xf]
      %v2199 = vld [vmem:[%s5 + $0x30] sm:$0xf]
      %v2200 = vld [vmem:[%s5 + $0x34] sm:$0xf]
      %v2201 = vld [vmem:[%s5 + $0x38] sm:$0xf]
      %v2202 = vld [vmem:[%s5 + $0x3c] sm:$0xf]
      %v2203 = vld [vmem:[%s5 + $0x40] sm:$0xf]
      %v2204 = vld [vmem:[%s5 + $0x44] sm:$0xf]
      %v2205 = vld [vmem:[%s6] sm:$0x1]
      %v2207 = vperm.slane %v2205, 0
      %v2217 = vunpack.c.l.b16 %v2179
      %v2218 = vunpack.c.h.b16 %v2179
      %v2219 = vunpack.c.l.b16 %v2180
      %v2220 = vunpack.c.h.b16 %v2180
      %v2221 = vunpack.c.l.b16 %v2181
      %v2222 = vunpack.c.h.b16 %v2181
      %v2223 = vunpack.c.l.b16 %v2182
      %v2224 = vunpack.c.h.b16 %v2182
      %v2225 = vunpack.c.l.b16 %v2183
      %v2226 = vunpack.c.h.b16 %v2183
      %v2227 = vunpack.c.l.b16 %v2184
      %v2228 = vunpack.c.h.b16 %v2184
      %v2229 = vunpack.c.l.b16 %v2185
      %v2230 = vunpack.c.h.b16 %v2185
      %v2231 = vunpack.c.l.b16 %v2186
      %v2232 = vunpack.c.h.b16 %v2186
      %v2233 = vpack.c.b16 %v2219, %v2217
      %v2234 = vpack.c.b16 %v2220, %v2218
      %v2235 = vpack.c.b16 %v2223, %v2221
      %v2236 = vpack.c.b16 %v2224, %v2222
      %v2237 = vpack.c.b16 %v2227, %v2225
      %v2238 = vpack.c.b16 %v2228, %v2226
      %v2239 = vpack.c.b16 %v2231, %v2229
      %v2240 = vpack.c.b16 %v2232, %v2230
      %v2263 = vunpack.c.l.b16 %v2187
      %v2264 = vunpack.c.l.b16 %v2188
      %v2265 = vunpack.c.l.b16 %v2189
      %v2266 = vunpack.c.l.b16 %v2190
      %v2267 = vunpack.c.l.b16 %v2191
      %v2268 = vunpack.c.l.b16 %v2192
      %v2269 = vunpack.c.l.b16 %v2193
      %v2270 = vunpack.c.l.b16 %v2194
      %v2271 = vunpack.c.l.b16 %v2195
      %v2272 = vunpack.c.l.b16 %v2196
      %v2273 = vunpack.c.l.b16 %v2197
      %v2274 = vunpack.c.l.b16 %v2198
      %v2275 = vunpack.c.l.b16 %v2199
      %v2276 = vunpack.c.l.b16 %v2200
      %v2277 = vunpack.c.l.b16 %v2201
      %v2278 = vunpack.c.l.b16 %v2202
      %v2279 = vunpack.c.l.b16 %v2203
      %v2280 = vunpack.c.l.b16 %v2204
      %v2281 = vpack.c.b16 %v2264, %v2263
      %v2282 = vpack.c.b16 %v2266, %v2265
      %v2283 = vpack.c.b16 %v2268, %v2267
      %v2284 = vpack.c.b16 %v2270, %v2269
      %v2285 = vpack.c.b16 %v2272, %v2271
      %v2286 = vpack.c.b16 %v2274, %v2273
      %v2287 = vpack.c.b16 %v2276, %v2275
      %v2288 = vpack.c.b16 %v2278, %v2277
      %v2289 = vpack.c.b16 %v2280, %v2279
      %v2300 = vsel %vm414, %v2234, 0
      %v2303 = vsel %vm414, %v2236, 0
      %v2306 = vsel %vm414, %v2238, 0
      %v2309 = vsel %vm414, %v2240, 0
      %2311 = vmatpush.bf16.msra.mxu0 %v2288
      %2312 = vmatpush.bf16.msra.mxu0 %v2287
      %2313 = vmatpush.bf16.msra.mxu0 %v2286
      %2314 = vmatpush.bf16.msra.mxu0 %v2285
      %2315 = vmatpush.bf16.msra.mxu0 %v2284
      %2316 = vmatpush.bf16.msra.mxu0 %v2283
      %2317 = vmatpush.bf16.msra.mxu0 %v2282
      %2318 = vmatpush.bf16.msra.mxu0 %v2281
      %2319 = vmatmul.bf16.gmra.mxu0 %v2233
      %v2320 = vpop.f32.mrf.mxu0
      %v2321 = vadd.f32 %v2207, %v2320
      %v2322 = vpop.f32.mrf.mxu0
      %v2323 = vadd.f32 %v2207, %v2322
      %2324 = vmatmul.bf16.gmra.mxu0 %v2235
      %v2325 = vpop.f32.mrf.mxu0
      %v2326 = vadd.f32 %v2207, %v2325
      %v2327 = vpop.f32.mrf.mxu0
      %v2328 = vadd.f32 %v2207, %v2327
      %2329 = vmatmul.bf16.gmra.mxu0 %v2237
      %v2330 = vpop.f32.mrf.mxu0
      %v2331 = vadd.f32 %v2207, %v2330
      %v2332 = vpop.f32.mrf.mxu0
      %v2333 = vadd.f32 %v2207, %v2332
      %2334 = vmatmul.bf16.gmra.mxu0 %v2239
      %v2335 = vpop.f32.mrf.mxu0
      %v2336 = vadd.f32 %v2207, %v2335
      %v2337 = vpop.f32.mrf.mxu0
      %v2338 = vadd.f32 %v2207, %v2337
      %2339 = vdwg.mxu0
      %2340 = vmatpush.bf16.msra.mxu0 0
      %2341 = vmatpush.bf16.msra.mxu0 0
      %2342 = vmatpush.bf16.msra.mxu0 0
      %2343 = vmatpush.bf16.msra.mxu0 0
      %2344 = vmatpush.bf16.msra.mxu0 0
      %2345 = vmatpush.bf16.msra.mxu0 0
      %2346 = vmatpush.bf16.msra.mxu0 0
      %2347 = vmatpush.bf16.msra.mxu0 %v2289
      %2348 = vmatmul.bf16.gmra.mxu0 %v2300
      %v2349 = vpop.f32.mrf.mxu0
      %v2350 = vadd.f32 %v2321, %v2349
      %v2351 = vpop.f32.mrf.mxu0
      %v2352 = vadd.f32 %v2323, %v2351
      %2353 = vmatmul.bf16.gmra.mxu0 %v2303
      %v2354 = vpop.f32.mrf.mxu0
      %v2355 = vadd.f32 %v2326, %v2354
      %v2356 = vpop.f32.mrf.mxu0
      %v2357 = vadd.f32 %v2328, %v2356
      %2358 = vmatmul.bf16.gmra.mxu0 %v2306
      %v2359 = vpop.f32.mrf.mxu0
      %v2360 = vadd.f32 %v2331, %v2359
      %v2361 = vpop.f32.mrf.mxu0
      %v2362 = vadd.f32 %v2333, %v2361
      %2363 = vmatmul.bf16.gmra.mxu0 %v2309
      %v2364 = vpop.f32.mrf.mxu0
      %v2365 = vadd.f32 %v2336, %v2364
      %v2366 = vpop.f32.mrf.mxu0
      %v2367 = vadd.f32 %v2338, %v2366
      %2368 = vdwg.mxu0
      %v2369 = vsel %vm414, %v2350, 0.0
      %v2370 = vsel %vm414, %v2352, 0.0
      %v2371 = vadd.f32 %v2369, %v2370
      %v2372 = vsel %vm414, %v2355, 0.0
      %v2373 = vadd.f32 %v2371, %v2372
      %v2374 = vsel %vm414, %v2357, 0.0
      %v2375 = vadd.f32 %v2373, %v2374
      %v2376 = vsel %vm414, %v2360, 0.0
      %v2377 = vadd.f32 %v2375, %v2376
      %v2378 = vsel %vm414, %v2362, 0.0
      %v2379 = vadd.f32 %v2377, %v2378
      %v2380 = vsel %vm414, %v2365, 0.0
      %v2381 = vadd.f32 %v2379, %v2380
      %v2382 = vsel %vm414, %v2367, 0.0
      %v2383 = vadd.f32 %v2381, %v2382
      %v2384 = vrot.slane %v2383, 4
      %v2385 = vadd.f32 %v2383, %v2384
      %v2386 = vrot.slane %v2385, 2
      %v2387 = vadd.f32 %v2385, %v2386
      %v2388 = vrot.slane %v2387, 1
      %v2389 = vadd.f32 %v2387, %v2388
      %v2390 = vrcp.pop 64.0
      %v2391 = vmul.f32 64.0, %v2390
      %v2392 = vsub.f32 1.0, %v2391
      %v2393 = vmul.f32 %v2390, %v2392
      %v2394 = vadd.f32 %v2390, %v2393
      %vm2395 = vweird.f32 %v2390
      %v2396 = vsel %vm2395, %v2390, %v2394
      %v2397 = vmul.f32 %v2389, %v2396
      %v2398 = vsel %vm414, %v2350, -inf
      %v2399 = vsel %vm414, %v2352, -inf
      %v2400 = vsel %vm414, %v2355, -inf
      %v2401 = vsel %vm414, %v2357, -inf
      %v2402 = vsel %vm414, %v2360, -inf
      %v2403 = vmax.f32 %v2398, %v2402
      %v2404 = vsel %vm414, %v2362, -inf
      %v2405 = vmax.f32 %v2399, %v2404
      %v2406 = vsel %vm414, %v2365, -inf
      %v2407 = vmax.f32 %v2400, %v2406
      %v2408 = vsel %vm414, %v2367, -inf
      %v2409 = vmax.f32 %v2401, %v2408
      %v2410 = vmax.f32 %v2403, %v2405
      %v2411 = vmax.f32 %v2407, %v2409
      %v2412 = vmax.f32 %v2410, %v2411
      %v2413 = vrot.slane %v2412, 4
      %v2414 = vmax.f32 %v2412, %v2413
      %v2415 = vrot.slane %v2414, 2
      %v2416 = vmax.f32 %v2414, %v2415
      %v2417 = vrot.slane %v2416, 1
      %v2418 = vmax.f32 %v2416, %v2417
      %vm2419 = vcmask 1040384
      %v2420 = vsel %vm2419, %v2397, %v2418
      %v2421 = vld [vmem:[%s7] sm:$0xff]
      %v2422 = vld [vmem:[%s7 + $0x8] sm:$0xff]
      %v2424 = vsel %vm414, %v2420, 0
      %2426 = vmatpush.msra.mxu0 0.0
      %2427 = vmatpush.msra.mxu0 0.0
      %2428 = vmatpush.msra.mxu0 0.0
      %2429 = vmatpush.msra.mxu0 0.0
      %2430 = vmatpush.msra.mxu0 0.0
      %2431 = vmatpush.msra.mxu0 0.0
      %2432 = vmatpush.msra.mxu0 0.0
      %2433 = vmatpush.msra.mxu0 0.0
      %2434 = vmatpush.msra.mxu0 0.0
      %2435 = vmatpush.msra.mxu0 0.0
      %2436 = vmatpush.msra.mxu0 0.0
      %2437 = vmatpush.msra.mxu0 0.0
      %2438 = vmatpush.msra.mxu0 0.0
      %2439 = vmatpush.msra.mxu0 0.0
      %2440 = vmatpush.msra.mxu0 %v2422
      %2441 = vmatpush.msra.mxu0 %v2421
      %2442 = vmatmul.f32.gmra.mxu0 %v2424
      %v2443 = vpop.f32.mrf.mxu0
      %v2444 = vadd.f32 0.0, %v2443
      %2445 = vdwg.mxu0
      %v2446 = vmax.f32 %v2444, 0.0
      %v2447 = vld [vmem:[%s8] sm:$0x1]
      %vm2448 = vcmask 7168
      %v2450 = vsel %vm2448, %v2446, 0
      %v2453 = vsel %vm2419, %v2447, 0
      %2455 = vmatpush.msra.mxu0 0.0
      %2456 = vmatpush.msra.mxu0 0.0
      %2457 = vmatpush.msra.mxu0 0.0
      %2458 = vmatpush.msra.mxu0 0.0
      %2459 = vmatpush.msra.mxu0 0.0
      %2460 = vmatpush.msra.mxu0 0.0
      %2461 = vmatpush.msra.mxu0 0.0
      %2462 = vmatpush.msra.mxu0 0.0
      %2463 = vmatpush.msra.mxu0 0.0
      %2464 = vmatpush.msra.mxu0 0.0
      %2465 = vmatpush.msra.mxu0 0.0
      %2466 = vmatpush.msra.mxu0 0.0
      %2467 = vmatpush.msra.mxu0 0.0
      %2468 = vmatpush.msra.mxu0 0.0
      %2469 = vmatpush.msra.mxu0 0.0
      %2470 = vmatpush.msra.mxu0 %v2453
      %2471 = vmatmul.f32.gmra.mxu0 %v2450
      %v2472 = vpop.f32.mrf.mxu0
      %v2473 = vadd.f32 0.0, %v2472
      %2474 = vdwg.mxu0
      %v2476 = vrot.slane %v2473, 1
      %v2478 = vadd.f32 %v2473, %v2476
      %v2479 = vxor.u32 %v2478, 2147483648
      %v2480 = vmul.f32 %v2479, 1.442695
      %v2481 = vpow.pop %v2480
      %v2482 = vadd.f32 %v2481, 1.0
      %v2483 = vrcp.pop %v2482
      %v2484 = vmul.f32 %v2482, %v2483
      %v2485 = vsub.f32 1.0, %v2484
      %v2486 = vmul.f32 %v2483, %v2485
      %v2487 = vadd.f32 %v2483, %v2486
      %vm2488 = vweird.f32 %v2482
      %vm2489 = vweird.f32 %v2483
      %vm2490 = vmor %vm2488, %vm2489
      %v2491 = vsel %vm2490, %v2483, %v2487
      %v2492 = vand.u32 2147483647, %v2482
      %vm2493 = vcmp.eq.f32.partialorder %v2492, 8.507059e+37
      %v2494 = vand.u32 %v2482, 2147483648
      %v2495 = vor.u32 1.1754944e-38, %v2494
      %v2496 = vsel %vm2493, %v2495, %v2491
      %v2497 = vmul.f32 1.0, %v2496
      %v2498 = vperm.slane %v2497, 0
      %v2499 = vmul.f32 %v2350, %v2498
      %v2500 = vmul.f32 %v2352, %v2498
      %v2501 = vmul.f32 %v2355, %v2498
      %v2502 = vmul.f32 %v2357, %v2498
      %v2503 = vmul.f32 %v2360, %v2498
      %v2504 = vmul.f32 %v2362, %v2498
      %v2505 = vmul.f32 %v2365, %v2498
      %v2506 = vmul.f32 %v2367, %v2498
      %v2507 = vsel %vm414, %v2499, 0.0
      %2508 = vadd.xlane.f32.xlu0 %v2507
      %v2509 = vpop.xlane.xlu0 %2508
      %v2510 = vsel %vm414, %v2500, 0.0
      %2511 = vadd.xlane.f32.xlu0 %v2510
      %v2512 = vpop.xlane.xlu0 %2511
      %v2513 = vsel %vm414, %v2501, 0.0
      %2514 = vadd.xlane.f32.xlu0 %v2513
      %v2515 = vpop.xlane.xlu0 %2514
      %v2516 = vsel %vm414, %v2502, 0.0
      %2517 = vadd.xlane.f32.xlu0 %v2516
      %v2518 = vpop.xlane.xlu0 %2517
      %v2519 = vsel %vm414, %v2503, 0.0
      %2520 = vadd.xlane.f32.xlu0 %v2519
      %v2521 = vpop.xlane.xlu0 %2520
      %v2522 = vsel %vm414, %v2504, 0.0
      %2523 = vadd.xlane.f32.xlu0 %v2522
      %v2524 = vpop.xlane.xlu0 %2523
      %v2525 = vsel %vm414, %v2505, 0.0
      %2526 = vadd.xlane.f32.xlu0 %v2525
      %v2527 = vpop.xlane.xlu0 %2526
      %v2528 = vsel %vm414, %v2506, 0.0
      %2529 = vadd.xlane.f32.xlu0 %v2528
      %v2530 = vpop.xlane.xlu0 %2529
      %v2531 = vrcp.pop 16.0
      %v2532 = vmul.f32 16.0, %v2531
      %v2533 = vsub.f32 1.0, %v2532
      %v2534 = vmul.f32 %v2531, %v2533
      %v2535 = vadd.f32 %v2531, %v2534
      %vm2536 = vweird.f32 %v2531
      %v2537 = vsel %vm2536, %v2531, %v2535
      %v2538 = vmul.f32 %v2509, %v2537
      %v2539 = vmul.f32 %v2512, %v2537
      %v2540 = vmul.f32 %v2515, %v2537
      %v2541 = vmul.f32 %v2518, %v2537
      %v2542 = vmul.f32 %v2521, %v2537
      %v2543 = vmul.f32 %v2524, %v2537
      %v2544 = vmul.f32 %v2527, %v2537
      %v2545 = vmul.f32 %v2530, %v2537
      %v2546 = vsub.f32 %v2499, %v2538
      %v2547 = vsub.f32 %v2500, %v2539
      %v2548 = vsub.f32 %v2501, %v2540
      %v2549 = vsub.f32 %v2502, %v2541
      %v2550 = vsub.f32 %v2503, %v2542
      %v2551 = vsub.f32 %v2504, %v2543
      %v2552 = vsub.f32 %v2505, %v2544
      %v2553 = vsub.f32 %v2506, %v2545
      %2554 = vst.msk [vmem:[%s1075 + $0x1] sm:$0xff] %vm414, %v2546
      %2555 = vst.msk [vmem:[%s1075 + $0x11] sm:$0xff] %vm414, %v2547
      %2556 = vst.msk [vmem:[%s1075 + $0x21] sm:$0xff] %vm414, %v2548
      %2557 = vst.msk [vmem:[%s1075 + $0x31] sm:$0xff] %vm414, %v2549
      %2558 = vst.msk [vmem:[%s1075 + $0x41] sm:$0xff] %vm414, %v2550
      %2559 = vst.msk [vmem:[%s1075 + $0x51] sm:$0xff] %vm414, %v2551
      %2560 = vst.msk [vmem:[%s1075 + $0x61] sm:$0xff] %vm414, %v2552
      %2561 = vst.msk [vmem:[%s1075 + $0x71] sm:$0xff] %vm414, %v2553
      %v2562 = vld [vmem:[#allocation3] sm:$0xff]
      %v2563 = vld [vmem:[#allocation3 + $0x10] sm:$0xff]
      %v2564 = vld [vmem:[#allocation3 + $0x20] sm:$0xff]
      %v2565 = vld [vmem:[#allocation3 + $0x30] sm:$0xff]
      %v2566 = vld [vmem:[#allocation3 + $0x40] sm:$0xff]
      %v2567 = vld [vmem:[#allocation3 + $0x50] sm:$0xff]
      %v2568 = vld [vmem:[#allocation3 + $0x60] sm:$0xff]
      %v2569 = vld [vmem:[#allocation3 + $0x70] sm:$0xff]
      %v2570 = vpack.c.bf16 %v2562, %v2562
      %v2571 = vpack.c.bf16 %v2563, %v2563
      %v2572 = vpack.c.bf16 %v2564, %v2564
      %v2573 = vpack.c.bf16 %v2565, %v2565
      %v2574 = vpack.c.bf16 %v2566, %v2566
      %v2575 = vpack.c.bf16 %v2567, %v2567
      %v2576 = vpack.c.bf16 %v2568, %v2568
      %v2577 = vpack.c.bf16 %v2569, %v2569
      %2578 = vst.msk [vmem:[#allocation6] sm:$0xf] %vm1100, %v2570
      %2579 = vst.msk [vmem:[#allocation6 + $0x8] sm:$0xf] %vm1100, %v2571
      %2580 = vst.msk [vmem:[#allocation6 + $0x10] sm:$0xf] %vm1100, %v2572
      %2581 = vst.msk [vmem:[#allocation6 + $0x18] sm:$0xf] %vm1100, %v2573
      %2582 = vst.msk [vmem:[#allocation6 + $0x20] sm:$0xf] %vm1100, %v2574
      %2583 = vst.msk [vmem:[#allocation6 + $0x28] sm:$0xf] %vm1100, %v2575
      %2584 = vst.msk [vmem:[#allocation6 + $0x30] sm:$0xf] %vm1100, %v2576
      %2585 = vst.msk [vmem:[#allocation6 + $0x38] sm:$0xf] %vm1100, %v2577
      %v2586 = vld [vmem:[#allocation3 + $0x1] sm:$0xff]
      %v2587 = vld [vmem:[#allocation3 + $0x11] sm:$0xff]
      %v2588 = vld [vmem:[#allocation3 + $0x21] sm:$0xff]
      %v2589 = vld [vmem:[#allocation3 + $0x31] sm:$0xff]
      %v2590 = vld [vmem:[#allocation3 + $0x41] sm:$0xff]
      %v2591 = vld [vmem:[#allocation3 + $0x51] sm:$0xff]
      %v2592 = vld [vmem:[#allocation3 + $0x61] sm:$0xff]
      %v2593 = vld [vmem:[#allocation3 + $0x71] sm:$0xff]
      %v2594 = vpack.c.bf16 %v2586, %v2586
      %v2595 = vpack.c.bf16 %v2587, %v2587
      %v2596 = vpack.c.bf16 %v2588, %v2588
      %v2597 = vpack.c.bf16 %v2589, %v2589
      %v2598 = vpack.c.bf16 %v2590, %v2590
      %v2599 = vpack.c.bf16 %v2591, %v2591
      %v2600 = vpack.c.bf16 %v2592, %v2592
      %v2601 = vpack.c.bf16 %v2593, %v2593
      %2610 = vrot.lane.b32.xlu0 %v2594, 16
      %v2611 = vpop.permute.xlu0 %2610
      %2612 = vrot.lane.b32.xlu0 %v2595, 16
      %v2613 = vpop.permute.xlu0 %2612
      %2614 = vrot.lane.b32.xlu0 %v2596, 16
      %v2615 = vpop.permute.xlu0 %2614
      %2616 = vrot.lane.b32.xlu0 %v2597, 16
      %v2617 = vpop.permute.xlu0 %2616
      %2618 = vrot.lane.b32.xlu0 %v2598, 16
      %v2619 = vpop.permute.xlu0 %2618
      %2620 = vrot.lane.b32.xlu0 %v2599, 16
      %v2621 = vpop.permute.xlu0 %2620
      %2622 = vrot.lane.b32.xlu0 %v2600, 16
      %v2623 = vpop.permute.xlu0 %2622
      %2624 = vrot.lane.b32.xlu0 %v2601, 16
      %v2625 = vpop.permute.xlu0 %2624
      %2634 = vst.msk [vmem:[#allocation6] sm:$0xf] %vm1157, %v2611
      %2635 = vst.msk [vmem:[#allocation6 + $0x8] sm:$0xf] %vm1157, %v2613
      %2636 = vst.msk [vmem:[#allocation6 + $0x10] sm:$0xf] %vm1157, %v2615
      %2637 = vst.msk [vmem:[#allocation6 + $0x18] sm:$0xf] %vm1157, %v2617
      %2638 = vst.msk [vmem:[#allocation6 + $0x20] sm:$0xf] %vm1157, %v2619
      %2639 = vst.msk [vmem:[#allocation6 + $0x28] sm:$0xf] %vm1157, %v2621
      %2640 = vst.msk [vmem:[#allocation6 + $0x30] sm:$0xf] %vm1157, %v2623
      %2641 = vst.msk [vmem:[#allocation6 + $0x38] sm:$0xf] %vm1157, %v2625
      %v2642 = vld [vmem:[#allocation3 + $0x2] sm:$0xff]
      %v2643 = vld [vmem:[#allocation3 + $0x12] sm:$0xff]
      %v2644 = vld [vmem:[#allocation3 + $0x22] sm:$0xff]
      %v2645 = vld [vmem:[#allocation3 + $0x32] sm:$0xff]
      %v2646 = vld [vmem:[#allocation3 + $0x42] sm:$0xff]
      %v2647 = vld [vmem:[#allocation3 + $0x52] sm:$0xff]
      %v2648 = vld [vmem:[#allocation3 + $0x62] sm:$0xff]
      %v2649 = vld [vmem:[#allocation3 + $0x72] sm:$0xff]
      %v2650 = vpack.c.bf16 %v2642, %v2642
      %v2651 = vpack.c.bf16 %v2643, %v2643
      %v2652 = vpack.c.bf16 %v2644, %v2644
      %v2653 = vpack.c.bf16 %v2645, %v2645
      %v2654 = vpack.c.bf16 %v2646, %v2646
      %v2655 = vpack.c.bf16 %v2647, %v2647
      %v2656 = vpack.c.bf16 %v2648, %v2648
      %v2657 = vpack.c.bf16 %v2649, %v2649
      %2666 = vrot.lane.b32.xlu0 %v2650, 32
      %v2667 = vpop.permute.xlu0 %2666
      %2668 = vrot.lane.b32.xlu0 %v2651, 32
      %v2669 = vpop.permute.xlu0 %2668
      %2670 = vrot.lane.b32.xlu0 %v2652, 32
      %v2671 = vpop.permute.xlu0 %2670
      %2672 = vrot.lane.b32.xlu0 %v2653, 32
      %v2673 = vpop.permute.xlu0 %2672
      %2674 = vrot.lane.b32.xlu0 %v2654, 32
      %v2675 = vpop.permute.xlu0 %2674
      %2676 = vrot.lane.b32.xlu0 %v2655, 32
      %v2677 = vpop.permute.xlu0 %2676
      %2678 = vrot.lane.b32.xlu0 %v2656, 32
      %v2679 = vpop.permute.xlu0 %2678
      %2680 = vrot.lane.b32.xlu0 %v2657, 32
      %v2681 = vpop.permute.xlu0 %2680
      %2690 = vst.msk [vmem:[#allocation6] sm:$0xf] %vm1214, %v2667
      %2691 = vst.msk [vmem:[#allocation6 + $0x8] sm:$0xf] %vm1214, %v2669
      %2692 = vst.msk [vmem:[#allocation6 + $0x10] sm:$0xf] %vm1214, %v2671
      %2693 = vst.msk [vmem:[#allocation6 + $0x18] sm:$0xf] %vm1214, %v2673
      %2694 = vst.msk [vmem:[#allocation6 + $0x20] sm:$0xf] %vm1214, %v2675
      %2695 = vst.msk [vmem:[#allocation6 + $0x28] sm:$0xf] %vm1214, %v2677
      %2696 = vst.msk [vmem:[#allocation6 + $0x30] sm:$0xf] %vm1214, %v2679
      %2697 = vst.msk [vmem:[#allocation6 + $0x38] sm:$0xf] %vm1214, %v2681
      %v2698 = vld [vmem:[%s1075] sm:$0xff]
      %v2699 = vld [vmem:[%s1075 + $0x10] sm:$0xff]
      %v2700 = vld [vmem:[%s1075 + $0x20] sm:$0xff]
      %v2701 = vld [vmem:[%s1075 + $0x30] sm:$0xff]
      %v2702 = vld [vmem:[%s1075 + $0x40] sm:$0xff]
      %v2703 = vld [vmem:[%s1075 + $0x50] sm:$0xff]
      %v2704 = vld [vmem:[%s1075 + $0x60] sm:$0xff]
      %v2705 = vld [vmem:[%s1075 + $0x70] sm:$0xff]
      %v2706 = vpack.c.bf16 %v2698, %v2698
      %v2707 = vpack.c.bf16 %v2699, %v2699
      %v2708 = vpack.c.bf16 %v2700, %v2700
      %v2709 = vpack.c.bf16 %v2701, %v2701
      %v2710 = vpack.c.bf16 %v2702, %v2702
      %v2711 = vpack.c.bf16 %v2703, %v2703
      %v2712 = vpack.c.bf16 %v2704, %v2704
      %v2713 = vpack.c.bf16 %v2705, %v2705
      %2722 = vrot.lane.b32.xlu0 %v2706, 48
      %v2723 = vpop.permute.xlu0 %2722
      %2724 = vrot.lane.b32.xlu0 %v2707, 48
      %v2725 = vpop.permute.xlu0 %2724
      %2726 = vrot.lane.b32.xlu0 %v2708, 48
      %v2727 = vpop.permute.xlu0 %2726
      %2728 = vrot.lane.b32.xlu0 %v2709, 48
      %v2729 = vpop.permute.xlu0 %2728
      %2730 = vrot.lane.b32.xlu0 %v2710, 48
      %v2731 = vpop.permute.xlu0 %2730
      %2732 = vrot.lane.b32.xlu0 %v2711, 48
      %v2733 = vpop.permute.xlu0 %2732
      %2734 = vrot.lane.b32.xlu0 %v2712, 48
      %v2735 = vpop.permute.xlu0 %2734
      %2736 = vrot.lane.b32.xlu0 %v2713, 48
      %v2737 = vpop.permute.xlu0 %2736
      %2746 = vst.msk [vmem:[#allocation6] sm:$0xf] %vm1271, %v2723
      %2747 = vst.msk [vmem:[#allocation6 + $0x8] sm:$0xf] %vm1271, %v2725
      %2748 = vst.msk [vmem:[#allocation6 + $0x10] sm:$0xf] %vm1271, %v2727
      %2749 = vst.msk [vmem:[#allocation6 + $0x18] sm:$0xf] %vm1271, %v2729
      %2750 = vst.msk [vmem:[#allocation6 + $0x20] sm:$0xf] %vm1271, %v2731
      %2751 = vst.msk [vmem:[#allocation6 + $0x28] sm:$0xf] %vm1271, %v2733
      %2752 = vst.msk [vmem:[#allocation6 + $0x30] sm:$0xf] %vm1271, %v2735
      %2753 = vst.msk [vmem:[#allocation6 + $0x38] sm:$0xf] %vm1271, %v2737
      %v2754 = vld [vmem:[%s1075 + $0x1] sm:$0xff]
      %v2755 = vld [vmem:[%s1075 + $0x11] sm:$0xff]
      %v2756 = vld [vmem:[%s1075 + $0x21] sm:$0xff]
      %v2757 = vld [vmem:[%s1075 + $0x31] sm:$0xff]
      %v2758 = vld [vmem:[%s1075 + $0x41] sm:$0xff]
      %v2759 = vld [vmem:[%s1075 + $0x51] sm:$0xff]
      %v2760 = vld [vmem:[%s1075 + $0x61] sm:$0xff]
      %v2761 = vld [vmem:[%s1075 + $0x71] sm:$0xff]
      %v2762 = vpack.c.bf16 %v2754, %v2754
      %v2763 = vpack.c.bf16 %v2755, %v2755
      %v2764 = vpack.c.bf16 %v2756, %v2756
      %v2765 = vpack.c.bf16 %v2757, %v2757
      %v2766 = vpack.c.bf16 %v2758, %v2758
      %v2767 = vpack.c.bf16 %v2759, %v2759
      %v2768 = vpack.c.bf16 %v2760, %v2760
      %v2769 = vpack.c.bf16 %v2761, %v2761
      %2778 = vrot.lane.b32.xlu0 %v2762, 64
      %v2779 = vpop.permute.xlu0 %2778
      %2780 = vrot.lane.b32.xlu0 %v2763, 64
      %v2781 = vpop.permute.xlu0 %2780
      %2782 = vrot.lane.b32.xlu0 %v2764, 64
      %v2783 = vpop.permute.xlu0 %2782
      %2784 = vrot.lane.b32.xlu0 %v2765, 64
      %v2785 = vpop.permute.xlu0 %2784
      %2786 = vrot.lane.b32.xlu0 %v2766, 64
      %v2787 = vpop.permute.xlu0 %2786
      %2788 = vrot.lane.b32.xlu0 %v2767, 64
      %v2789 = vpop.permute.xlu0 %2788
      %2790 = vrot.lane.b32.xlu0 %v2768, 64
      %v2791 = vpop.permute.xlu0 %2790
      %2792 = vrot.lane.b32.xlu0 %v2769, 64
      %v2793 = vpop.permute.xlu0 %2792
      %2802 = vst.msk [vmem:[#allocation6] sm:$0xf] %vm1328, %v2779
      %2803 = vst.msk [vmem:[#allocation6 + $0x8] sm:$0xf] %vm1328, %v2781
      %2804 = vst.msk [vmem:[#allocation6 + $0x10] sm:$0xf] %vm1328, %v2783
      %2805 = vst.msk [vmem:[#allocation6 + $0x18] sm:$0xf] %vm1328, %v2785
      %2806 = vst.msk [vmem:[#allocation6 + $0x20] sm:$0xf] %vm1328, %v2787
      %2807 = vst.msk [vmem:[#allocation6 + $0x28] sm:$0xf] %vm1328, %v2789
      %2808 = vst.msk [vmem:[#allocation6 + $0x30] sm:$0xf] %vm1328, %v2791
      %2809 = vst.msk [vmem:[#allocation6 + $0x38] sm:$0xf] %vm1328, %v2793
      %v2810 = vld [vmem:[%s1075 + $0x2] sm:$0xff]
      %v2811 = vld [vmem:[%s1075 + $0x12] sm:$0xff]
      %v2812 = vld [vmem:[%s1075 + $0x22] sm:$0xff]
      %v2813 = vld [vmem:[%s1075 + $0x32] sm:$0xff]
      %v2814 = vld [vmem:[%s1075 + $0x42] sm:$0xff]
      %v2815 = vld [vmem:[%s1075 + $0x52] sm:$0xff]
      %v2816 = vld [vmem:[%s1075 + $0x62] sm:$0xff]
      %v2817 = vld [vmem:[%s1075 + $0x72] sm:$0xff]
      %v2818 = vpack.c.bf16 %v2810, %v2810
      %v2819 = vpack.c.bf16 %v2811, %v2811
      %v2820 = vpack.c.bf16 %v2812, %v2812
      %v2821 = vpack.c.bf16 %v2813, %v2813
      %v2822 = vpack.c.bf16 %v2814, %v2814
      %v2823 = vpack.c.bf16 %v2815, %v2815
      %v2824 = vpack.c.bf16 %v2816, %v2816
      %v2825 = vpack.c.bf16 %v2817, %v2817
      %2834 = vrot.lane.b32.xlu0 %v2818, 80
      %v2835 = vpop.permute.xlu0 %2834
      %2836 = vrot.lane.b32.xlu0 %v2819, 80
      %v2837 = vpop.permute.xlu0 %2836
      %2838 = vrot.lane.b32.xlu0 %v2820, 80
      %v2839 = vpop.permute.xlu0 %2838
      %2840 = vrot.lane.b32.xlu0 %v2821, 80
      %v2841 = vpop.permute.xlu0 %2840
      %2842 = vrot.lane.b32.xlu0 %v2822, 80
      %v2843 = vpop.permute.xlu0 %2842
      %2844 = vrot.lane.b32.xlu0 %v2823, 80
      %v2845 = vpop.permute.xlu0 %2844
      %2846 = vrot.lane.b32.xlu0 %v2824, 80
      %v2847 = vpop.permute.xlu0 %2846
      %2848 = vrot.lane.b32.xlu0 %v2825, 80
      %v2849 = vpop.permute.xlu0 %2848
      %2858 = vst.msk [vmem:[#allocation6] sm:$0xf] %vm1385, %v2835
      %2859 = vst.msk [vmem:[#allocation6 + $0x8] sm:$0xf] %vm1385, %v2837
      %2860 = vst.msk [vmem:[#allocation6 + $0x10] sm:$0xf] %vm1385, %v2839
      %2861 = vst.msk [vmem:[#allocation6 + $0x18] sm:$0xf] %vm1385, %v2841
      %2862 = vst.msk [vmem:[#allocation6 + $0x20] sm:$0xf] %vm1385, %v2843
      %2863 = vst.msk [vmem:[#allocation6 + $0x28] sm:$0xf] %vm1385, %v2845
      %2864 = vst.msk [vmem:[#allocation6 + $0x30] sm:$0xf] %vm1385, %v2847
      %2865 = vst.msk [vmem:[#allocation6 + $0x38] sm:$0xf] %vm1385, %v2849
      %v2866 = vld [vmem:[%s1394] sm:$0xff]
      %v2867 = vld [vmem:[%s1394 + $0x10] sm:$0xff]
      %v2868 = vld [vmem:[%s1394 + $0x20] sm:$0xff]
      %v2869 = vld [vmem:[%s1394 + $0x30] sm:$0xff]
      %v2870 = vld [vmem:[%s1394 + $0x40] sm:$0xff]
      %v2871 = vld [vmem:[%s1394 + $0x50] sm:$0xff]
      %v2872 = vld [vmem:[%s1394 + $0x60] sm:$0xff]
      %v2873 = vld [vmem:[%s1394 + $0x70] sm:$0xff]
      %v2874 = vpack.c.bf16 %v2866, %v2866
      %v2875 = vpack.c.bf16 %v2867, %v2867
      %v2876 = vpack.c.bf16 %v2868, %v2868
      %v2877 = vpack.c.bf16 %v2869, %v2869
      %v2878 = vpack.c.bf16 %v2870, %v2870
      %v2879 = vpack.c.bf16 %v2871, %v2871
      %v2880 = vpack.c.bf16 %v2872, %v2872
      %v2881 = vpack.c.bf16 %v2873, %v2873
      %2890 = vrot.lane.b32.xlu0 %v2874, 96
      %v2891 = vpop.permute.xlu0 %2890
      %2892 = vrot.lane.b32.xlu0 %v2875, 96
      %v2893 = vpop.permute.xlu0 %2892
      %2894 = vrot.lane.b32.xlu0 %v2876, 96
      %v2895 = vpop.permute.xlu0 %2894
      %2896 = vrot.lane.b32.xlu0 %v2877, 96
      %v2897 = vpop.permute.xlu0 %2896
      %2898 = vrot.lane.b32.xlu0 %v2878, 96
      %v2899 = vpop.permute.xlu0 %2898
      %2900 = vrot.lane.b32.xlu0 %v2879, 96
      %v2901 = vpop.permute.xlu0 %2900
      %2902 = vrot.lane.b32.xlu0 %v2880, 96
      %v2903 = vpop.permute.xlu0 %2902
      %2904 = vrot.lane.b32.xlu0 %v2881, 96
      %v2905 = vpop.permute.xlu0 %2904
      %2914 = vst.msk [vmem:[#allocation6] sm:$0xf] %vm1443, %v2891
      %2915 = vst.msk [vmem:[#allocation6 + $0x8] sm:$0xf] %vm1443, %v2893
      %2916 = vst.msk [vmem:[#allocation6 + $0x10] sm:$0xf] %vm1443, %v2895
      %2917 = vst.msk [vmem:[#allocation6 + $0x18] sm:$0xf] %vm1443, %v2897
      %2918 = vst.msk [vmem:[#allocation6 + $0x20] sm:$0xf] %vm1443, %v2899
      %2919 = vst.msk [vmem:[#allocation6 + $0x28] sm:$0xf] %vm1443, %v2901
      %2920 = vst.msk [vmem:[#allocation6 + $0x30] sm:$0xf] %vm1443, %v2903
      %2921 = vst.msk [vmem:[#allocation6 + $0x38] sm:$0xf] %vm1443, %v2905
      %v2922 = vld [vmem:[%s1394 + $0x1] sm:$0xff]
      %v2923 = vld [vmem:[%s1394 + $0x11] sm:$0xff]
      %v2924 = vld [vmem:[%s1394 + $0x21] sm:$0xff]
      %v2925 = vld [vmem:[%s1394 + $0x31] sm:$0xff]
      %v2926 = vld [vmem:[%s1394 + $0x41] sm:$0xff]
      %v2927 = vld [vmem:[%s1394 + $0x51] sm:$0xff]
      %v2928 = vld [vmem:[%s1394 + $0x61] sm:$0xff]
      %v2929 = vld [vmem:[%s1394 + $0x71] sm:$0xff]
      %v2930 = vpack.c.bf16 %v2922, %v2922
      %v2931 = vpack.c.bf16 %v2923, %v2923
      %v2932 = vpack.c.bf16 %v2924, %v2924
      %v2933 = vpack.c.bf16 %v2925, %v2925
      %v2934 = vpack.c.bf16 %v2926, %v2926
      %v2935 = vpack.c.bf16 %v2927, %v2927
      %v2936 = vpack.c.bf16 %v2928, %v2928
      %v2937 = vpack.c.bf16 %v2929, %v2929
      %2946 = vrot.lane.b32.xlu0 %v2930, 112
      %v2947 = vpop.permute.xlu0 %2946
      %2948 = vrot.lane.b32.xlu0 %v2931, 112
      %v2949 = vpop.permute.xlu0 %2948
      %2950 = vrot.lane.b32.xlu0 %v2932, 112
      %v2951 = vpop.permute.xlu0 %2950
      %2952 = vrot.lane.b32.xlu0 %v2933, 112
      %v2953 = vpop.permute.xlu0 %2952
      %2954 = vrot.lane.b32.xlu0 %v2934, 112
      %v2955 = vpop.permute.xlu0 %2954
      %2956 = vrot.lane.b32.xlu0 %v2935, 112
      %v2957 = vpop.permute.xlu0 %2956
      %2958 = vrot.lane.b32.xlu0 %v2936, 112
      %v2959 = vpop.permute.xlu0 %2958
      %2960 = vrot.lane.b32.xlu0 %v2937, 112
      %v2961 = vpop.permute.xlu0 %2960
      %2970 = vst.msk [vmem:[#allocation6] sm:$0xf] %vm1500, %v2947
      %2971 = vst.msk [vmem:[#allocation6 + $0x8] sm:$0xf] %vm1500, %v2949
      %2972 = vst.msk [vmem:[#allocation6 + $0x10] sm:$0xf] %vm1500, %v2951
      %2973 = vst.msk [vmem:[#allocation6 + $0x18] sm:$0xf] %vm1500, %v2953
      %2974 = vst.msk [vmem:[#allocation6 + $0x20] sm:$0xf] %vm1500, %v2955
      %2975 = vst.msk [vmem:[#allocation6 + $0x28] sm:$0xf] %vm1500, %v2957
      %2976 = vst.msk [vmem:[#allocation6 + $0x30] sm:$0xf] %vm1500, %v2959
      %2977 = vst.msk [vmem:[#allocation6 + $0x38] sm:$0xf] %vm1500, %v2961
      %v2978 = vld [vmem:[%s1394 + $0x2] sm:$0xff]
      %v2979 = vld [vmem:[%s1394 + $0x12] sm:$0xff]
      %v2980 = vld [vmem:[%s1394 + $0x22] sm:$0xff]
      %v2981 = vld [vmem:[%s1394 + $0x32] sm:$0xff]
      %v2982 = vld [vmem:[%s1394 + $0x42] sm:$0xff]
      %v2983 = vld [vmem:[%s1394 + $0x52] sm:$0xff]
      %v2984 = vld [vmem:[%s1394 + $0x62] sm:$0xff]
      %v2985 = vld [vmem:[%s1394 + $0x72] sm:$0xff]
      %v2986 = vpack.c.bf16 %v2978, %v2978
      %v2987 = vpack.c.bf16 %v2979, %v2979
      %v2988 = vpack.c.bf16 %v2980, %v2980
      %v2989 = vpack.c.bf16 %v2981, %v2981
      %v2990 = vpack.c.bf16 %v2982, %v2982
      %v2991 = vpack.c.bf16 %v2983, %v2983
      %v2992 = vpack.c.bf16 %v2984, %v2984
      %v2993 = vpack.c.bf16 %v2985, %v2985
      %2994 = vst.msk [vmem:[#allocation6 + $0x4] sm:$0xf] %vm1100, %v2986
      %2995 = vst.msk [vmem:[#allocation6 + $0xc] sm:$0xf] %vm1100, %v2987
      %2996 = vst.msk [vmem:[#allocation6 + $0x14] sm:$0xf] %vm1100, %v2988
      %2997 = vst.msk [vmem:[#allocation6 + $0x1c] sm:$0xf] %vm1100, %v2989
      %2998 = vst.msk [vmem:[#allocation6 + $0x24] sm:$0xf] %vm1100, %v2990
      %2999 = vst.msk [vmem:[#allocation6 + $0x2c] sm:$0xf] %vm1100, %v2991
      %3000 = vst.msk [vmem:[#allocation6 + $0x34] sm:$0xf] %vm1100, %v2992
      %3001 = vst.msk [vmem:[#allocation6 + $0x3c] sm:$0xf] %vm1100, %v2993
      %v3002 = vld [vmem:[#allocation6] sm:$0xff]
      %v3003 = vld [vmem:[#allocation6 + $0x8] sm:$0xff]
      %v3004 = vld [vmem:[#allocation6 + $0x10] sm:$0xff]
      %v3005 = vld [vmem:[#allocation6 + $0x18] sm:$0xff]
      %v3006 = vld [vmem:[#allocation6 + $0x20] sm:$0xff]
      %v3007 = vld [vmem:[#allocation6 + $0x28] sm:$0xff]
      %v3008 = vld [vmem:[#allocation6 + $0x30] sm:$0xff]
      %v3009 = vld [vmem:[#allocation6 + $0x38] sm:$0xff]
      %v3010 = vld [vmem:[%s9] sm:$0xf]
      %v3011 = vld [vmem:[%s9 + $0x4] sm:$0xf]
      %v3012 = vld [vmem:[%s9 + $0x8] sm:$0xf]
      %v3013 = vld [vmem:[%s9 + $0xc] sm:$0xf]
      %v3014 = vld [vmem:[%s9 + $0x10] sm:$0xf]
      %v3015 = vld [vmem:[%s9 + $0x14] sm:$0xf]
      %v3016 = vld [vmem:[%s9 + $0x18] sm:$0xf]
      %v3017 = vld [vmem:[%s9 + $0x1c] sm:$0xf]
      %v3018 = vld [vmem:[%s9 + $0x20] sm:$0xf]
      %v3019 = vld [vmem:[%s9 + $0x24] sm:$0xf]
      %v3020 = vld [vmem:[%s9 + $0x28] sm:$0xf]
      %v3021 = vld [vmem:[%s9 + $0x2c] sm:$0xf]
      %v3022 = vld [vmem:[%s9 + $0x30] sm:$0xf]
      %v3023 = vld [vmem:[%s9 + $0x34] sm:$0xf]
      %v3024 = vld [vmem:[%s9 + $0x38] sm:$0xf]
      %v3025 = vld [vmem:[%s9 + $0x3c] sm:$0xf]
      %v3026 = vld [vmem:[%s9 + $0x40] sm:$0xf]
      %v3027 = vld [vmem:[%s9 + $0x44] sm:$0xf]
      %v3036 = vunpack.c.l.b16 %v3002
      %v3037 = vunpack.c.h.b16 %v3002
      %v3038 = vunpack.c.l.b16 %v3003
      %v3039 = vunpack.c.h.b16 %v3003
      %v3040 = vunpack.c.l.b16 %v3004
      %v3041 = vunpack.c.h.b16 %v3004
      %v3042 = vunpack.c.l.b16 %v3005
      %v3043 = vunpack.c.h.b16 %v3005
      %v3044 = vunpack.c.l.b16 %v3006
      %v3045 = vunpack.c.h.b16 %v3006
      %v3046 = vunpack.c.l.b16 %v3007
      %v3047 = vunpack.c.h.b16 %v3007
      %v3048 = vunpack.c.l.b16 %v3008
      %v3049 = vunpack.c.h.b16 %v3008
      %v3050 = vunpack.c.l.b16 %v3009
      %v3051 = vunpack.c.h.b16 %v3009
      %v3052 = vpack.c.b16 %v3038, %v3036
      %v3053 = vpack.c.b16 %v3039, %v3037
      %v3054 = vpack.c.b16 %v3042, %v3040
      %v3055 = vpack.c.b16 %v3043, %v3041
      %v3056 = vpack.c.b16 %v3046, %v3044
      %v3057 = vpack.c.b16 %v3047, %v3045
      %v3058 = vpack.c.b16 %v3050, %v3048
      %v3059 = vpack.c.b16 %v3051, %v3049
      %v3082 = vunpack.c.l.b16 %v3010
      %v3083 = vunpack.c.l.b16 %v3011
      %v3084 = vunpack.c.l.b16 %v3012
      %v3085 = vunpack.c.l.b16 %v3013
      %v3086 = vunpack.c.l.b16 %v3014
      %v3087 = vunpack.c.l.b16 %v3015
      %v3088 = vunpack.c.l.b16 %v3016
      %v3089 = vunpack.c.l.b16 %v3017
      %v3090 = vunpack.c.l.b16 %v3018
      %v3091 = vunpack.c.l.b16 %v3019
      %v3092 = vunpack.c.l.b16 %v3020
      %v3093 = vunpack.c.l.b16 %v3021
      %v3094 = vunpack.c.l.b16 %v3022
      %v3095 = vunpack.c.l.b16 %v3023
      %v3096 = vunpack.c.l.b16 %v3024
      %v3097 = vunpack.c.l.b16 %v3025
      %v3098 = vunpack.c.l.b16 %v3026
      %v3099 = vunpack.c.l.b16 %v3027
      %v3100 = vpack.c.b16 %v3083, %v3082
      %v3101 = vpack.c.b16 %v3085, %v3084
      %v3102 = vpack.c.b16 %v3087, %v3086
      %v3103 = vpack.c.b16 %v3089, %v3088
      %v3104 = vpack.c.b16 %v3091, %v3090
      %v3105 = vpack.c.b16 %v3093, %v3092
      %v3106 = vpack.c.b16 %v3095, %v3094
      %v3107 = vpack.c.b16 %v3097, %v3096
      %v3108 = vpack.c.b16 %v3099, %v3098
      %v3119 = vsel %vm414, %v3053, 0
      %v3122 = vsel %vm414, %v3055, 0
      %v3125 = vsel %vm414, %v3057, 0
      %v3128 = vsel %vm414, %v3059, 0
      %3130 = vmatpush.bf16.msra.mxu0 %v3107
      %3131 = vmatpush.bf16.msra.mxu0 %v3106
      %3132 = vmatpush.bf16.msra.mxu0 %v3105
      %3133 = vmatpush.bf16.msra.mxu0 %v3104
      %3134 = vmatpush.bf16.msra.mxu0 %v3103
      %3135 = vmatpush.bf16.msra.mxu0 %v3102
      %3136 = vmatpush.bf16.msra.mxu0 %v3101
      %3137 = vmatpush.bf16.msra.mxu0 %v3100
      %3138 = vmatmul.bf16.gmra.mxu0 %v3052
      %v3139 = vpop.f32.mrf.mxu0
      %v3140 = vadd.f32 0.0, %v3139
      %v3141 = vpop.f32.mrf.mxu0
      %v3142 = vadd.f32 0.0, %v3141
      %3143 = vmatmul.bf16.gmra.mxu0 %v3054
      %v3144 = vpop.f32.mrf.mxu0
      %v3145 = vadd.f32 0.0, %v3144
      %v3146 = vpop.f32.mrf.mxu0
      %v3147 = vadd.f32 0.0, %v3146
      %3148 = vmatmul.bf16.gmra.mxu0 %v3056
      %v3149 = vpop.f32.mrf.mxu0
      %v3150 = vadd.f32 0.0, %v3149
      %v3151 = vpop.f32.mrf.mxu0
      %v3152 = vadd.f32 0.0, %v3151
      %3153 = vmatmul.bf16.gmra.mxu0 %v3058
      %v3154 = vpop.f32.mrf.mxu0
      %v3155 = vadd.f32 0.0, %v3154
      %v3156 = vpop.f32.mrf.mxu0
      %v3157 = vadd.f32 0.0, %v3156
      %3158 = vdwg.mxu0
      %3159 = vmatpush.bf16.msra.mxu0 0
      %3160 = vmatpush.bf16.msra.mxu0 0
      %3161 = vmatpush.bf16.msra.mxu0 0
      %3162 = vmatpush.bf16.msra.mxu0 0
      %3163 = vmatpush.bf16.msra.mxu0 0
      %3164 = vmatpush.bf16.msra.mxu0 0
      %3165 = vmatpush.bf16.msra.mxu0 0
      %3166 = vmatpush.bf16.msra.mxu0 %v3108
      %3167 = vmatmul.bf16.gmra.mxu0 %v3119
      %v3168 = vpop.f32.mrf.mxu0
      %v3169 = vadd.f32 %v3140, %v3168
      %v3170 = vpop.f32.mrf.mxu0
      %v3171 = vadd.f32 %v3142, %v3170
      %3172 = vmatmul.bf16.gmra.mxu0 %v3122
      %v3173 = vpop.f32.mrf.mxu0
      %v3174 = vadd.f32 %v3145, %v3173
      %v3175 = vpop.f32.mrf.mxu0
      %v3176 = vadd.f32 %v3147, %v3175
      %3177 = vmatmul.bf16.gmra.mxu0 %v3125
      %v3178 = vpop.f32.mrf.mxu0
      %v3179 = vadd.f32 %v3150, %v3178
      %v3180 = vpop.f32.mrf.mxu0
      %v3181 = vadd.f32 %v3152, %v3180
      %3182 = vmatmul.bf16.gmra.mxu0 %v3128
      %v3183 = vpop.f32.mrf.mxu0
      %v3184 = vadd.f32 %v3155, %v3183
      %v3185 = vpop.f32.mrf.mxu0
      %v3186 = vadd.f32 %v3157, %v3185
      %3187 = vdwg.mxu0
      %v3188 = vlaneseq
      %v3189 = vand.u32 %v3188, 127
      %vm3190 = vcmp.eq.s32.totalorder %v3189, 1
      %v3191 = vsel %vm3190, %v2538, %v3169
      %v3192 = vsel %vm3190, %v2539, %v3171
      %v3193 = vsel %vm3190, %v2540, %v3174
      %v3194 = vsel %vm3190, %v2541, %v3176
      %v3195 = vsel %vm3190, %v2542, %v3179
      %v3196 = vsel %vm3190, %v2543, %v3181
      %v3197 = vsel %vm3190, %v2544, %v3184
      %v3198 = vsel %vm3190, %v2545, %v3186
      %s3199 = scalar_lea.vmem [#allocation4], 16
      %3200 = vst.msk [vmem:[%s3199 + $0x1] sm:$0xff] %vm442, %v3191
      %3201 = vst.msk [vmem:[%s3199 + $0x11] sm:$0xff] %vm442, %v3192
      %3202 = vst.msk [vmem:[%s3199 + $0x21] sm:$0xff] %vm442, %v3193
      %3203 = vst.msk [vmem:[%s3199 + $0x31] sm:$0xff] %vm442, %v3194
      %3204 = vst.msk [vmem:[%s3199 + $0x41] sm:$0xff] %vm442, %v3195
      %3205 = vst.msk [vmem:[%s3199 + $0x51] sm:$0xff] %vm442, %v3196
      %3206 = vst.msk [vmem:[%s3199 + $0x61] sm:$0xff] %vm442, %v3197
      %3207 = vst.msk [vmem:[%s3199 + $0x71] sm:$0xff] %vm442, %v3198
      %v3208 = vld [vmem:[#allocation4] sm:$0xff]
      %v3209 = vld [vmem:[#allocation4 + $0x10] sm:$0xff]
      %v3210 = vld [vmem:[#allocation4 + $0x20] sm:$0xff]
      %v3211 = vld [vmem:[#allocation4 + $0x30] sm:$0xff]
      %v3212 = vld [vmem:[#allocation4 + $0x40] sm:$0xff]
      %v3213 = vld [vmem:[#allocation4 + $0x50] sm:$0xff]
      %v3214 = vld [vmem:[#allocation4 + $0x60] sm:$0xff]
      %v3215 = vld [vmem:[#allocation4 + $0x70] sm:$0xff]
      %3216 = vst.msk [vmem:[#allocation7] sm:$0xff] %vm442, %v3208
      %3217 = vst.msk [vmem:[#allocation7 + $0x8] sm:$0xff] %vm442, %v3209
      %3218 = vst.msk [vmem:[#allocation7 + $0x10] sm:$0xff] %vm442, %v3210
      %3219 = vst.msk [vmem:[#allocation7 + $0x18] sm:$0xff] %vm442, %v3211
      %3220 = vst.msk [vmem:[#allocation7 + $0x20] sm:$0xff] %vm442, %v3212
      %3221 = vst.msk [vmem:[#allocation7 + $0x28] sm:$0xff] %vm442, %v3213
      %3222 = vst.msk [vmem:[#allocation7 + $0x30] sm:$0xff] %vm442, %v3214
      %3223 = vst.msk [vmem:[#allocation7 + $0x38] sm:$0xff] %vm442, %v3215
      %v3224 = vld [vmem:[#allocation4 + $0x1] sm:$0xff]
      %v3225 = vld [vmem:[#allocation4 + $0x11] sm:$0xff]
      %v3226 = vld [vmem:[#allocation4 + $0x21] sm:$0xff]
      %v3227 = vld [vmem:[#allocation4 + $0x31] sm:$0xff]
      %v3228 = vld [vmem:[#allocation4 + $0x41] sm:$0xff]
      %v3229 = vld [vmem:[#allocation4 + $0x51] sm:$0xff]
      %v3230 = vld [vmem:[#allocation4 + $0x61] sm:$0xff]
      %v3231 = vld [vmem:[#allocation4 + $0x71] sm:$0xff]
      %3240 = vrot.lane.b32.xlu0 %v3224, 8
      %v3241 = vpop.permute.xlu0 %3240
      %3242 = vrot.lane.b32.xlu0 %v3225, 8
      %v3243 = vpop.permute.xlu0 %3242
      %3244 = vrot.lane.b32.xlu0 %v3226, 8
      %v3245 = vpop.permute.xlu0 %3244
      %3246 = vrot.lane.b32.xlu0 %v3227, 8
      %v3247 = vpop.permute.xlu0 %3246
      %3248 = vrot.lane.b32.xlu0 %v3228, 8
      %v3249 = vpop.permute.xlu0 %3248
      %3250 = vrot.lane.b32.xlu0 %v3229, 8
      %v3251 = vpop.permute.xlu0 %3250
      %3252 = vrot.lane.b32.xlu0 %v3230, 8
      %v3253 = vpop.permute.xlu0 %3252
      %3254 = vrot.lane.b32.xlu0 %v3231, 8
      %v3255 = vpop.permute.xlu0 %3254
      %vm3264 = vcmask 130112
      %3265 = vst.msk [vmem:[#allocation7] sm:$0xff] %vm3264, %v3241
      %3266 = vst.msk [vmem:[#allocation7 + $0x8] sm:$0xff] %vm3264, %v3243
      %3267 = vst.msk [vmem:[#allocation7 + $0x10] sm:$0xff] %vm3264, %v3245
      %3268 = vst.msk [vmem:[#allocation7 + $0x18] sm:$0xff] %vm3264, %v3247
      %3269 = vst.msk [vmem:[#allocation7 + $0x20] sm:$0xff] %vm3264, %v3249
      %3270 = vst.msk [vmem:[#allocation7 + $0x28] sm:$0xff] %vm3264, %v3251
      %3271 = vst.msk [vmem:[#allocation7 + $0x30] sm:$0xff] %vm3264, %v3253
      %3272 = vst.msk [vmem:[#allocation7 + $0x38] sm:$0xff] %vm3264, %v3255
      %v3273 = vld [vmem:[#allocation4 + $0x2] sm:$0xff]
      %v3274 = vld [vmem:[#allocation4 + $0x12] sm:$0xff]
      %v3275 = vld [vmem:[#allocation4 + $0x22] sm:$0xff]
      %v3276 = vld [vmem:[#allocation4 + $0x32] sm:$0xff]
      %v3277 = vld [vmem:[#allocation4 + $0x42] sm:$0xff]
      %v3278 = vld [vmem:[#allocation4 + $0x52] sm:$0xff]
      %v3279 = vld [vmem:[#allocation4 + $0x62] sm:$0xff]
      %v3280 = vld [vmem:[#allocation4 + $0x72] sm:$0xff]
      %3289 = vrot.lane.b32.xlu0 %v3273, 16
      %v3290 = vpop.permute.xlu0 %3289
      %3291 = vrot.lane.b32.xlu0 %v3274, 16
      %v3292 = vpop.permute.xlu0 %3291
      %3293 = vrot.lane.b32.xlu0 %v3275, 16
      %v3294 = vpop.permute.xlu0 %3293
      %3295 = vrot.lane.b32.xlu0 %v3276, 16
      %v3296 = vpop.permute.xlu0 %3295
      %3297 = vrot.lane.b32.xlu0 %v3277, 16
      %v3298 = vpop.permute.xlu0 %3297
      %3299 = vrot.lane.b32.xlu0 %v3278, 16
      %v3300 = vpop.permute.xlu0 %3299
      %3301 = vrot.lane.b32.xlu0 %v3279, 16
      %v3302 = vpop.permute.xlu0 %3301
      %3303 = vrot.lane.b32.xlu0 %v3280, 16
      %v3304 = vpop.permute.xlu0 %3303
      %vm3313 = vcmask 195712
      %3314 = vst.msk [vmem:[#allocation7] sm:$0xff] %vm3313, %v3290
      %3315 = vst.msk [vmem:[#allocation7 + $0x8] sm:$0xff] %vm3313, %v3292
      %3316 = vst.msk [vmem:[#allocation7 + $0x10] sm:$0xff] %vm3313, %v3294
      %3317 = vst.msk [vmem:[#allocation7 + $0x18] sm:$0xff] %vm3313, %v3296
      %3318 = vst.msk [vmem:[#allocation7 + $0x20] sm:$0xff] %vm3313, %v3298
      %3319 = vst.msk [vmem:[#allocation7 + $0x28] sm:$0xff] %vm3313, %v3300
      %3320 = vst.msk [vmem:[#allocation7 + $0x30] sm:$0xff] %vm3313, %v3302
      %3321 = vst.msk [vmem:[#allocation7 + $0x38] sm:$0xff] %vm3313, %v3304
      %v3322 = vld [vmem:[%s3199] sm:$0xff]
      %v3323 = vld [vmem:[%s3199 + $0x10] sm:$0xff]
      %v3324 = vld [vmem:[%s3199 + $0x20] sm:$0xff]
      %v3325 = vld [vmem:[%s3199 + $0x30] sm:$0xff]
      %v3326 = vld [vmem:[%s3199 + $0x40] sm:$0xff]
      %v3327 = vld [vmem:[%s3199 + $0x50] sm:$0xff]
      %v3328 = vld [vmem:[%s3199 + $0x60] sm:$0xff]
      %v3329 = vld [vmem:[%s3199 + $0x70] sm:$0xff]
      %3338 = vrot.lane.b32.xlu0 %v3322, 24
      %v3339 = vpop.permute.xlu0 %3338
      %3340 = vrot.lane.b32.xlu0 %v3323, 24
      %v3341 = vpop.permute.xlu0 %3340
      %3342 = vrot.lane.b32.xlu0 %v3324, 24
      %v3343 = vpop.permute.xlu0 %3342
      %3344 = vrot.lane.b32.xlu0 %v3325, 24
      %v3345 = vpop.permute.xlu0 %3344
      %3346 = vrot.lane.b32.xlu0 %v3326, 24
      %v3347 = vpop.permute.xlu0 %3346
      %3348 = vrot.lane.b32.xlu0 %v3327, 24
      %v3349 = vpop.permute.xlu0 %3348
      %3350 = vrot.lane.b32.xlu0 %v3328, 24
      %v3351 = vpop.permute.xlu0 %3350
      %3352 = vrot.lane.b32.xlu0 %v3329, 24
      %v3353 = vpop.permute.xlu0 %3352
      %vm3362 = vcmask 261312
      %3363 = vst.msk [vmem:[#allocation7] sm:$0xff] %vm3362, %v3339
      %3364 = vst.msk [vmem:[#allocation7 + $0x8] sm:$0xff] %vm3362, %v3341
      %3365 = vst.msk [vmem:[#allocation7 + $0x10] sm:$0xff] %vm3362, %v3343
      %3366 = vst.msk [vmem:[#allocation7 + $0x18] sm:$0xff] %vm3362, %v3345
      %3367 = vst.msk [vmem:[#allocation7 + $0x20] sm:$0xff] %vm3362, %v3347
      %3368 = vst.msk [vmem:[#allocation7 + $0x28] sm:$0xff] %vm3362, %v3349
      %3369 = vst.msk [vmem:[#allocation7 + $0x30] sm:$0xff] %vm3362, %v3351
      %3370 = vst.msk [vmem:[#allocation7 + $0x38] sm:$0xff] %vm3362, %v3353
      %v3371 = vld [vmem:[%s3199 + $0x1] sm:$0xff]
      %v3372 = vld [vmem:[%s3199 + $0x11] sm:$0xff]
      %v3373 = vld [vmem:[%s3199 + $0x21] sm:$0xff]
      %v3374 = vld [vmem:[%s3199 + $0x31] sm:$0xff]
      %v3375 = vld [vmem:[%s3199 + $0x41] sm:$0xff]
      %v3376 = vld [vmem:[%s3199 + $0x51] sm:$0xff]
      %v3377 = vld [vmem:[%s3199 + $0x61] sm:$0xff]
      %v3378 = vld [vmem:[%s3199 + $0x71] sm:$0xff]
      %3387 = vrot.lane.b32.xlu0 %v3371, 32
      %v3388 = vpop.permute.xlu0 %3387
      %3389 = vrot.lane.b32.xlu0 %v3372, 32
      %v3390 = vpop.permute.xlu0 %3389
      %3391 = vrot.lane.b32.xlu0 %v3373, 32
      %v3392 = vpop.permute.xlu0 %3391
      %3393 = vrot.lane.b32.xlu0 %v3374, 32
      %v3394 = vpop.permute.xlu0 %3393
      %3395 = vrot.lane.b32.xlu0 %v3375, 32
      %v3396 = vpop.permute.xlu0 %3395
      %3397 = vrot.lane.b32.xlu0 %v3376, 32
      %v3398 = vpop.permute.xlu0 %3397
      %3399 = vrot.lane.b32.xlu0 %v3377, 32
      %v3400 = vpop.permute.xlu0 %3399
      %3401 = vrot.lane.b32.xlu0 %v3378, 32
      %v3402 = vpop.permute.xlu0 %3401
      %vm3411 = vcmask 326912
      %3412 = vst.msk [vmem:[#allocation7] sm:$0xff] %vm3411, %v3388
      %3413 = vst.msk [vmem:[#allocation7 + $0x8] sm:$0xff] %vm3411, %v3390
      %3414 = vst.msk [vmem:[#allocation7 + $0x10] sm:$0xff] %vm3411, %v3392
      %3415 = vst.msk [vmem:[#allocation7 + $0x18] sm:$0xff] %vm3411, %v3394
      %3416 = vst.msk [vmem:[#allocation7 + $0x20] sm:$0xff] %vm3411, %v3396
      %3417 = vst.msk [vmem:[#allocation7 + $0x28] sm:$0xff] %vm3411, %v3398
      %3418 = vst.msk [vmem:[#allocation7 + $0x30] sm:$0xff] %vm3411, %v3400
      %3419 = vst.msk [vmem:[#allocation7 + $0x38] sm:$0xff] %vm3411, %v3402
      %v3420 = vld [vmem:[%s3199 + $0x2] sm:$0xff]
      %v3421 = vld [vmem:[%s3199 + $0x12] sm:$0xff]
      %v3422 = vld [vmem:[%s3199 + $0x22] sm:$0xff]
      %v3423 = vld [vmem:[%s3199 + $0x32] sm:$0xff]
      %v3424 = vld [vmem:[%s3199 + $0x42] sm:$0xff]
      %v3425 = vld [vmem:[%s3199 + $0x52] sm:$0xff]
      %v3426 = vld [vmem:[%s3199 + $0x62] sm:$0xff]
      %v3427 = vld [vmem:[%s3199 + $0x72] sm:$0xff]
      %3436 = vrot.lane.b32.xlu0 %v3420, 40
      %v3437 = vpop.permute.xlu0 %3436
      %3438 = vrot.lane.b32.xlu0 %v3421, 40
      %v3439 = vpop.permute.xlu0 %3438
      %3440 = vrot.lane.b32.xlu0 %v3422, 40
      %v3441 = vpop.permute.xlu0 %3440
      %3442 = vrot.lane.b32.xlu0 %v3423, 40
      %v3443 = vpop.permute.xlu0 %3442
      %3444 = vrot.lane.b32.xlu0 %v3424, 40
      %v3445 = vpop.permute.xlu0 %3444
      %3446 = vrot.lane.b32.xlu0 %v3425, 40
      %v3447 = vpop.permute.xlu0 %3446
      %3448 = vrot.lane.b32.xlu0 %v3426, 40
      %v3449 = vpop.permute.xlu0 %3448
      %3450 = vrot.lane.b32.xlu0 %v3427, 40
      %v3451 = vpop.permute.xlu0 %3450
      %vm3460 = vcmask 392512
      %3461 = vst.msk [vmem:[#allocation7] sm:$0xff] %vm3460, %v3437
      %3462 = vst.msk [vmem:[#allocation7 + $0x8] sm:$0xff] %vm3460, %v3439
      %3463 = vst.msk [vmem:[#allocation7 + $0x10] sm:$0xff] %vm3460, %v3441
      %3464 = vst.msk [vmem:[#allocation7 + $0x18] sm:$0xff] %vm3460, %v3443
      %3465 = vst.msk [vmem:[#allocation7 + $0x20] sm:$0xff] %vm3460, %v3445
      %3466 = vst.msk [vmem:[#allocation7 + $0x28] sm:$0xff] %vm3460, %v3447
      %3467 = vst.msk [vmem:[#allocation7 + $0x30] sm:$0xff] %vm3460, %v3449
      %3468 = vst.msk [vmem:[#allocation7 + $0x38] sm:$0xff] %vm3460, %v3451
      %s3469 = scalar_lea.vmem [#allocation4], 32
      %v3470 = vld [vmem:[%s3469] sm:$0xff]
      %v3471 = vld [vmem:[%s3469 + $0x10] sm:$0xff]
      %v3472 = vld [vmem:[%s3469 + $0x20] sm:$0xff]
      %v3473 = vld [vmem:[%s3469 + $0x30] sm:$0xff]
      %v3474 = vld [vmem:[%s3469 + $0x40] sm:$0xff]
      %v3475 = vld [vmem:[%s3469 + $0x50] sm:$0xff]
      %v3476 = vld [vmem:[%s3469 + $0x60] sm:$0xff]
      %v3477 = vld [vmem:[%s3469 + $0x70] sm:$0xff]
      %3486 = vrot.lane.b32.xlu0 %v3470, 48
      %v3487 = vpop.permute.xlu0 %3486
      %3488 = vrot.lane.b32.xlu0 %v3471, 48
      %v3489 = vpop.permute.xlu0 %3488
      %3490 = vrot.lane.b32.xlu0 %v3472, 48
      %v3491 = vpop.permute.xlu0 %3490
      %3492 = vrot.lane.b32.xlu0 %v3473, 48
      %v3493 = vpop.permute.xlu0 %3492
      %3494 = vrot.lane.b32.xlu0 %v3474, 48
      %v3495 = vpop.permute.xlu0 %3494
      %3496 = vrot.lane.b32.xlu0 %v3475, 48
      %v3497 = vpop.permute.xlu0 %3496
      %3498 = vrot.lane.b32.xlu0 %v3476, 48
      %v3499 = vpop.permute.xlu0 %3498
      %3500 = vrot.lane.b32.xlu0 %v3477, 48
      %v3501 = vpop.permute.xlu0 %3500
      %vm3510 = vcmask 458112
      %3511 = vst.msk [vmem:[#allocation7] sm:$0xff] %vm3510, %v3487
      %3512 = vst.msk [vmem:[#allocation7 + $0x8] sm:$0xff] %vm3510, %v3489
      %3513 = vst.msk [vmem:[#allocation7 + $0x10] sm:$0xff] %vm3510, %v3491
      %3514 = vst.msk [vmem:[#allocation7 + $0x18] sm:$0xff] %vm3510, %v3493
      %3515 = vst.msk [vmem:[#allocation7 + $0x20] sm:$0xff] %vm3510, %v3495
      %3516 = vst.msk [vmem:[#allocation7 + $0x28] sm:$0xff] %vm3510, %v3497
      %3517 = vst.msk [vmem:[#allocation7 + $0x30] sm:$0xff] %vm3510, %v3499
      %3518 = vst.msk [vmem:[#allocation7 + $0x38] sm:$0xff] %vm3510, %v3501
      %v3519 = vld [vmem:[%s3469 + $0x1] sm:$0xff]
      %v3520 = vld [vmem:[%s3469 + $0x11] sm:$0xff]
      %v3521 = vld [vmem:[%s3469 + $0x21] sm:$0xff]
      %v3522 = vld [vmem:[%s3469 + $0x31] sm:$0xff]
      %v3523 = vld [vmem:[%s3469 + $0x41] sm:$0xff]
      %v3524 = vld [vmem:[%s3469 + $0x51] sm:$0xff]
      %v3525 = vld [vmem:[%s3469 + $0x61] sm:$0xff]
      %v3526 = vld [vmem:[%s3469 + $0x71] sm:$0xff]
      %3535 = vrot.lane.b32.xlu0 %v3519, 56
      %v3536 = vpop.permute.xlu0 %3535
      %3537 = vrot.lane.b32.xlu0 %v3520, 56
      %v3538 = vpop.permute.xlu0 %3537
      %3539 = vrot.lane.b32.xlu0 %v3521, 56
      %v3540 = vpop.permute.xlu0 %3539
      %3541 = vrot.lane.b32.xlu0 %v3522, 56
      %v3542 = vpop.permute.xlu0 %3541
      %3543 = vrot.lane.b32.xlu0 %v3523, 56
      %v3544 = vpop.permute.xlu0 %3543
      %3545 = vrot.lane.b32.xlu0 %v3524, 56
      %v3546 = vpop.permute.xlu0 %3545
      %3547 = vrot.lane.b32.xlu0 %v3525, 56
      %v3548 = vpop.permute.xlu0 %3547
      %3549 = vrot.lane.b32.xlu0 %v3526, 56
      %v3550 = vpop.permute.xlu0 %3549
      %vm3559 = vcmask 523712
      %3560 = vst.msk [vmem:[#allocation7] sm:$0xff] %vm3559, %v3536
      %3561 = vst.msk [vmem:[#allocation7 + $0x8] sm:$0xff] %vm3559, %v3538
      %3562 = vst.msk [vmem:[#allocation7 + $0x10] sm:$0xff] %vm3559, %v3540
      %3563 = vst.msk [vmem:[#allocation7 + $0x18] sm:$0xff] %vm3559, %v3542
      %3564 = vst.msk [vmem:[#allocation7 + $0x20] sm:$0xff] %vm3559, %v3544
      %3565 = vst.msk [vmem:[#allocation7 + $0x28] sm:$0xff] %vm3559, %v3546
      %3566 = vst.msk [vmem:[#allocation7 + $0x30] sm:$0xff] %vm3559, %v3548
      %3567 = vst.msk [vmem:[#allocation7 + $0x38] sm:$0xff] %vm3559, %v3550
      %v3568 = vld [vmem:[%s3469 + $0x2] sm:$0xff]
      %v3569 = vld [vmem:[%s3469 + $0x12] sm:$0xff]
      %v3570 = vld [vmem:[%s3469 + $0x22] sm:$0xff]
      %v3571 = vld [vmem:[%s3469 + $0x32] sm:$0xff]
      %v3572 = vld [vmem:[%s3469 + $0x42] sm:$0xff]
      %v3573 = vld [vmem:[%s3469 + $0x52] sm:$0xff]
      %v3574 = vld [vmem:[%s3469 + $0x62] sm:$0xff]
      %v3575 = vld [vmem:[%s3469 + $0x72] sm:$0xff]
      %3584 = vrot.lane.b32.xlu0 %v3568, 64
      %v3585 = vpop.permute.xlu0 %3584
      %3586 = vrot.lane.b32.xlu0 %v3569, 64
      %v3587 = vpop.permute.xlu0 %3586
      %3588 = vrot.lane.b32.xlu0 %v3570, 64
      %v3589 = vpop.permute.xlu0 %3588
      %3590 = vrot.lane.b32.xlu0 %v3571, 64
      %v3591 = vpop.permute.xlu0 %3590
      %3592 = vrot.lane.b32.xlu0 %v3572, 64
      %v3593 = vpop.permute.xlu0 %3592
      %3594 = vrot.lane.b32.xlu0 %v3573, 64
      %v3595 = vpop.permute.xlu0 %3594
      %3596 = vrot.lane.b32.xlu0 %v3574, 64
      %v3597 = vpop.permute.xlu0 %3596
      %3598 = vrot.lane.b32.xlu0 %v3575, 64
      %v3599 = vpop.permute.xlu0 %3598
      %vm3608 = vcmask 589312
      %3609 = vst.msk [vmem:[#allocation7] sm:$0xff] %vm3608, %v3585
      %3610 = vst.msk [vmem:[#allocation7 + $0x8] sm:$0xff] %vm3608, %v3587
      %3611 = vst.msk [vmem:[#allocation7 + $0x10] sm:$0xff] %vm3608, %v3589
      %3612 = vst.msk [vmem:[#allocation7 + $0x18] sm:$0xff] %vm3608, %v3591
      %3613 = vst.msk [vmem:[#allocation7 + $0x20] sm:$0xff] %vm3608, %v3593
      %3614 = vst.msk [vmem:[#allocation7 + $0x28] sm:$0xff] %vm3608, %v3595
      %3615 = vst.msk [vmem:[#allocation7 + $0x30] sm:$0xff] %vm3608, %v3597
      %3616 = vst.msk [vmem:[#allocation7 + $0x38] sm:$0xff] %vm3608, %v3599
      %v3617 = vld [vmem:[#allocation7] sm:$0xff]
      %v3618 = vld [vmem:[#allocation7 + $0x8] sm:$0xff]
      %v3619 = vld [vmem:[#allocation7 + $0x10] sm:$0xff]
      %v3620 = vld [vmem:[#allocation7 + $0x18] sm:$0xff]
      %v3621 = vld [vmem:[#allocation7 + $0x20] sm:$0xff]
      %v3622 = vld [vmem:[#allocation7 + $0x28] sm:$0xff]
      %v3623 = vld [vmem:[#allocation7 + $0x30] sm:$0xff]
      %v3624 = vld [vmem:[#allocation7 + $0x38] sm:$0xff]
      %v3625 = vld [vmem:[%s10] sm:$0x1]
      %v3627 = vperm.slane %v3625, 0
      %v3629 = vmul.f32 %v3617, %v3627
      %v3630 = vmul.f32 %v3618, %v3627
      %v3631 = vmul.f32 %v3619, %v3627
      %v3632 = vmul.f32 %v3620, %v3627
      %v3633 = vmul.f32 %v3621, %v3627
      %v3634 = vmul.f32 %v3622, %v3627
      %v3635 = vmul.f32 %v3623, %v3627
      %v3636 = vmul.f32 %v3624, %v3627
      %vm3637 = vcmask 588800
      %v3638 = vsel %vm3637, %v3629, 0.0
      %3639 = vadd.xlane.f32.xlu0 %v3638
      %v3640 = vpop.xlane.xlu0 %3639
      %v3641 = vsel %vm3637, %v3630, 0.0
      %3642 = vadd.xlane.f32.xlu0 %v3641
      %v3643 = vpop.xlane.xlu0 %3642
      %v3644 = vsel %vm3637, %v3631, 0.0
      %3645 = vadd.xlane.f32.xlu0 %v3644
      %v3646 = vpop.xlane.xlu0 %3645
      %v3647 = vsel %vm3637, %v3632, 0.0
      %3648 = vadd.xlane.f32.xlu0 %v3647
      %v3649 = vpop.xlane.xlu0 %3648
      %v3650 = vsel %vm3637, %v3633, 0.0
      %3651 = vadd.xlane.f32.xlu0 %v3650
      %v3652 = vpop.xlane.xlu0 %3651
      %v3653 = vsel %vm3637, %v3634, 0.0
      %3654 = vadd.xlane.f32.xlu0 %v3653
      %v3655 = vpop.xlane.xlu0 %3654
      %v3656 = vsel %vm3637, %v3635, 0.0
      %3657 = vadd.xlane.f32.xlu0 %v3656
      %v3658 = vpop.xlane.xlu0 %3657
      %v3659 = vsel %vm3637, %v3636, 0.0
      %3660 = vadd.xlane.f32.xlu0 %v3659
      %v3661 = vpop.xlane.xlu0 %3660
      %v3662 = vxor.u32 %v3640, 2147483648
      %v3663 = vxor.u32 %v3643, 2147483648
      %v3664 = vxor.u32 %v3646, 2147483648
      %v3665 = vxor.u32 %v3649, 2147483648
      %v3666 = vxor.u32 %v3652, 2147483648
      %v3667 = vxor.u32 %v3655, 2147483648
      %v3668 = vxor.u32 %v3658, 2147483648
      %v3669 = vxor.u32 %v3661, 2147483648
      %v3670 = vmul.f32 %v3662, 1.442695
      %v3671 = vpow.pop %v3670
      %v3672 = vmul.f32 %v3663, 1.442695
      %v3673 = vpow.pop %v3672
      %v3674 = vmul.f32 %v3664, 1.442695
      %v3675 = vpow.pop %v3674
      %v3676 = vmul.f32 %v3665, 1.442695
      %v3677 = vpow.pop %v3676
      %v3678 = vmul.f32 %v3666, 1.442695
      %v3679 = vpow.pop %v3678
      %v3680 = vmul.f32 %v3667, 1.442695
      %v3681 = vpow.pop %v3680
      %v3682 = vmul.f32 %v3668, 1.442695
      %v3683 = vpow.pop %v3682
      %v3684 = vmul.f32 %v3669, 1.442695
      %v3685 = vpow.pop %v3684
      %v3686 = vadd.f32 %v3671, 1.0
      %v3687 = vadd.f32 %v3673, 1.0
      %v3688 = vadd.f32 %v3675, 1.0
      %v3689 = vadd.f32 %v3677, 1.0
      %v3690 = vadd.f32 %v3679, 1.0
      %v3691 = vadd.f32 %v3681, 1.0
      %v3692 = vadd.f32 %v3683, 1.0
      %v3693 = vadd.f32 %v3685, 1.0
      %v3694 = vrcp.pop %v3686
      %v3695 = vmul.f32 %v3686, %v3694
      %v3696 = vsub.f32 1.0, %v3695
      %v3697 = vmul.f32 %v3694, %v3696
      %v3698 = vadd.f32 %v3694, %v3697
      %vm3699 = vweird.f32 %v3686
      %vm3700 = vweird.f32 %v3694
      %vm3701 = vmor %vm3699, %vm3700
      %v3702 = vsel %vm3701, %v3694, %v3698
      %v3703 = vand.u32 2147483647, %v3686
      %vm3704 = vcmp.eq.f32.partialorder %v3703, 8.507059e+37
      %v3705 = vand.u32 %v3686, 2147483648
      %v3706 = vor.u32 1.1754944e-38, %v3705
      %v3707 = vsel %vm3704, %v3706, %v3702
      %v3708 = vmul.f32 1.0, %v3707
      %v3709 = vrcp.pop %v3687
      %v3710 = vmul.f32 %v3687, %v3709
      %v3711 = vsub.f32 1.0, %v3710
      %v3712 = vmul.f32 %v3709, %v3711
      %v3713 = vadd.f32 %v3709, %v3712
      %vm3714 = vweird.f32 %v3687
      %vm3715 = vweird.f32 %v3709
      %vm3716 = vmor %vm3714, %vm3715
      %v3717 = vsel %vm3716, %v3709, %v3713
      %v3718 = vand.u32 2147483647, %v3687
      %vm3719 = vcmp.eq.f32.partialorder %v3718, 8.507059e+37
      %v3720 = vand.u32 %v3687, 2147483648
      %v3721 = vor.u32 1.1754944e-38, %v3720
      %v3722 = vsel %vm3719, %v3721, %v3717
      %v3723 = vmul.f32 1.0, %v3722
      %v3724 = vrcp.pop %v3688
      %v3725 = vmul.f32 %v3688, %v3724
      %v3726 = vsub.f32 1.0, %v3725
      %v3727 = vmul.f32 %v3724, %v3726
      %v3728 = vadd.f32 %v3724, %v3727
      %vm3729 = vweird.f32 %v3688
      %vm3730 = vweird.f32 %v3724
      %vm3731 = vmor %vm3729, %vm3730
      %v3732 = vsel %vm3731, %v3724, %v3728
      %v3733 = vand.u32 2147483647, %v3688
      %vm3734 = vcmp.eq.f32.partialorder %v3733, 8.507059e+37
      %v3735 = vand.u32 %v3688, 2147483648
      %v3736 = vor.u32 1.1754944e-38, %v3735
      %v3737 = vsel %vm3734, %v3736, %v3732
      %v3738 = vmul.f32 1.0, %v3737
      %v3739 = vrcp.pop %v3689
      %v3740 = vmul.f32 %v3689, %v3739
      %v3741 = vsub.f32 1.0, %v3740
      %v3742 = vmul.f32 %v3739, %v3741
      %v3743 = vadd.f32 %v3739, %v3742
      %vm3744 = vweird.f32 %v3689
      %vm3745 = vweird.f32 %v3739
      %vm3746 = vmor %vm3744, %vm3745
      %v3747 = vsel %vm3746, %v3739, %v3743
      %v3748 = vand.u32 2147483647, %v3689
      %vm3749 = vcmp.eq.f32.partialorder %v3748, 8.507059e+37
      %v3750 = vand.u32 %v3689, 2147483648
      %v3751 = vor.u32 1.1754944e-38, %v3750
      %v3752 = vsel %vm3749, %v3751, %v3747
      %v3753 = vmul.f32 1.0, %v3752
      %v3754 = vrcp.pop %v3690
      %v3755 = vmul.f32 %v3690, %v3754
      %v3756 = vsub.f32 1.0, %v3755
      %v3757 = vmul.f32 %v3754, %v3756
      %v3758 = vadd.f32 %v3754, %v3757
      %vm3759 = vweird.f32 %v3690
      %vm3760 = vweird.f32 %v3754
      %vm3761 = vmor %vm3759, %vm3760
      %v3762 = vsel %vm3761, %v3754, %v3758
      %v3763 = vand.u32 2147483647, %v3690
      %vm3764 = vcmp.eq.f32.partialorder %v3763, 8.507059e+37
      %v3765 = vand.u32 %v3690, 2147483648
      %v3766 = vor.u32 1.1754944e-38, %v3765
      %v3767 = vsel %vm3764, %v3766, %v3762
      %v3768 = vmul.f32 1.0, %v3767
      %v3769 = vrcp.pop %v3691
      %v3770 = vmul.f32 %v3691, %v3769
      %v3771 = vsub.f32 1.0, %v3770
      %v3772 = vmul.f32 %v3769, %v3771
      %v3773 = vadd.f32 %v3769, %v3772
      %vm3774 = vweird.f32 %v3691
      %vm3775 = vweird.f32 %v3769
      %vm3776 = vmor %vm3774, %vm3775
      %v3777 = vsel %vm3776, %v3769, %v3773
      %v3778 = vand.u32 2147483647, %v3691
      %vm3779 = vcmp.eq.f32.partialorder %v3778, 8.507059e+37
      %v3780 = vand.u32 %v3691, 2147483648
      %v3781 = vor.u32 1.1754944e-38, %v3780
      %v3782 = vsel %vm3779, %v3781, %v3777
      %v3783 = vmul.f32 1.0, %v3782
      %v3784 = vrcp.pop %v3692
      %v3785 = vmul.f32 %v3692, %v3784
      %v3786 = vsub.f32 1.0, %v3785
      %v3787 = vmul.f32 %v3784, %v3786
      %v3788 = vadd.f32 %v3784, %v3787
      %vm3789 = vweird.f32 %v3692
      %vm3790 = vweird.f32 %v3784
      %vm3791 = vmor %vm3789, %vm3790
      %v3792 = vsel %vm3791, %v3784, %v3788
      %v3793 = vand.u32 2147483647, %v3692
      %vm3794 = vcmp.eq.f32.partialorder %v3793, 8.507059e+37
      %v3795 = vand.u32 %v3692, 2147483648
      %v3796 = vor.u32 1.1754944e-38, %v3795
      %v3797 = vsel %vm3794, %v3796, %v3792
      %v3798 = vmul.f32 1.0, %v3797
      %v3799 = vrcp.pop %v3693
      %v3800 = vmul.f32 %v3693, %v3799
      %v3801 = vsub.f32 1.0, %v3800
      %v3802 = vmul.f32 %v3799, %v3801
      %v3803 = vadd.f32 %v3799, %v3802
      %vm3804 = vweird.f32 %v3693
      %vm3805 = vweird.f32 %v3799
      %vm3806 = vmor %vm3804, %vm3805
      %v3807 = vsel %vm3806, %v3799, %v3803
      %v3808 = vand.u32 2147483647, %v3693
      %vm3809 = vcmp.eq.f32.partialorder %v3808, 8.507059e+37
      %v3810 = vand.u32 %v3693, 2147483648
      %v3811 = vor.u32 1.1754944e-38, %v3810
      %v3812 = vsel %vm3809, %v3811, %v3807
      %v3813 = vmul.f32 1.0, %v3812
      %v3814 = vmul.f32 %v2499, %v3708
      %v3815 = vmul.f32 %v2500, %v3723
      %v3816 = vmul.f32 %v2501, %v3738
      %v3817 = vmul.f32 %v2502, %v3753
      %v3818 = vmul.f32 %v2503, %v3768
      %v3819 = vmul.f32 %v2504, %v3783
      %v3820 = vmul.f32 %v2505, %v3798
      %v3821 = vmul.f32 %v2506, %v3813
      %v3822 = vadd.f32 %v3814, %v1067
      %v3823 = vadd.f32 %v3815, %v1068
      %v3824 = vadd.f32 %v3816, %v1069
      %v3825 = vadd.f32 %v3817, %v1070
      %v3826 = vadd.f32 %v3818, %v1071
      %v3827 = vadd.f32 %v3819, %v1072
      %v3828 = vadd.f32 %v3820, %v1073
      %v3829 = vadd.f32 %v3821, %v1074
      %v3830 = vmax.f32 %v3822, 0.0
      %v3831 = vmax.f32 %v3823, 0.0
      %v3832 = vmax.f32 %v3824, 0.0
      %v3833 = vmax.f32 %v3825, 0.0
      %v3834 = vmax.f32 %v3826, 0.0
      %v3835 = vmax.f32 %v3827, 0.0
      %v3836 = vmax.f32 %v3828, 0.0
      %v3837 = vmax.f32 %v3829, 0.0
      %v3846 = vrot.slane %v3831, 7
      %vm3847 = vcmask 1041409
      %v3848 = vsel %vm3847, %v3846, %v3830
      %v3849 = vrot.slane %v3832, 6
      %vm3850 = vcmask 1042434
      %v3851 = vsel %vm3850, %v3849, %v3848
      %v3852 = vrot.slane %v3833, 5
      %vm3853 = vcmask 1043459
      %v3854 = vsel %vm3853, %v3852, %v3851
      %v3855 = vrot.slane %v3834, 4
      %vm3856 = vcmask 1044484
      %v3857 = vsel %vm3856, %v3855, %v3854
      %v3858 = vrot.slane %v3835, 3
      %vm3859 = vcmask 1045509
      %v3860 = vsel %vm3859, %v3858, %v3857
      %v3861 = vrot.slane %v3836, 2
      %vm3862 = vcmask 1046534
      %v3863 = vsel %vm3862, %v3861, %v3860
      %v3864 = vrot.slane %v3837, 1
      %vm3865 = vcmask 1047559
      %v3866 = vsel %vm3865, %v3864, %v3863
      %3868 = vst.msk [vmem:[%s384] sm:$0xff] %vm414, %v3866
      %v3869 = vsel %vm3850, %v3846, %v3830
      %v3870 = vsel %vm3853, %v3849, %v3869
      %v3871 = vsel %vm3856, %v3852, %v3870
      %v3872 = vsel %vm3859, %v3855, %v3871
      %v3873 = vsel %vm3862, %v3858, %v3872
      %v3874 = vsel %vm3865, %v3861, %v3873
      %3875 = vrot.lane.b32.xlu0 %v3874, 16
      %v3876 = vpop.permute.xlu0 %3875
      %3877 = vrot.lane.b32.xlu0 %v3864, 16
      %v3878 = vpop.permute.xlu0 %3877
      %vm3881 = vcmask 261249
      %3882 = vst.msk [vmem:[%s384 - $0x1] sm:$0xfe] %vm3881, %v3876
      %vm3883 = vcmask 254080
      %3884 = vst.msk [vmem:[%s384 + $0x7] sm:$0x1] %vm3883, %v3878
      %v3885 = vsel %vm3853, %v3846, %v3830
      %v3886 = vsel %vm3856, %v3849, %v3885
      %v3887 = vsel %vm3859, %v3852, %v3886
      %v3888 = vsel %vm3862, %v3855, %v3887
      %v3889 = vsel %vm3865, %v3858, %v3888
      %v3890 = vsel %vm3847, %v3864, %v3861
      %3891 = vrot.lane.b32.xlu0 %v3889, 32
      %v3892 = vpop.permute.xlu0 %3891
      %3893 = vrot.lane.b32.xlu0 %v3890, 32
      %v3894 = vpop.permute.xlu0 %3893
      %vm3897 = vcmask 392450
      %3898 = vst.msk [vmem:[%s384 - $0x2] sm:$0xfc] %vm3897, %v3892
      %vm3899 = vcmask 386304
      %3900 = vst.msk [vmem:[%s384 + $0x6] sm:$0x3] %vm3899, %v3894
      %v3901 = vsel %vm3856, %v3846, %v3830
      %v3902 = vsel %vm3859, %v3849, %v3901
      %v3903 = vsel %vm3862, %v3852, %v3902
      %v3904 = vsel %vm3865, %v3855, %v3903
      %v3905 = vsel %vm3847, %v3861, %v3858
      %v3906 = vsel %vm3850, %v3864, %v3905
      %3907 = vrot.lane.b32.xlu0 %v3904, 48
      %v3908 = vpop.permute.xlu0 %3907
      %3909 = vrot.lane.b32.xlu0 %v3906, 48
      %v3910 = vpop.permute.xlu0 %3909
      %vm3913 = vcmask 523651
      %3914 = vst.msk [vmem:[%s384 - $0x3] sm:$0xf8] %vm3913, %v3908
      %vm3915 = vcmask 518528
      %3916 = vst.msk [vmem:[%s384 + $0x5] sm:$0x7] %vm3915, %v3910
      %v3917 = vsel %vm3859, %v3846, %v3830
      %v3918 = vsel %vm3862, %v3849, %v3917
      %v3919 = vsel %vm3865, %v3852, %v3918
      %v3920 = vsel %vm3847, %v3858, %v3855
      %v3921 = vsel %vm3850, %v3861, %v3920
      %v3922 = vsel %vm3853, %v3864, %v3921
      %3923 = vrot.lane.b32.xlu0 %v3919, 64
      %v3924 = vpop.permute.xlu0 %3923
      %3925 = vrot.lane.b32.xlu0 %v3922, 64
      %v3926 = vpop.permute.xlu0 %3925
      %vm3929 = vcmask 654852
      %3930 = vst.msk [vmem:[%s384 - $0x4] sm:$0xf0] %vm3929, %v3924
      %3931 = vst.msk [vmem:[%s384 + $0x4] sm:$0xf] %vm1328, %v3926
      %v3932 = vsel %vm3862, %v3846, %v3830
      %v3933 = vsel %vm3865, %v3849, %v3932
      %v3934 = vsel %vm3847, %v3855, %v3852
      %v3935 = vsel %vm3850, %v3858, %v3934
      %v3936 = vsel %vm3853, %v3861, %v3935
      %v3937 = vsel %vm3856, %v3864, %v3936
      %3938 = vrot.lane.b32.xlu0 %v3933, 80
      %v3939 = vpop.permute.xlu0 %3938
      %3940 = vrot.lane.b32.xlu0 %v3937, 80
      %v3941 = vpop.permute.xlu0 %3940
      %vm3944 = vcmask 786053
      %3945 = vst.msk [vmem:[%s384 - $0x5] sm:$0xe0] %vm3944, %v3939
      %vm3946 = vcmask 782976
      %3947 = vst.msk [vmem:[%s384 + $0x3] sm:$0x1f] %vm3946, %v3941
      %v3948 = vsel %vm3865, %v3846, %v3830
      %v3949 = vsel %vm3847, %v3852, %v3849
      %v3950 = vsel %vm3850, %v3855, %v3949
      %v3951 = vsel %vm3853, %v3858, %v3950
      %v3952 = vsel %vm3856, %v3861, %v3951
      %v3953 = vsel %vm3859, %v3864, %v3952
      %3954 = vrot.lane.b32.xlu0 %v3948, 96
      %v3955 = vpop.permute.xlu0 %3954
      %3956 = vrot.lane.b32.xlu0 %v3953, 96
      %v3957 = vpop.permute.xlu0 %3956
      %vm3960 = vcmask 917254
      %3961 = vst.msk [vmem:[%s384 - $0x6] sm:$0xc0] %vm3960, %v3955
      %vm3962 = vcmask 915200
      %3963 = vst.msk [vmem:[%s384 + $0x2] sm:$0x3f] %vm3962, %v3957
      %v3964 = vsel %vm3847, %v3849, %v3846
      %v3965 = vsel %vm3850, %v3852, %v3964
      %v3966 = vsel %vm3853, %v3855, %v3965
      %v3967 = vsel %vm3856, %v3858, %v3966
      %v3968 = vsel %vm3859, %v3861, %v3967
      %v3969 = vsel %vm3862, %v3864, %v3968
      %3970 = vrot.lane.b32.xlu0 %v3830, 112
      %v3971 = vpop.permute.xlu0 %3970
      %3972 = vrot.lane.b32.xlu0 %v3969, 112
      %v3973 = vpop.permute.xlu0 %3972
      %vm3976 = vcmask 1048455
      %3977 = vst.msk [vmem:[%s384 - $0x7] sm:$0x80] %vm3976, %v3971
      %vm3978 = vcmask 1047424
      %3979 = vst.msk [vmem:[%s384 + $0x1] sm:$0x7f] %vm3978, %v3973
      %p3980 = scmp.lt.s32.totalorder %s22, 1
      %s3981 = scalar_select %p3980, %s22, 1
      %s3982 = smul.addr %s3981, 8
      %s3983 = scalar_lea.vmem %s11, %s3982
      // Predicated region
      $region65: #{ecmba_forward.1} parent=63 // pred_check
        %p3984 = pneg %p276
      $region66: #{ecmba_forward.1} parent=63 // pred_check_branch
        %3986 = sbr.rel (%p3984) target = $region68
      $region67: #{ecmba_forward.1} parent=63 // pred_region
        _
      $region68: #{ecmba_forward.1} parent=63 // pred_fallthru
        _
    $region64: #{ecmba_forward.1} parent=5 // pred_fallthru
      _
    %p3987 = scmp.le.s32.totalorder 2, %s17
    // Predicated region
    $region69: #{ecmba_forward.1} parent=5 // pred_check
      %p3988 = pneg %p3987
    $region70: #{ecmba_forward.1} parent=5 // pred_check_branch
      %3990 = sbr.rel (%p3988) target = $region72
    $region71: #{ecmba_forward.1} parent=5 // pred_region
      %s3991 = ssub.s32 %s17, 2
      // Predicated region
      $region73: #{ecmba_forward.1} parent=71 // pred_check
        %p3992 = pneg %p282
      $region74: #{ecmba_forward.1} parent=71 // pred_check_branch
        %3994 = sbr.rel (%p3992) target = $region76
      $region75: #{ecmba_forward.1} parent=71 // pred_region
        %p3995 = scmp.lt.s32.totalorder %s23, 1
        %s3996 = scalar_select %p3995, %s23, 1
        %s3997 = smul.addr %s3996, 8
        %s3998 = scalar_lea.vmem %s11, %s3997
      $region76: #{ecmba_forward.1} parent=71 // pred_fallthru
        _
    $region72: #{ecmba_forward.1} parent=5 // pred_fallthru
      _
  $region6: #{ecmba_forward.1} parent=0 // loop_footer
    %s21 = sadd.s32 1, %s17
  $region7: #{ecmba_forward.1} parent=0 // loop_footer_branch
    %16 = sbr.rel target = $region3
  $region8: #{ecmba_forward.1} parent=0 // loop_exit
    _

</llo_original>
